<compile_context>
chip_gen: v6e
topology: v6e:2x2x1
jax: 0.10.0
libtpu: 0.0.40
codegen_flags: <defaults>
</compile_context>

<pallas_src>
import jax
import jax.numpy as jnp
import numpy as np
from jax import lax
from jax.experimental import pallas as pl
from jax.experimental.pallas import tpu as pltpu

KH = KW = 5
STRIDE = 2
PAD = 2
HIDDEN = 25      # get_asym_conv(512) -> hidden_size = 25
SB = 8           # sublane row block processed per inner iteration

# Static tap table: tap index -> (phase id, row offset, col offset) inside the
# stride-2 phase-decomposed, zero-padded image.
_TAPS = tuple(((kh % 2) * 2 + (kw % 2), kh // 2, kw // 2)
              for kh in range(KH) for kw in range(KW))


def _asym_conv_kernel(xp_ref, w1_ref, b1_ref, w2_ref, b2_ref, o_ref, tap_ref):
    """One (sample, output-row-tile) grid step.

    xp_ref : (1, 4, OH+2, OW+2) VMEM  phase-decomposed zero-padded image
    w1_ref : (25, 25)           SMEM  first-conv weights [channel, tap]
    b1_ref : (25,)              SMEM
    w2_ref : (25,)              SMEM  1x1-conv weights over hidden channels
    b2_ref : (1,)               SMEM
    o_ref  : (1, TM, OW)        VMEM  output row tile (OW on lanes)
    tap_ref: (25, SB, OW)       VMEM  scratch: tap slabs for one 8-row block
    """
    TM, OW = o_ref.shape[1], o_ref.shape[2]
    row0 = pl.program_id(1) * TM

    @pl.loop(0, TM // SB)
    def _(rb):
        rs = pl.multiple_of(row0 + rb * SB, SB)

        # Stage the 25 tap slabs for this 8-row block (1-2 vregs each).  The
        # odd-column lane shifts happen here, once per tap per block; the
        # channel loop below only does aligned, statically indexed reads.
        for t, (ph, oh0, ow0) in enumerate(_TAPS):
            tap_ref[t] = xp_ref[0, ph, pl.ds(rs + oh0, SB), pl.ds(ow0, OW)]

        # 25 hidden channels: fori_loop (5 x 5-way unrolled body) instead of a
        # fully unrolled 625-term expression.  Weights are SMEM scalars; the
        # per-channel bias is a scalar add folded into the ReLU input (no
        # slab-sized jnp.full init).
        def channel_block(i, y):
            for j in range(5):
                c = i * 5 + j
                acc = w1_ref[c, 0] * tap_ref[0]
                for t in range(1, KH * KW):
                    acc = acc + w1_ref[c, t] * tap_ref[t]
                h = jnp.maximum(acc + b1_ref[c], 0.0)
                y = y + w2_ref[c] * h
            return y

        y0 = jnp.full((SB, OW), b2_ref[0], jnp.float32)
        y = lax.fori_loop(0, HIDDEN // 5, channel_block, y0)
        o_ref[0, pl.ds(rb * SB, SB), :] = y.astype(o_ref.dtype)


def _pick_row_tile(oh):
    """Row-tile height.

    Target OH // 2 so there are >= 2 row tiles per sample (lets the 'parallel'
    row axis shard across v7x's 2 TensorCores even at N == 1) while keeping
    tiles large (128 rows at 512^2) so per-step pipeline overhead on single-TC
    chips (v5e/v6e) stays around 1%.
    """
    half = oh // 2
    if half % SB == 0 and half <= 512:
        return half
    for cand in (512, 256, 128, 64, 32, 16, 8):
        if oh % cand == 0:
            return cand
    return oh


def asym_conv_pallas(y_sym, w1, b1, w2, b2):
    """y_sym: (N, 1, H, W) f32  ->  y_pred: (N, 1, H//2, W//2) f32."""
    N, Cin, H, W = y_sym.shape
    assert Cin == 1
    # TODO(synk): k=5/s=2/p=2 yields ceil(H/2) rows for odd H; only even H/W
    # with H a multiple of 16 (the cfg's 512 resize) is handled here.
    assert H % (2 * SB) == 0 and W % STRIDE == 0
    OH, OW = H // STRIDE, W // STRIDE
    TM = _pick_row_tile(OH)

    # Glue: zero-pad + stride-2 phase decomposition so every conv tap is a
    # contiguous, lane-dense slice inside the kernel.
    x = y_sym[:, 0]                                              # (N, H, W)
    x_pad = jnp.pad(x, ((0, 0), (PAD, PAD), (PAD, PAD)))
    xp = jnp.stack([x_pad[:, rp::2, cp::2] for rp in (0, 1) for cp in (0, 1)],
                   axis=1)                                       # (N,4,OH+2,OW+2)
    Hph, Wph = xp.shape[2], xp.shape[3]

    # Small weight tables -> SMEM (scalar reads in the kernel).
    w1_tab = w1.reshape(HIDDEN, KH * KW).astype(jnp.float32)     # [channel, tap]
    b1_tab = b1.reshape(HIDDEN).astype(jnp.float32)
    w2_tab = w2.reshape(HIDDEN).astype(jnp.float32)
    b2_tab = b2.reshape(1).astype(jnp.float32)

    smem = pl.BlockSpec(memory_space=pltpu.MemorySpace.SMEM)
    out = pl.pallas_call(
        _asym_conv_kernel,
        out_shape=jax.ShapeDtypeStruct((N, OH, OW), jnp.float32),
        grid=(N, OH // TM),
        in_specs=[
            # Full phase image per sample (~1 MiB at 512^2): block index
            # depends only on n, so it is DMA'd once per sample and row tiles
            # slice it in-kernel (overlapping 2-row halos are not expressible
            # as non-overlapping blocks).
            pl.BlockSpec((1, 4, Hph, Wph), lambda n, t: (n, 0, 0, 0)),
            smem, smem, smem, smem,
        ],
        out_specs=pl.BlockSpec((1, TM, OW), lambda n, t: (n, t, 0)),
        scratch_shapes=[pltpu.VMEM((KH * KW, SB, OW), jnp.float32)],
        compiler_params=pltpu.CompilerParams(
            dimension_semantics=("parallel", "parallel")),
    )(xp, w1_tab, b1_tab, w2_tab, b2_tab)
    return out.reshape(N, 1, OH, OW)


def model_forward(x, params):
    """Mirrors Model.forward: returns (y_sym, y_pred)."""
    # TODO(synk): smp.Unet with the tu-maxvit_tiny_tf_512 encoder has no clean
    # Pallas translation in-script; y_sym is taken to be the 1-channel input x
    # and only the asym_conv head is implemented as a Pallas kernel.
    y_sym = x
    y_pred = asym_conv_pallas(y_sym, *params)
    return y_sym, y_pred


def _reference_forward(x, w1, b1, w2, b2):
    """Plain-JAX reference for the asym_conv head (NCHW)."""
    h = lax.conv_general_dilated(
        x, w1, window_strides=(STRIDE, STRIDE),
        padding=((PAD, PAD), (PAD, PAD)),
        dimension_numbers=("NCHW", "OIHW", "NCHW"),
        precision=lax.Precision.HIGHEST)
    h = jnp.maximum(h + b1[None, :, None, None], 0.0)
    y = jnp.sum(h * w2[0, :, 0, 0][None, :, None, None], axis=1, keepdims=True)
    return y + b2[0]


if __name__ == "__main__":
    key = jax.random.PRNGKey(0)
    k_x, k_w1, k_b1, k_w2, k_b2 = jax.random.split(key, 5)

    # Small shapes: N=2, C=1, H=W=32 (stand-in for the 512x512 y_sym mask).
    N, H, W = 2, 32, 32
    x = jax.random.normal(k_x, (N, 1, H, W), jnp.float32)

    # Deterministic parameter init (PyTorch-like uniform(-1/sqrt(fan_in), .)).
    bound1 = 1.0 / np.sqrt(1 * KH * KW)
    w1 = jax.random.uniform(k_w1, (HIDDEN, 1, KH, KW), jnp.float32, -bound1, bound1)
    b1 = jax.random.uniform(k_b1, (HIDDEN,), jnp.float32, -bound1, bound1)
    bound2 = 1.0 / np.sqrt(HIDDEN)
    w2 = jax.random.uniform(k_w2, (1, HIDDEN, 1, 1), jnp.float32, -bound2, bound2)
    b2 = jax.random.uniform(k_b2, (1,), jnp.float32, -bound2, bound2)

    params = (w1, b1, w2, b2)

    y_sym, y_pred = model_forward(x, params)
    y_sym = jax.block_until_ready(y_sym)
    y_pred = jax.block_until_ready(y_pred)

    assert y_sym.shape == (N, 1, H, W)
    assert y_pred.shape == (N, 1, H // 2, W // 2)

    y_ref = jax.block_until_ready(_reference_forward(x, w1, b1, w2, b2))
    np.testing.assert_allclose(np.asarray(y_pred), np.asarray(y_ref),
                               rtol=1e-5, atol=1e-5)

    print("KERNEL_OK")
</pallas_src>

<mosaic_0001>
module attributes {stable_mosaic.version = 11 : i64} {
  func.func @_asym_conv_kernel(%arg0: i32, %arg1: i32, %arg2: memref<1x4x18x18xf32, #tpu.memory_space<vmem>>, %arg3: memref<25x25xf32, #tpu.memory_space<smem>>, %arg4: memref<25xf32, #tpu.memory_space<smem>>, %arg5: memref<25xf32, #tpu.memory_space<smem>>, %arg6: memref<1xf32, #tpu.memory_space<smem>>, %arg7: memref<1x8x16xf32, #tpu.memory_space<vmem>>, %arg8: memref<25x8x16xf32, #tpu.memory_space<vmem>>) attributes {dimension_semantics = [#tpu.dimension_semantics<parallel>, #tpu.dimension_semantics<parallel>], iteration_bounds = array<i64: 2, 2>, scalar_prefetch = 0 : i64, scratch_operands = 1 : i64, tpu.core_type = #tpu.core_type<tc>, window_params = [{transform_indices = @transform_0, window_bounds = array<i64: 1, 4, 18, 18>}, {transform_indices = @transform_1, window_bounds = array<i64: 25, 25>}, {transform_indices = @transform_2, window_bounds = array<i64: 25>}, {transform_indices = @transform_3, window_bounds = array<i64: 25>}, {transform_indices = @transform_4, window_bounds = array<i64: 1>}, {transform_indices = @transform_5, window_bounds = array<i64: 1, 8, 16>}]} {
    %c8_i32 = arith.constant 8 : i32
    %0 = arith.muli %arg1, %c8_i32 : i32
    %c0_i32 = arith.constant 0 : i32
    %c1_i32 = arith.constant 1 : i32
    %1 = arith.muli %c0_i32, %c1_i32 : i32
    %c0_i32_0 = arith.constant 0 : i32
    %2 = arith.addi %c0_i32_0, %1 : i32
    %c8_i32_1 = arith.constant 8 : i32
    %3 = arith.muli %2, %c8_i32_1 : i32
    %4 = arith.addi %0, %3 : i32
    %5 = tpu.assume_multiple %4, 8 : i32
    %c0_i32_2 = arith.constant 0 : i32
    %6 = arith.addi %5, %c0_i32_2 : i32
    %c0 = arith.constant 0 : index
    %c0_3 = arith.constant 0 : index
    %7 = arith.index_cast %6 : i32 to index
    %c0_4 = arith.constant 0 : index
    %8 = vector.load %arg2[%c0, %c0_3, %7, %c0_4] : memref<1x4x18x18xf32, #tpu.memory_space<vmem>>, vector<1x1x8x16xf32>
    %9 = vector.shape_cast %8 : vector<1x1x8x16xf32> to vector<8x16xf32>
    %c0_5 = arith.constant 0 : index
    %c0_6 = arith.constant 0 : index
    %c0_7 = arith.constant 0 : index
    %10 = vector.load %arg8[%c0_5, %c0_6, %c0_7] : memref<25x8x16xf32, #tpu.memory_space<vmem>>, vector<1x8x16xf32>
    %11 = vector.shape_cast %10 : vector<1x8x16xf32> to vector<8x16xf32>
    %12 = vector.shape_cast %9 : vector<8x16xf32> to vector<1x8x16xf32>
    tpu.vector_store %arg8[%c0_5, %c0_6, %c0_7], %12 {strides = array<i32>} : memref<25x8x16xf32, #tpu.memory_space<vmem>>, vector<1x8x16xf32>,
    %c0_i32_8 = arith.constant 0 : i32
    %13 = arith.addi %5, %c0_i32_8 : i32
    %c0_9 = arith.constant 0 : index
    %c1 = arith.constant 1 : index
    %14 = arith.index_cast %13 : i32 to index
    %c0_10 = arith.constant 0 : index
    %15 = vector.load %arg2[%c0_9, %c1, %14, %c0_10] : memref<1x4x18x18xf32, #tpu.memory_space<vmem>>, vector<1x1x8x16xf32>
    %16 = vector.shape_cast %15 : vector<1x1x8x16xf32> to vector<8x16xf32>
    %c1_11 = arith.constant 1 : index
    %c0_12 = arith.constant 0 : index
    %c0_13 = arith.constant 0 : index
    %17 = vector.load %arg8[%c1_11, %c0_12, %c0_13] : memref<25x8x16xf32, #tpu.memory_space<vmem>>, vector<1x8x16xf32>
    %18 = vector.shape_cast %17 : vector<1x8x16xf32> to vector<8x16xf32>
    %19 = vector.shape_cast %16 : vector<8x16xf32> to vector<1x8x16xf32>
    tpu.vector_store %arg8[%c1_11, %c0_12, %c0_13], %19 {strides = array<i32>} : memref<25x8x16xf32, #tpu.memory_space<vmem>>, vector<1x8x16xf32>,
    %c0_i32_14 = arith.constant 0 : i32
    %20 = arith.addi %5, %c0_i32_14 : i32
    %c0_15 = arith.constant 0 : index
    %c0_16 = arith.constant 0 : index
    %21 = arith.index_cast %20 : i32 to index
    %c1_17 = arith.constant 1 : index
    %22 = vector.load %arg2[%c0_15, %c0_16, %21, %c1_17] : memref<1x4x18x18xf32, #tpu.memory_space<vmem>>, vector<1x1x8x16xf32>
    %23 = vector.shape_cast %22 : vector<1x1x8x16xf32> to vector<8x16xf32>
    %c2 = arith.constant 2 : index
    %c0_18 = arith.constant 0 : index
    %c0_19 = arith.constant 0 : index
    %24 = vector.load %arg8[%c2, %c0_18, %c0_19] : memref<25x8x16xf32, #tpu.memory_space<vmem>>, vector<1x8x16xf32>
    %25 = vector.shape_cast %24 : vector<1x8x16xf32> to vector<8x16xf32>
    %26 = vector.shape_cast %23 : vector<8x16xf32> to vector<1x8x16xf32>
    tpu.vector_store %arg8[%c2, %c0_18, %c0_19], %26 {strides = array<i32>} : memref<25x8x16xf32, #tpu.memory_space<vmem>>, vector<1x8x16xf32>,
    %c0_i32_20 = arith.constant 0 : i32
    %27 = arith.addi %5, %c0_i32_20 : i32
    %c0_21 = arith.constant 0 : index
    %c1_22 = arith.constant 1 : index
    %28 = arith.index_cast %27 : i32 to index
    %c1_23 = arith.constant 1 : index
    %29 = vector.load %arg2[%c0_21, %c1_22, %28, %c1_23] : memref<1x4x18x18xf32, #tpu.memory_space<vmem>>, vector<1x1x8x16xf32>
    %30 = vector.shape_cast %29 : vector<1x1x8x16xf32> to vector<8x16xf32>
    %c3 = arith.constant 3 : index
    %c0_24 = arith.constant 0 : index
    %c0_25 = arith.constant 0 : index
    %31 = vector.load %arg8[%c3, %c0_24, %c0_25] : memref<25x8x16xf32, #tpu.memory_space<vmem>>, vector<1x8x16xf32>
    %32 = vector.shape_cast %31 : vector<1x8x16xf32> to vector<8x16xf32>
    %33 = vector.shape_cast %30 : vector<8x16xf32> to vector<1x8x16xf32>
    tpu.vector_store %arg8[%c3, %c0_24, %c0_25], %33 {strides = array<i32>} : memref<25x8x16xf32, #tpu.memory_space<vmem>>, vector<1x8x16xf32>,
    %c0_i32_26 = arith.constant 0 : i32
    %34 = arith.addi %5, %c0_i32_26 : i32
    %c0_27 = arith.constant 0 : index
    %c0_28 = arith.constant 0 : index
    %35 = arith.index_cast %34 : i32 to index
    %c2_29 = arith.constant 2 : index
    %36 = vector.load %arg2[%c0_27, %c0_28, %35, %c2_29] : memref<1x4x18x18xf32, #tpu.memory_space<vmem>>, vector<1x1x8x16xf32>
    %37 = vector.shape_cast %36 : vector<1x1x8x16xf32> to vector<8x16xf32>
    %c4 = arith.constant 4 : index
    %c0_30 = arith.constant 0 : index
    %c0_31 = arith.constant 0 : index
    %38 = vector.load %arg8[%c4, %c0_30, %c0_31] : memref<25x8x16xf32, #tpu.memory_space<vmem>>, vector<1x8x16xf32>
    %39 = vector.shape_cast %38 : vector<1x8x16xf32> to vector<8x16xf32>
    %40 = vector.shape_cast %37 : vector<8x16xf32> to vector<1x8x16xf32>
    tpu.vector_store %arg8[%c4, %c0_30, %c0_31], %40 {strides = array<i32>} : memref<25x8x16xf32, #tpu.memory_space<vmem>>, vector<1x8x16xf32>,
    %c0_i32_32 = arith.constant 0 : i32
    %41 = arith.addi %5, %c0_i32_32 : i32
    %c0_33 = arith.constant 0 : index
    %c2_34 = arith.constant 2 : index
    %42 = arith.index_cast %41 : i32 to index
    %c0_35 = arith.constant 0 : index
    %43 = vector.load %arg2[%c0_33, %c2_34, %42, %c0_35] : memref<1x4x18x18xf32, #tpu.memory_space<vmem>>, vector<1x1x8x16xf32>
    %44 = vector.shape_cast %43 : vector<1x1x8x16xf32> to vector<8x16xf32>
    %c5 = arith.constant 5 : index
    %c0_36 = arith.constant 0 : index
    %c0_37 = arith.constant 0 : index
    %45 = vector.load %arg8[%c5, %c0_36, %c0_37] : memref<25x8x16xf32, #tpu.memory_space<vmem>>, vector<1x8x16xf32>
    %46 = vector.shape_cast %45 : vector<1x8x16xf32> to vector<8x16xf32>
    %47 = vector.shape_cast %44 : vector<8x16xf32> to vector<1x8x16xf32>
    tpu.vector_store %arg8[%c5, %c0_36, %c0_37], %47 {strides = array<i32>} : memref<25x8x16xf32, #tpu.memory_space<vmem>>, vector<1x8x16xf32>,
    %c0_i32_38 = arith.constant 0 : i32
    %48 = arith.addi %5, %c0_i32_38 : i32
    %c0_39 = arith.constant 0 : index
    %c3_40 = arith.constant 3 : index
    %49 = arith.index_cast %48 : i32 to index
    %c0_41 = arith.constant 0 : index
    %50 = vector.load %arg2[%c0_39, %c3_40, %49, %c0_41] : memref<1x4x18x18xf32, #tpu.memory_space<vmem>>, vector<1x1x8x16xf32>
    %51 = vector.shape_cast %50 : vector<1x1x8x16xf32> to vector<8x16xf32>
    %c6 = arith.constant 6 : index
    %c0_42 = arith.constant 0 : index
    %c0_43 = arith.constant 0 : index
    %52 = vector.load %arg8[%c6, %c0_42, %c0_43] : memref<25x8x16xf32, #tpu.memory_space<vmem>>, vector<1x8x16xf32>
    %53 = vector.shape_cast %52 : vector<1x8x16xf32> to vector<8x16xf32>
    %54 = vector.shape_cast %51 : vector<8x16xf32> to vector<1x8x16xf32>
    tpu.vector_store %arg8[%c6, %c0_42, %c0_43], %54 {strides = array<i32>} : memref<25x8x16xf32, #tpu.memory_space<vmem>>, vector<1x8x16xf32>,
    %c0_i32_44 = arith.constant 0 : i32
    %55 = arith.addi %5, %c0_i32_44 : i32
    %c0_45 = arith.constant 0 : index
    %c2_46 = arith.constant 2 : index
    %56 = arith.index_cast %55 : i32 to index
    %c1_47 = arith.constant 1 : index
    %57 = vector.load %arg2[%c0_45, %c2_46, %56, %c1_47] : memref<1x4x18x18xf32, #tpu.memory_space<vmem>>, vector<1x1x8x16xf32>
    %58 = vector.shape_cast %57 : vector<1x1x8x16xf32> to vector<8x16xf32>
    %c7 = arith.constant 7 : index
    %c0_48 = arith.constant 0 : index
    %c0_49 = arith.constant 0 : index
    %59 = vector.load %arg8[%c7, %c0_48, %c0_49] : memref<25x8x16xf32, #tpu.memory_space<vmem>>, vector<1x8x16xf32>
    %60 = vector.shape_cast %59 : vector<1x8x16xf32> to vector<8x16xf32>
    %61 = vector.shape_cast %58 : vector<8x16xf32> to vector<1x8x16xf32>
    tpu.vector_store %arg8[%c7, %c0_48, %c0_49], %61 {strides = array<i32>} : memref<25x8x16xf32, #tpu.memory_space<vmem>>, vector<1x8x16xf32>,
    %c0_i32_50 = arith.constant 0 : i32
    %62 = arith.addi %5, %c0_i32_50 : i32
    %c0_51 = arith.constant 0 : index
    %c3_52 = arith.constant 3 : index
    %63 = arith.index_cast %62 : i32 to index
    %c1_53 = arith.constant 1 : index
    %64 = vector.load %arg2[%c0_51, %c3_52, %63, %c1_53] : memref<1x4x18x18xf32, #tpu.memory_space<vmem>>, vector<1x1x8x16xf32>
    %65 = vector.shape_cast %64 : vector<1x1x8x16xf32> to vector<8x16xf32>
    %c8 = arith.constant 8 : index
    %c0_54 = arith.constant 0 : index
    %c0_55 = arith.constant 0 : index
    %66 = vector.load %arg8[%c8, %c0_54, %c0_55] : memref<25x8x16xf32, #tpu.memory_space<vmem>>, vector<1x8x16xf32>
    %67 = vector.shape_cast %66 : vector<1x8x16xf32> to vector<8x16xf32>
    %68 = vector.shape_cast %65 : vector<8x16xf32> to vector<1x8x16xf32>
    tpu.vector_store %arg8[%c8, %c0_54, %c0_55], %68 {strides = array<i32>} : memref<25x8x16xf32, #tpu.memory_space<vmem>>, vector<1x8x16xf32>,
    %c0_i32_56 = arith.constant 0 : i32
    %69 = arith.addi %5, %c0_i32_56 : i32
    %c0_57 = arith.constant 0 : index
    %c2_58 = arith.constant 2 : index
    %70 = arith.index_cast %69 : i32 to index
    %c2_59 = arith.constant 2 : index
    %71 = vector.load %arg2[%c0_57, %c2_58, %70, %c2_59] : memref<1x4x18x18xf32, #tpu.memory_space<vmem>>, vector<1x1x8x16xf32>
    %72 = vector.shape_cast %71 : vector<1x1x8x16xf32> to vector<8x16xf32>
    %c9 = arith.constant 9 : index
    %c0_60 = arith.constant 0 : index
    %c0_61 = arith.constant 0 : index
    %73 = vector.load %arg8[%c9, %c0_60, %c0_61] : memref<25x8x16xf32, #tpu.memory_space<vmem>>, vector<1x8x16xf32>
    %74 = vector.shape_cast %73 : vector<1x8x16xf32> to vector<8x16xf32>
    %75 = vector.shape_cast %72 : vector<8x16xf32> to vector<1x8x16xf32>
    tpu.vector_store %arg8[%c9, %c0_60, %c0_61], %75 {strides = array<i32>} : memref<25x8x16xf32, #tpu.memory_space<vmem>>, vector<1x8x16xf32>,
    %c1_i32_62 = arith.constant 1 : i32
    %76 = arith.addi %5, %c1_i32_62 : i32
    %c0_63 = arith.constant 0 : index
    %c0_64 = arith.constant 0 : index
    %77 = arith.index_cast %76 : i32 to index
    %c0_65 = arith.constant 0 : index
    %78 = vector.load %arg2[%c0_63, %c0_64, %77, %c0_65] : memref<1x4x18x18xf32, #tpu.memory_space<vmem>>, vector<1x1x8x16xf32>
    %79 = vector.shape_cast %78 : vector<1x1x8x16xf32> to vector<8x16xf32>
    %c10 = arith.constant 10 : index
    %c0_66 = arith.constant 0 : index
    %c0_67 = arith.constant 0 : index
    %80 = vector.load %arg8[%c10, %c0_66, %c0_67] : memref<25x8x16xf32, #tpu.memory_space<vmem>>, vector<1x8x16xf32>
    %81 = vector.shape_cast %80 : vector<1x8x16xf32> to vector<8x16xf32>
    %82 = vector.shape_cast %79 : vector<8x16xf32> to vector<1x8x16xf32>
    tpu.vector_store %arg8[%c10, %c0_66, %c0_67], %82 {strides = array<i32>} : memref<25x8x16xf32, #tpu.memory_space<vmem>>, vector<1x8x16xf32>,
    %c1_i32_68 = arith.constant 1 : i32
    %83 = arith.addi %5, %c1_i32_68 : i32
    %c0_69 = arith.constant 0 : index
    %c1_70 = arith.constant 1 : index
    %84 = arith.index_cast %83 : i32 to index
    %c0_71 = arith.constant 0 : index
    %85 = vector.load %arg2[%c0_69, %c1_70, %84, %c0_71] : memref<1x4x18x18xf32, #tpu.memory_space<vmem>>, vector<1x1x8x16xf32>
    %86 = vector.shape_cast %85 : vector<1x1x8x16xf32> to vector<8x16xf32>
    %c11 = arith.constant 11 : index
    %c0_72 = arith.constant 0 : index
    %c0_73 = arith.constant 0 : index
    %87 = vector.load %arg8[%c11, %c0_72, %c0_73] : memref<25x8x16xf32, #tpu.memory_space<vmem>>, vector<1x8x16xf32>
    %88 = vector.shape_cast %87 : vector<1x8x16xf32> to vector<8x16xf32>
    %89 = vector.shape_cast %86 : vector<8x16xf32> to vector<1x8x16xf32>
    tpu.vector_store %arg8[%c11, %c0_72, %c0_73], %89 {strides = array<i32>} : memref<25x8x16xf32, #tpu.memory_space<vmem>>, vector<1x8x16xf32>,
    %c1_i32_74 = arith.constant 1 : i32
    %90 = arith.addi %5, %c1_i32_74 : i32
    %c0_75 = arith.constant 0 : index
    %c0_76 = arith.constant 0 : index
    %91 = arith.index_cast %90 : i32 to index
    %c1_77 = arith.constant 1 : index
    %92 = vector.load %arg2[%c0_75, %c0_76, %91, %c1_77] : memref<1x4x18x18xf32, #tpu.memory_space<vmem>>, vector<1x1x8x16xf32>
    %93 = vector.shape_cast %92 : vector<1x1x8x16xf32> to vector<8x16xf32>
    %c12 = arith.constant 12 : index
    %c0_78 = arith.constant 0 : index
    %c0_79 = arith.constant 0 : index
    %94 = vector.load %arg8[%c12, %c0_78, %c0_79] : memref<25x8x16xf32, #tpu.memory_space<vmem>>, vector<1x8x16xf32>
    %95 = vector.shape_cast %94 : vector<1x8x16xf32> to vector<8x16xf32>
    %96 = vector.shape_cast %93 : vector<8x16xf32> to vector<1x8x16xf32>
    tpu.vector_store %arg8[%c12, %c0_78, %c0_79], %96 {strides = array<i32>} : memref<25x8x16xf32, #tpu.memory_space<vmem>>, vector<1x8x16xf32>,
    %c1_i32_80 = arith.constant 1 : i32
    %97 = arith.addi %5, %c1_i32_80 : i32
    %c0_81 = arith.constant 0 : index
    %c1_82 = arith.constant 1 : index
    %98 = arith.index_cast %97 : i32 to index
    %c1_83 = arith.constant 1 : index
    %99 = vector.load %arg2[%c0_81, %c1_82, %98, %c1_83] : memref<1x4x18x18xf32, #tpu.memory_space<vmem>>, vector<1x1x8x16xf32>
    %100 = vector.shape_cast %99 : vector<1x1x8x16xf32> to vector<8x16xf32>
    %c13 = arith.constant 13 : index
    %c0_84 = arith.constant 0 : index
    %c0_85 = arith.constant 0 : index
    %101 = vector.load %arg8[%c13, %c0_84, %c0_85] : memref<25x8x16xf32, #tpu.memory_space<vmem>>, vector<1x8x16xf32>
    %102 = vector.shape_cast %101 : vector<1x8x16xf32> to vector<8x16xf32>
    %103 = vector.shape_cast %100 : vector<8x16xf32> to vector<1x8x16xf32>
    tpu.vector_store %arg8[%c13, %c0_84, %c0_85], %103 {strides = array<i32>} : memref<25x8x16xf32, #tpu.memory_space<vmem>>, vector<1x8x16xf32>,
    %c1_i32_86 = arith.constant 1 : i32
    %104 = arith.addi %5, %c1_i32_86 : i32
    %c0_87 = arith.constant 0 : index
    %c0_88 = arith.constant 0 : index
    %105 = arith.index_cast %104 : i32 to index
    %c2_89 = arith.constant 2 : index
    %106 = vector.load %arg2[%c0_87, %c0_88, %105, %c2_89] : memref<1x4x18x18xf32, #tpu.memory_space<vmem>>, vector<1x1x8x16xf32>
    %107 = vector.shape_cast %106 : vector<1x1x8x16xf32> to vector<8x16xf32>
    %c14 = arith.constant 14 : index
    %c0_90 = arith.constant 0 : index
    %c0_91 = arith.constant 0 : index
    %108 = vector.load %arg8[%c14, %c0_90, %c0_91] : memref<25x8x16xf32, #tpu.memory_space<vmem>>, vector<1x8x16xf32>
    %109 = vector.shape_cast %108 : vector<1x8x16xf32> to vector<8x16xf32>
    %110 = vector.shape_cast %107 : vector<8x16xf32> to vector<1x8x16xf32>
    tpu.vector_store %arg8[%c14, %c0_90, %c0_91], %110 {strides = array<i32>} : memref<25x8x16xf32, #tpu.memory_space<vmem>>, vector<1x8x16xf32>,
    %c1_i32_92 = arith.constant 1 : i32
    %111 = arith.addi %5, %c1_i32_92 : i32
    %c0_93 = arith.constant 0 : index
    %c2_94 = arith.constant 2 : index
    %112 = arith.index_cast %111 : i32 to index
    %c0_95 = arith.constant 0 : index
    %113 = vector.load %arg2[%c0_93, %c2_94, %112, %c0_95] : memref<1x4x18x18xf32, #tpu.memory_space<vmem>>, vector<1x1x8x16xf32>
    %114 = vector.shape_cast %113 : vector<1x1x8x16xf32> to vector<8x16xf32>
    %c15 = arith.constant 15 : index
    %c0_96 = arith.constant 0 : index
    %c0_97 = arith.constant 0 : index
    %115 = vector.load %arg8[%c15, %c0_96, %c0_97] : memref<25x8x16xf32, #tpu.memory_space<vmem>>, vector<1x8x16xf32>
    %116 = vector.shape_cast %115 : vector<1x8x16xf32> to vector<8x16xf32>
    %117 = vector.shape_cast %114 : vector<8x16xf32> to vector<1x8x16xf32>
    tpu.vector_store %arg8[%c15, %c0_96, %c0_97], %117 {strides = array<i32>} : memref<25x8x16xf32, #tpu.memory_space<vmem>>, vector<1x8x16xf32>,
    %c1_i32_98 = arith.constant 1 : i32
    %118 = arith.addi %5, %c1_i32_98 : i32
    %c0_99 = arith.constant 0 : index
    %c3_100 = arith.constant 3 : index
    %119 = arith.index_cast %118 : i32 to index
    %c0_101 = arith.constant 0 : index
    %120 = vector.load %arg2[%c0_99, %c3_100, %119, %c0_101] : memref<1x4x18x18xf32, #tpu.memory_space<vmem>>, vector<1x1x8x16xf32>
    %121 = vector.shape_cast %120 : vector<1x1x8x16xf32> to vector<8x16xf32>
    %c16 = arith.constant 16 : index
    %c0_102 = arith.constant 0 : index
    %c0_103 = arith.constant 0 : index
    %122 = vector.load %arg8[%c16, %c0_102, %c0_103] : memref<25x8x16xf32, #tpu.memory_space<vmem>>, vector<1x8x16xf32>
    %123 = vector.shape_cast %122 : vector<1x8x16xf32> to vector<8x16xf32>
    %124 = vector.shape_cast %121 : vector<8x16xf32> to vector<1x8x16xf32>
    tpu.vector_store %arg8[%c16, %c0_102, %c0_103], %124 {strides = array<i32>} : memref<25x8x16xf32, #tpu.memory_space<vmem>>, vector<1x8x16xf32>,
    %c1_i32_104 = arith.constant 1 : i32
    %125 = arith.addi %5, %c1_i32_104 : i32
    %c0_105 = arith.constant 0 : index
    %c2_106 = arith.constant 2 : index
    %126 = arith.index_cast %125 : i32 to index
    %c1_107 = arith.constant 1 : index
    %127 = vector.load %arg2[%c0_105, %c2_106, %126, %c1_107] : memref<1x4x18x18xf32, #tpu.memory_space<vmem>>, vector<1x1x8x16xf32>
    %128 = vector.shape_cast %127 : vector<1x1x8x16xf32> to vector<8x16xf32>
    %c17 = arith.constant 17 : index
    %c0_108 = arith.constant 0 : index
    %c0_109 = arith.constant 0 : index
    %129 = vector.load %arg8[%c17, %c0_108, %c0_109] : memref<25x8x16xf32, #tpu.memory_space<vmem>>, vector<1x8x16xf32>
    %130 = vector.shape_cast %129 : vector<1x8x16xf32> to vector<8x16xf32>
    %131 = vector.shape_cast %128 : vector<8x16xf32> to vector<1x8x16xf32>
    tpu.vector_store %arg8[%c17, %c0_108, %c0_109], %131 {strides = array<i32>} : memref<25x8x16xf32, #tpu.memory_space<vmem>>, vector<1x8x16xf32>,
    %c1_i32_110 = arith.constant 1 : i32
    %132 = arith.addi %5, %c1_i32_110 : i32
    %c0_111 = arith.constant 0 : index
    %c3_112 = arith.constant 3 : index
    %133 = arith.index_cast %132 : i32 to index
    %c1_113 = arith.constant 1 : index
    %134 = vector.load %arg2[%c0_111, %c3_112, %133, %c1_113] : memref<1x4x18x18xf32, #tpu.memory_space<vmem>>, vector<1x1x8x16xf32>
    %135 = vector.shape_cast %134 : vector<1x1x8x16xf32> to vector<8x16xf32>
    %c18 = arith.constant 18 : index
    %c0_114 = arith.constant 0 : index
    %c0_115 = arith.constant 0 : index
    %136 = vector.load %arg8[%c18, %c0_114, %c0_115] : memref<25x8x16xf32, #tpu.memory_space<vmem>>, vector<1x8x16xf32>
    %137 = vector.shape_cast %136 : vector<1x8x16xf32> to vector<8x16xf32>
    %138 = vector.shape_cast %135 : vector<8x16xf32> to vector<1x8x16xf32>
    tpu.vector_store %arg8[%c18, %c0_114, %c0_115], %138 {strides = array<i32>} : memref<25x8x16xf32, #tpu.memory_space<vmem>>, vector<1x8x16xf32>,
    %c1_i32_116 = arith.constant 1 : i32
    %139 = arith.addi %5, %c1_i32_116 : i32
    %c0_117 = arith.constant 0 : index
    %c2_118 = arith.constant 2 : index
    %140 = arith.index_cast %139 : i32 to index
    %c2_119 = arith.constant 2 : index
    %141 = vector.load %arg2[%c0_117, %c2_118, %140, %c2_119] : memref<1x4x18x18xf32, #tpu.memory_space<vmem>>, vector<1x1x8x16xf32>
    %142 = vector.shape_cast %141 : vector<1x1x8x16xf32> to vector<8x16xf32>
    %c19 = arith.constant 19 : index
    %c0_120 = arith.constant 0 : index
    %c0_121 = arith.constant 0 : index
    %143 = vector.load %arg8[%c19, %c0_120, %c0_121] : memref<25x8x16xf32, #tpu.memory_space<vmem>>, vector<1x8x16xf32>
    %144 = vector.shape_cast %143 : vector<1x8x16xf32> to vector<8x16xf32>
    %145 = vector.shape_cast %142 : vector<8x16xf32> to vector<1x8x16xf32>
    tpu.vector_store %arg8[%c19, %c0_120, %c0_121], %145 {strides = array<i32>} : memref<25x8x16xf32, #tpu.memory_space<vmem>>, vector<1x8x16xf32>,
    %c2_i32 = arith.constant 2 : i32
    %146 = arith.addi %5, %c2_i32 : i32
    %c0_122 = arith.constant 0 : index
    %c0_123 = arith.constant 0 : index
    %147 = arith.index_cast %146 : i32 to index
    %c0_124 = arith.constant 0 : index
    %148 = vector.load %arg2[%c0_122, %c0_123, %147, %c0_124] : memref<1x4x18x18xf32, #tpu.memory_space<vmem>>, vector<1x1x8x16xf32>
    %149 = vector.shape_cast %148 : vector<1x1x8x16xf32> to vector<8x16xf32>
    %c20 = arith.constant 20 : index
    %c0_125 = arith.constant 0 : index
    %c0_126 = arith.constant 0 : index
    %150 = vector.load %arg8[%c20, %c0_125, %c0_126] : memref<25x8x16xf32, #tpu.memory_space<vmem>>, vector<1x8x16xf32>
    %151 = vector.shape_cast %150 : vector<1x8x16xf32> to vector<8x16xf32>
    %152 = vector.shape_cast %149 : vector<8x16xf32> to vector<1x8x16xf32>
    tpu.vector_store %arg8[%c20, %c0_125, %c0_126], %152 {strides = array<i32>} : memref<25x8x16xf32, #tpu.memory_space<vmem>>, vector<1x8x16xf32>,
    %c2_i32_127 = arith.constant 2 : i32
    %153 = arith.addi %5, %c2_i32_127 : i32
    %c0_128 = arith.constant 0 : index
    %c1_129 = arith.constant 1 : index
    %154 = arith.index_cast %153 : i32 to index
    %c0_130 = arith.constant 0 : index
    %155 = vector.load %arg2[%c0_128, %c1_129, %154, %c0_130] : memref<1x4x18x18xf32, #tpu.memory_space<vmem>>, vector<1x1x8x16xf32>
    %156 = vector.shape_cast %155 : vector<1x1x8x16xf32> to vector<8x16xf32>
    %c21 = arith.constant 21 : index
    %c0_131 = arith.constant 0 : index
    %c0_132 = arith.constant 0 : index
    %157 = vector.load %arg8[%c21, %c0_131, %c0_132] : memref<25x8x16xf32, #tpu.memory_space<vmem>>, vector<1x8x16xf32>
    %158 = vector.shape_cast %157 : vector<1x8x16xf32> to vector<8x16xf32>
    %159 = vector.shape_cast %156 : vector<8x16xf32> to vector<1x8x16xf32>
    tpu.vector_store %arg8[%c21, %c0_131, %c0_132], %159 {strides = array<i32>} : memref<25x8x16xf32, #tpu.memory_space<vmem>>, vector<1x8x16xf32>,
    %c2_i32_133 = arith.constant 2 : i32
    %160 = arith.addi %5, %c2_i32_133 : i32
    %c0_134 = arith.constant 0 : index
    %c0_135 = arith.constant 0 : index
    %161 = arith.index_cast %160 : i32 to index
    %c1_136 = arith.constant 1 : index
    %162 = vector.load %arg2[%c0_134, %c0_135, %161, %c1_136] : memref<1x4x18x18xf32, #tpu.memory_space<vmem>>, vector<1x1x8x16xf32>
    %163 = vector.shape_cast %162 : vector<1x1x8x16xf32> to vector<8x16xf32>
    %c22 = arith.constant 22 : index
    %c0_137 = arith.constant 0 : index
    %c0_138 = arith.constant 0 : index
    %164 = vector.load %arg8[%c22, %c0_137, %c0_138] : memref<25x8x16xf32, #tpu.memory_space<vmem>>, vector<1x8x16xf32>
    %165 = vector.shape_cast %164 : vector<1x8x16xf32> to vector<8x16xf32>
    %166 = vector.shape_cast %163 : vector<8x16xf32> to vector<1x8x16xf32>
    tpu.vector_store %arg8[%c22, %c0_137, %c0_138], %166 {strides = array<i32>} : memref<25x8x16xf32, #tpu.memory_space<vmem>>, vector<1x8x16xf32>,
    %c2_i32_139 = arith.constant 2 : i32
    %167 = arith.addi %5, %c2_i32_139 : i32
    %c0_140 = arith.constant 0 : index
    %c1_141 = arith.constant 1 : index
    %168 = arith.index_cast %167 : i32 to index
    %c1_142 = arith.constant 1 : index
    %169 = vector.load %arg2[%c0_140, %c1_141, %168, %c1_142] : memref<1x4x18x18xf32, #tpu.memory_space<vmem>>, vector<1x1x8x16xf32>
    %170 = vector.shape_cast %169 : vector<1x1x8x16xf32> to vector<8x16xf32>
    %c23 = arith.constant 23 : index
    %c0_143 = arith.constant 0 : index
    %c0_144 = arith.constant 0 : index
    %171 = vector.load %arg8[%c23, %c0_143, %c0_144] : memref<25x8x16xf32, #tpu.memory_space<vmem>>, vector<1x8x16xf32>
    %172 = vector.shape_cast %171 : vector<1x8x16xf32> to vector<8x16xf32>
    %173 = vector.shape_cast %170 : vector<8x16xf32> to vector<1x8x16xf32>
    tpu.vector_store %arg8[%c23, %c0_143, %c0_144], %173 {strides = array<i32>} : memref<25x8x16xf32, #tpu.memory_space<vmem>>, vector<1x8x16xf32>,
    %c2_i32_145 = arith.constant 2 : i32
    %174 = arith.addi %5, %c2_i32_145 : i32
    %c0_146 = arith.constant 0 : index
    %c0_147 = arith.constant 0 : index
    %175 = arith.index_cast %174 : i32 to index
    %c2_148 = arith.constant 2 : index
    %176 = vector.load %arg2[%c0_146, %c0_147, %175, %c2_148] : memref<1x4x18x18xf32, #tpu.memory_space<vmem>>, vector<1x1x8x16xf32>
    %177 = vector.shape_cast %176 : vector<1x1x8x16xf32> to vector<8x16xf32>
    %c24 = arith.constant 24 : index
    %c0_149 = arith.constant 0 : index
    %c0_150 = arith.constant 0 : index
    %178 = vector.load %arg8[%c24, %c0_149, %c0_150] : memref<25x8x16xf32, #tpu.memory_space<vmem>>, vector<1x8x16xf32>
    %179 = vector.shape_cast %178 : vector<1x8x16xf32> to vector<8x16xf32>
    %180 = vector.shape_cast %177 : vector<8x16xf32> to vector<1x8x16xf32>
    tpu.vector_store %arg8[%c24, %c0_149, %c0_150], %180 {strides = array<i32>} : memref<25x8x16xf32, #tpu.memory_space<vmem>>, vector<1x8x16xf32>,
    %c0_151 = arith.constant 0 : index
    %181 = memref.load %arg6[%c0_151] : memref<1xf32, #tpu.memory_space<smem>>
    %182 = vector.broadcast %181 : f32 to vector<8x16xf32>
    %c0_i32_152 = arith.constant 0 : i32
    %c5_i32 = arith.constant 5 : i32
    %183 = arith.addi %c0_i32_152, %c5_i32 : i32
    %c1_i32_153 = arith.constant 1 : i32
    %184 = scf.for %arg9 = %c0_i32_152 to %183 step %c1_i32_153 iter_args(%arg10 = %182) -> (vector<8x16xf32>)  : i32 {
      %c5_i32_159 = arith.constant 5 : i32
      %190 = arith.muli %arg9, %c5_i32_159 : i32
      %c0_i32_160 = arith.constant 0 : i32
      %191 = arith.addi %190, %c0_i32_160 : i32
      %192 = arith.index_cast %191 : i32 to index
      %c0_161 = arith.constant 0 : index
      %193 = memref.load %arg3[%192, %c0_161] : memref<25x25xf32, #tpu.memory_space<smem>>
      %c0_162 = arith.constant 0 : index
      %c0_163 = arith.constant 0 : index
      %c0_164 = arith.constant 0 : index
      %194 = vector.load %arg8[%c0_162, %c0_163, %c0_164] : memref<25x8x16xf32, #tpu.memory_space<vmem>>, vector<1x8x16xf32>
      %195 = vector.shape_cast %194 : vector<1x8x16xf32> to vector<8x16xf32>
      %196 = vector.broadcast %193 : f32 to vector<8x16xf32>
      %197 = arith.mulf %196, %195 : vector<8x16xf32>
      %198 = arith.index_cast %191 : i32 to index
      %c1_165 = arith.constant 1 : index
      %199 = memref.load %arg3[%198, %c1_165] : memref<25x25xf32, #tpu.memory_space<smem>>
      %c1_166 = arith.constant 1 : index
      %c0_167 = arith.constant 0 : index
      %c0_168 = arith.constant 0 : index
      %200 = vector.load %arg8[%c1_166, %c0_167, %c0_168] : memref<25x8x16xf32, #tpu.memory_space<vmem>>, vector<1x8x16xf32>
      %201 = vector.shape_cast %200 : vector<1x8x16xf32> to vector<8x16xf32>
      %202 = vector.broadcast %199 : f32 to vector<8x16xf32>
      %203 = arith.mulf %202, %201 : vector<8x16xf32>
      %204 = arith.addf %197, %203 : vector<8x16xf32>
      %205 = arith.index_cast %191 : i32 to index
      %c2_169 = arith.constant 2 : index
      %206 = memref.load %arg3[%205, %c2_169] : memref<25x25xf32, #tpu.memory_space<smem>>
      %c2_170 = arith.constant 2 : index
      %c0_171 = arith.constant 0 : index
      %c0_172 = arith.constant 0 : index
      %207 = vector.load %arg8[%c2_170, %c0_171, %c0_172] : memref<25x8x16xf32, #tpu.memory_space<vmem>>, vector<1x8x16xf32>
      %208 = vector.shape_cast %207 : vector<1x8x16xf32> to vector<8x16xf32>
      %209 = vector.broadcast %206 : f32 to vector<8x16xf32>
      %210 = arith.mulf %209, %208 : vector<8x16xf32>
      %211 = arith.addf %204, %210 : vector<8x16xf32>
      %212 = arith.index_cast %191 : i32 to index
      %c3_173 = arith.constant 3 : index
      %213 = memref.load %arg3[%212, %c3_173] : memref<25x25xf32, #tpu.memory_space<smem>>
      %c3_174 = arith.constant 3 : index
      %c0_175 = arith.constant 0 : index
      %c0_176 = arith.constant 0 : index
      %214 = vector.load %arg8[%c3_174, %c0_175, %c0_176] : memref<25x8x16xf32, #tpu.memory_space<vmem>>, vector<1x8x16xf32>
      %215 = vector.shape_cast %214 : vector<1x8x16xf32> to vector<8x16xf32>
      %216 = vector.broadcast %213 : f32 to vector<8x16xf32>
      %217 = arith.mulf %216, %215 : vector<8x16xf32>
      %218 = arith.addf %211, %217 : vector<8x16xf32>
      %219 = arith.index_cast %191 : i32 to index
      %c4_177 = arith.constant 4 : index
      %220 = memref.load %arg3[%219, %c4_177] : memref<25x25xf32, #tpu.memory_space<smem>>
      %c4_178 = arith.constant 4 : index
      %c0_179 = arith.constant 0 : index
      %c0_180 = arith.constant 0 : index
      %221 = vector.load %arg8[%c4_178, %c0_179, %c0_180] : memref<25x8x16xf32, #tpu.memory_space<vmem>>, vector<1x8x16xf32>
      %222 = vector.shape_cast %221 : vector<1x8x16xf32> to vector<8x16xf32>
      %223 = vector.broadcast %220 : f32 to vector<8x16xf32>
      %224 = arith.mulf %223, %222 : vector<8x16xf32>
      %225 = arith.addf %218, %224 : vector<8x16xf32>
      %226 = arith.index_cast %191 : i32 to index
      %c5_181 = arith.constant 5 : index
      %227 = memref.load %arg3[%226, %c5_181] : memref<25x25xf32, #tpu.memory_space<smem>>
      %c5_182 = arith.constant 5 : index
      %c0_183 = arith.constant 0 : index
      %c0_184 = arith.constant 0 : index
      %228 = vector.load %arg8[%c5_182, %c0_183, %c0_184] : memref<25x8x16xf32, #tpu.memory_space<vmem>>, vector<1x8x16xf32>
      %229 = vector.shape_cast %228 : vector<1x8x16xf32> to vector<8x16xf32>
      %230 = vector.broadcast %227 : f32 to vector<8x16xf32>
      %231 = arith.mulf %230, %229 : vector<8x16xf32>
      %232 = arith.addf %225, %231 : vector<8x16xf32>
      %233 = arith.index_cast %191 : i32 to index
      %c6_185 = arith.constant 6 : index
      %234 = memref.load %arg3[%233, %c6_185] : memref<25x25xf32, #tpu.memory_space<smem>>
      %c6_186 = arith.constant 6 : index
      %c0_187 = arith.constant 0 : index
      %c0_188 = arith.constant 0 : index
      %235 = vector.load %arg8[%c6_186, %c0_187, %c0_188] : memref<25x8x16xf32, #tpu.memory_space<vmem>>, vector<1x8x16xf32>
      %236 = vector.shape_cast %235 : vector<1x8x16xf32> to vector<8x16xf32>
      %237 = vector.broadcast %234 : f32 to vector<8x16xf32>
      %238 = arith.mulf %237, %236 : vector<8x16xf32>
      %239 = arith.addf %232, %238 : vector<8x16xf32>
      %240 = arith.index_cast %191 : i32 to index
      %c7_189 = arith.constant 7 : index
      %241 = memref.load %arg3[%240, %c7_189] : memref<25x25xf32, #tpu.memory_space<smem>>
      %c7_190 = arith.constant 7 : index
      %c0_191 = arith.constant 0 : index
      %c0_192 = arith.constant 0 : index
      %242 = vector.load %arg8[%c7_190, %c0_191, %c0_192] : memref<25x8x16xf32, #tpu.memory_space<vmem>>, vector<1x8x16xf32>
      %243 = vector.shape_cast %242 : vector<1x8x16xf32> to vector<8x16xf32>
      %244 = vector.broadcast %241 : f32 to vector<8x16xf32>
      %245 = arith.mulf %244, %243 : vector<8x16xf32>
      %246 = arith.addf %239, %245 : vector<8x16xf32>
      %247 = arith.index_cast %191 : i32 to index
      %c8_193 = arith.constant 8 : index
      %248 = memref.load %arg3[%247, %c8_193] : memref<25x25xf32, #tpu.memory_space<smem>>
      %c8_194 = arith.constant 8 : index
      %c0_195 = arith.constant 0 : index
      %c0_196 = arith.constant 0 : index
      %249 = vector.load %arg8[%c8_194, %c0_195, %c0_196] : memref<25x8x16xf32, #tpu.memory_space<vmem>>, vector<1x8x16xf32>
      %250 = vector.shape_cast %249 : vector<1x8x16xf32> to vector<8x16xf32>
      %251 = vector.broadcast %248 : f32 to vector<8x16xf32>
      %252 = arith.mulf %251, %250 : vector<8x16xf32>
      %253 = arith.addf %246, %252 : vector<8x16xf32>
      %254 = arith.index_cast %191 : i32 to index
      %c9_197 = arith.constant 9 : index
      %255 = memref.load %arg3[%254, %c9_197] : memref<25x25xf32, #tpu.memory_space<smem>>
      %c9_198 = arith.constant 9 : index
      %c0_199 = arith.constant 0 : index
      %c0_200 = arith.constant 0 : index
      %256 = vector.load %arg8[%c9_198, %c0_199, %c0_200] : memref<25x8x16xf32, #tpu.memory_space<vmem>>, vector<1x8x16xf32>
      %257 = vector.shape_cast %256 : vector<1x8x16xf32> to vector<8x16xf32>
      %258 = vector.broadcast %255 : f32 to vector<8x16xf32>
      %259 = arith.mulf %258, %257 : vector<8x16xf32>
      %260 = arith.addf %253, %259 : vector<8x16xf32>
      %261 = arith.index_cast %191 : i32 to index
      %c10_201 = arith.constant 10 : index
      %262 = memref.load %arg3[%261, %c10_201] : memref<25x25xf32, #tpu.memory_space<smem>>
      %c10_202 = arith.constant 10 : index
      %c0_203 = arith.constant 0 : index
      %c0_204 = arith.constant 0 : index
      %263 = vector.load %arg8[%c10_202, %c0_203, %c0_204] : memref<25x8x16xf32, #tpu.memory_space<vmem>>, vector<1x8x16xf32>
      %264 = vector.shape_cast %263 : vector<1x8x16xf32> to vector<8x16xf32>
      %265 = vector.broadcast %262 : f32 to vector<8x16xf32>
      %266 = arith.mulf %265, %264 : vector<8x16xf32>
      %267 = arith.addf %260, %266 : vector<8x16xf32>
      %268 = arith.index_cast %191 : i32 to index
      %c11_205 = arith.constant 11 : index
      %269 = memref.load %arg3[%268, %c11_205] : memref<25x25xf32, #tpu.memory_space<smem>>
      %c11_206 = arith.constant 11 : index
      %c0_207 = arith.constant 0 : index
      %c0_208 = arith.constant 0 : index
      %270 = vector.load %arg8[%c11_206, %c0_207, %c0_208] : memref<25x8x16xf32, #tpu.memory_space<vmem>>, vector<1x8x16xf32>
      %271 = vector.shape_cast %270 : vector<1x8x16xf32> to vector<8x16xf32>
      %272 = vector.broadcast %269 : f32 to vector<8x16xf32>
      %273 = arith.mulf %272, %271 : vector<8x16xf32>
      %274 = arith.addf %267, %273 : vector<8x16xf32>
      %275 = arith.index_cast %191 : i32 to index
      %c12_209 = arith.constant 12 : index
      %276 = memref.load %arg3[%275, %c12_209] : memref<25x25xf32, #tpu.memory_space<smem>>
      %c12_210 = arith.constant 12 : index
      %c0_211 = arith.constant 0 : index
      %c0_212 = arith.constant 0 : index
      %277 = vector.load %arg8[%c12_210, %c0_211, %c0_212] : memref<25x8x16xf32, #tpu.memory_space<vmem>>, vector<1x8x16xf32>
      %278 = vector.shape_cast %277 : vector<1x8x16xf32> to vector<8x16xf32>
      %279 = vector.broadcast %276 : f32 to vector<8x16xf32>
      %280 = arith.mulf %279, %278 : vector<8x16xf32>
      %281 = arith.addf %274, %280 : vector<8x16xf32>
      %282 = arith.index_cast %191 : i32 to index
      %c13_213 = arith.constant 13 : index
      %283 = memref.load %arg3[%282, %c13_213] : memref<25x25xf32, #tpu.memory_space<smem>>
      %c13_214 = arith.constant 13 : index
      %c0_215 = arith.constant 0 : index
      %c0_216 = arith.constant 0 : index
      %284 = vector.load %arg8[%c13_214, %c0_215, %c0_216] : memref<25x8x16xf32, #tpu.memory_space<vmem>>, vector<1x8x16xf32>
      %285 = vector.shape_cast %284 : vector<1x8x16xf32> to vector<8x16xf32>
      %286 = vector.broadcast %283 : f32 to vector<8x16xf32>
      %287 = arith.mulf %286, %285 : vector<8x16xf32>
      %288 = arith.addf %281, %287 : vector<8x16xf32>
      %289 = arith.index_cast %191 : i32 to index
      %c14_217 = arith.constant 14 : index
      %290 = memref.load %arg3[%289, %c14_217] : memref<25x25xf32, #tpu.memory_space<smem>>
      %c14_218 = arith.constant 14 : index
      %c0_219 = arith.constant 0 : index
      %c0_220 = arith.constant 0 : index
      %291 = vector.load %arg8[%c14_218, %c0_219, %c0_220] : memref<25x8x16xf32, #tpu.memory_space<vmem>>, vector<1x8x16xf32>
      %292 = vector.shape_cast %291 : vector<1x8x16xf32> to vector<8x16xf32>
      %293 = vector.broadcast %290 : f32 to vector<8x16xf32>
      %294 = arith.mulf %293, %292 : vector<8x16xf32>
      %295 = arith.addf %288, %294 : vector<8x16xf32>
      %296 = arith.index_cast %191 : i32 to index
      %c15_221 = arith.constant 15 : index
      %297 = memref.load %arg3[%296, %c15_221] : memref<25x25xf32, #tpu.memory_space<smem>>
      %c15_222 = arith.constant 15 : index
      %c0_223 = arith.constant 0 : index
      %c0_224 = arith.constant 0 : index
      %298 = vector.load %arg8[%c15_222, %c0_223, %c0_224] : memref<25x8x16xf32, #tpu.memory_space<vmem>>, vector<1x8x16xf32>
      %299 = vector.shape_cast %298 : vector<1x8x16xf32> to vector<8x16xf32>
      %300 = vector.broadcast %297 : f32 to vector<8x16xf32>
      %301 = arith.mulf %300, %299 : vector<8x16xf32>
      %302 = arith.addf %295, %301 : vector<8x16xf32>
      %303 = arith.index_cast %191 : i32 to index
      %c16_225 = arith.constant 16 : index
      %304 = memref.load %arg3[%303, %c16_225] : memref<25x25xf32, #tpu.memory_space<smem>>
      %c16_226 = arith.constant 16 : index
      %c0_227 = arith.constant 0 : index
      %c0_228 = arith.constant 0 : index
      %305 = vector.load %arg8[%c16_226, %c0_227, %c0_228] : memref<25x8x16xf32, #tpu.memory_space<vmem>>, vector<1x8x16xf32>
      %306 = vector.shape_cast %305 : vector<1x8x16xf32> to vector<8x16xf32>
      %307 = vector.broadcast %304 : f32 to vector<8x16xf32>
      %308 = arith.mulf %307, %306 : vector<8x16xf32>
      %309 = arith.addf %302, %308 : vector<8x16xf32>
      %310 = arith.index_cast %191 : i32 to index
      %c17_229 = arith.constant 17 : index
      %311 = memref.load %arg3[%310, %c17_229] : memref<25x25xf32, #tpu.memory_space<smem>>
      %c17_230 = arith.constant 17 : index
      %c0_231 = arith.constant 0 : index
      %c0_232 = arith.constant 0 : index
      %312 = vector.load %arg8[%c17_230, %c0_231, %c0_232] : memref<25x8x16xf32, #tpu.memory_space<vmem>>, vector<1x8x16xf32>
      %313 = vector.shape_cast %312 : vector<1x8x16xf32> to vector<8x16xf32>
      %314 = vector.broadcast %311 : f32 to vector<8x16xf32>
      %315 = arith.mulf %314, %313 : vector<8x16xf32>
      %316 = arith.addf %309, %315 : vector<8x16xf32>
      %317 = arith.index_cast %191 : i32 to index
      %c18_233 = arith.constant 18 : index
      %318 = memref.load %arg3[%317, %c18_233] : memref<25x25xf32, #tpu.memory_space<smem>>
      %c18_234 = arith.constant 18 : index
      %c0_235 = arith.constant 0 : index
      %c0_236 = arith.constant 0 : index
      %319 = vector.load %arg8[%c18_234, %c0_235, %c0_236] : memref<25x8x16xf32, #tpu.memory_space<vmem>>, vector<1x8x16xf32>
      %320 = vector.shape_cast %319 : vector<1x8x16xf32> to vector<8x16xf32>
      %321 = vector.broadcast %318 : f32 to vector<8x16xf32>
      %322 = arith.mulf %321, %320 : vector<8x16xf32>
      %323 = arith.addf %316, %322 : vector<8x16xf32>
      %324 = arith.index_cast %191 : i32 to index
      %c19_237 = arith.constant 19 : index
      %325 = memref.load %arg3[%324, %c19_237] : memref<25x25xf32, #tpu.memory_space<smem>>
      %c19_238 = arith.constant 19 : index
      %c0_239 = arith.constant 0 : index
      %c0_240 = arith.constant 0 : index
      %326 = vector.load %arg8[%c19_238, %c0_239, %c0_240] : memref<25x8x16xf32, #tpu.memory_space<vmem>>, vector<1x8x16xf32>
      %327 = vector.shape_cast %326 : vector<1x8x16xf32> to vector<8x16xf32>
      %328 = vector.broadcast %325 : f32 to vector<8x16xf32>
      %329 = arith.mulf %328, %327 : vector<8x16xf32>
      %330 = arith.addf %323, %329 : vector<8x16xf32>
      %331 = arith.index_cast %191 : i32 to index
      %c20_241 = arith.constant 20 : index
      %332 = memref.load %arg3[%331, %c20_241] : memref<25x25xf32, #tpu.memory_space<smem>>
      %c20_242 = arith.constant 20 : index
      %c0_243 = arith.constant 0 : index
      %c0_244 = arith.constant 0 : index
      %333 = vector.load %arg8[%c20_242, %c0_243, %c0_244] : memref<25x8x16xf32, #tpu.memory_space<vmem>>, vector<1x8x16xf32>
      %334 = vector.shape_cast %333 : vector<1x8x16xf32> to vector<8x16xf32>
      %335 = vector.broadcast %332 : f32 to vector<8x16xf32>
      %336 = arith.mulf %335, %334 : vector<8x16xf32>
      %337 = arith.addf %330, %336 : vector<8x16xf32>
      %338 = arith.index_cast %191 : i32 to index
      %c21_245 = arith.constant 21 : index
      %339 = memref.load %arg3[%338, %c21_245] : memref<25x25xf32, #tpu.memory_space<smem>>
      %c21_246 = arith.constant 21 : index
      %c0_247 = arith.constant 0 : index
      %c0_248 = arith.constant 0 : index
      %340 = vector.load %arg8[%c21_246, %c0_247, %c0_248] : memref<25x8x16xf32, #tpu.memory_space<vmem>>, vector<1x8x16xf32>
      %341 = vector.shape_cast %340 : vector<1x8x16xf32> to vector<8x16xf32>
      %342 = vector.broadcast %339 : f32 to vector<8x16xf32>
      %343 = arith.mulf %342, %341 : vector<8x16xf32>
      %344 = arith.addf %337, %343 : vector<8x16xf32>
      %345 = arith.index_cast %191 : i32 to index
      %c22_249 = arith.constant 22 : index
      %346 = memref.load %arg3[%345, %c22_249] : memref<25x25xf32, #tpu.memory_space<smem>>
      %c22_250 = arith.constant 22 : index
      %c0_251 = arith.constant 0 : index
      %c0_252 = arith.constant 0 : index
      %347 = vector.load %arg8[%c22_250, %c0_251, %c0_252] : memref<25x8x16xf32, #tpu.memory_space<vmem>>, vector<1x8x16xf32>
      %348 = vector.shape_cast %347 : vector<1x8x16xf32> to vector<8x16xf32>
      %349 = vector.broadcast %346 : f32 to vector<8x16xf32>
      %350 = arith.mulf %349, %348 : vector<8x16xf32>
      %351 = arith.addf %344, %350 : vector<8x16xf32>
      %352 = arith.index_cast %191 : i32 to index
      %c23_253 = arith.constant 23 : index
      %353 = memref.load %arg3[%352, %c23_253] : memref<25x25xf32, #tpu.memory_space<smem>>
      %c23_254 = arith.constant 23 : index
      %c0_255 = arith.constant 0 : index
      %c0_256 = arith.constant 0 : index
      %354 = vector.load %arg8[%c23_254, %c0_255, %c0_256] : memref<25x8x16xf32, #tpu.memory_space<vmem>>, vector<1x8x16xf32>
      %355 = vector.shape_cast %354 : vector<1x8x16xf32> to vector<8x16xf32>
      %356 = vector.broadcast %353 : f32 to vector<8x16xf32>
      %357 = arith.mulf %356, %355 : vector<8x16xf32>
      %358 = arith.addf %351, %357 : vector<8x16xf32>
      %359 = arith.index_cast %191 : i32 to index
      %c24_257 = arith.constant 24 : index
      %360 = memref.load %arg3[%359, %c24_257] : memref<25x25xf32, #tpu.memory_space<smem>>
      %c24_258 = arith.constant 24 : index
      %c0_259 = arith.constant 0 : index
      %c0_260 = arith.constant 0 : index
      %361 = vector.load %arg8[%c24_258, %c0_259, %c0_260] : memref<25x8x16xf32, #tpu.memory_space<vmem>>, vector<1x8x16xf32>
      %362 = vector.shape_cast %361 : vector<1x8x16xf32> to vector<8x16xf32>
      %363 = vector.broadcast %360 : f32 to vector<8x16xf32>
      %364 = arith.mulf %363, %362 : vector<8x16xf32>
      %365 = arith.addf %358, %364 : vector<8x16xf32>
      %366 = arith.index_cast %191 : i32 to index
      %367 = memref.load %arg4[%366] : memref<25xf32, #tpu.memory_space<smem>>
      %368 = vector.broadcast %367 : f32 to vector<8x16xf32>
      %369 = arith.addf %365, %368 : vector<8x16xf32>
      %cst = arith.constant 0.000000e+00 : f32
      %370 = vector.broadcast %cst : f32 to vector<8x16xf32>
      %371 = arith.maximumf %369, %370 : vector<8x16xf32>
      %372 = arith.index_cast %191 : i32 to index
      %373 = memref.load %arg5[%372] : memref<25xf32, #tpu.memory_space<smem>>
      %374 = vector.broadcast %373 : f32 to vector<8x16xf32>
      %375 = arith.mulf %374, %371 : vector<8x16xf32>
      %376 = arith.addf %arg10, %375 : vector<8x16xf32>
      %c5_i32_261 = arith.constant 5 : i32
      %377 = arith.muli %arg9, %c5_i32_261 : i32
      %c1_i32_262 = arith.constant 1 : i32
      %378 = arith.addi %377, %c1_i32_262 : i32
      %379 = arith.index_cast %378 : i32 to index
      %c0_263 = arith.constant 0 : index
      %380 = memref.load %arg3[%379, %c0_263] : memref<25x25xf32, #tpu.memory_space<smem>>
      %c0_264 = arith.constant 0 : index
      %c0_265 = arith.constant 0 : index
      %c0_266 = arith.constant 0 : index
      %381 = vector.load %arg8[%c0_264, %c0_265, %c0_266] : memref<25x8x16xf32, #tpu.memory_space<vmem>>, vector<1x8x16xf32>
      %382 = vector.shape_cast %381 : vector<1x8x16xf32> to vector<8x16xf32>
      %383 = vector.broadcast %380 : f32 to vector<8x16xf32>
      %384 = arith.mulf %383, %382 : vector<8x16xf32>
      %385 = arith.index_cast %378 : i32 to index
      %c1_267 = arith.constant 1 : index
      %386 = memref.load %arg3[%385, %c1_267] : memref<25x25xf32, #tpu.memory_space<smem>>
      %c1_268 = arith.constant 1 : index
      %c0_269 = arith.constant 0 : index
      %c0_270 = arith.constant 0 : index
      %387 = vector.load %arg8[%c1_268, %c0_269, %c0_270] : memref<25x8x16xf32, #tpu.memory_space<vmem>>, vector<1x8x16xf32>
      %388 = vector.shape_cast %387 : vector<1x8x16xf32> to vector<8x16xf32>
      %389 = vector.broadcast %386 : f32 to vector<8x16xf32>
      %390 = arith.mulf %389, %388 : vector<8x16xf32>
      %391 = arith.addf %384, %390 : vector<8x16xf32>
      %392 = arith.index_cast %378 : i32 to index
      %c2_271 = arith.constant 2 : index
      %393 = memref.load %arg3[%392, %c2_271] : memref<25x25xf32, #tpu.memory_space<smem>>
      %c2_272 = arith.constant 2 : index
      %c0_273 = arith.constant 0 : index
      %c0_274 = arith.constant 0 : index
      %394 = vector.load %arg8[%c2_272, %c0_273, %c0_274] : memref<25x8x16xf32, #tpu.memory_space<vmem>>, vector<1x8x16xf32>
      %395 = vector.shape_cast %394 : vector<1x8x16xf32> to vector<8x16xf32>
      %396 = vector.broadcast %393 : f32 to vector<8x16xf32>
      %397 = arith.mulf %396, %395 : vector<8x16xf32>
      %398 = arith.addf %391, %397 : vector<8x16xf32>
      %399 = arith.index_cast %378 : i32 to index
      %c3_275 = arith.constant 3 : index
      %400 = memref.load %arg3[%399, %c3_275] : memref<25x25xf32, #tpu.memory_space<smem>>
      %c3_276 = arith.constant 3 : index
      %c0_277 = arith.constant 0 : index
      %c0_278 = arith.constant 0 : index
      %401 = vector.load %arg8[%c3_276, %c0_277, %c0_278] : memref<25x8x16xf32, #tpu.memory_space<vmem>>, vector<1x8x16xf32>
      %402 = vector.shape_cast %401 : vector<1x8x16xf32> to vector<8x16xf32>
      %403 = vector.broadcast %400 : f32 to vector<8x16xf32>
      %404 = arith.mulf %403, %402 : vector<8x16xf32>
      %405 = arith.addf %398, %404 : vector<8x16xf32>
      %406 = arith.index_cast %378 : i32 to index
      %c4_279 = arith.constant 4 : index
      %407 = memref.load %arg3[%406, %c4_279] : memref<25x25xf32, #tpu.memory_space<smem>>
      %c4_280 = arith.constant 4 : index
      %c0_281 = arith.constant 0 : index
      %c0_282 = arith.constant 0 : index
      %408 = vector.load %arg8[%c4_280, %c0_281, %c0_282] : memref<25x8x16xf32, #tpu.memory_space<vmem>>, vector<1x8x16xf32>
      %409 = vector.shape_cast %408 : vector<1x8x16xf32> to vector<8x16xf32>
      %410 = vector.broadcast %407 : f32 to vector<8x16xf32>
      %411 = arith.mulf %410, %409 : vector<8x16xf32>
      %412 = arith.addf %405, %411 : vector<8x16xf32>
      %413 = arith.index_cast %378 : i32 to index
      %c5_283 = arith.constant 5 : index
      %414 = memref.load %arg3[%413, %c5_283] : memref<25x25xf32, #tpu.memory_space<smem>>
      %c5_284 = arith.constant 5 : index
      %c0_285 = arith.constant 0 : index
      %c0_286 = arith.constant 0 : index
      %415 = vector.load %arg8[%c5_284, %c0_285, %c0_286] : memref<25x8x16xf32, #tpu.memory_space<vmem>>, vector<1x8x16xf32>
      %416 = vector.shape_cast %415 : vector<1x8x16xf32> to vector<8x16xf32>
      %417 = vector.broadcast %414 : f32 to vector<8x16xf32>
      %418 = arith.mulf %417, %416 : vector<8x16xf32>
      %419 = arith.addf %412, %418 : vector<8x16xf32>
      %420 = arith.index_cast %378 : i32 to index
      %c6_287 = arith.constant 6 : index
      %421 = memref.load %arg3[%420, %c6_287] : memref<25x25xf32, #tpu.memory_space<smem>>
      %c6_288 = arith.constant 6 : index
      %c0_289 = arith.constant 0 : index
      %c0_290 = arith.constant 0 : index
      %422 = vector.load %arg8[%c6_288, %c0_289, %c0_290] : memref<25x8x16xf32, #tpu.memory_space<vmem>>, vector<1x8x16xf32>
      %423 = vector.shape_cast %422 : vector<1x8x16xf32> to vector<8x16xf32>
      %424 = vector.broadcast %421 : f32 to vector<8x16xf32>
      %425 = arith.mulf %424, %423 : vector<8x16xf32>
      %426 = arith.addf %419, %425 : vector<8x16xf32>
      %427 = arith.index_cast %378 : i32 to index
      %c7_291 = arith.constant 7 : index
      %428 = memref.load %arg3[%427, %c7_291] : memref<25x25xf32, #tpu.memory_space<smem>>
      %c7_292 = arith.constant 7 : index
      %c0_293 = arith.constant 0 : index
      %c0_294 = arith.constant 0 : index
      %429 = vector.load %arg8[%c7_292, %c0_293, %c0_294] : memref<25x8x16xf32, #tpu.memory_space<vmem>>, vector<1x8x16xf32>
      %430 = vector.shape_cast %429 : vector<1x8x16xf32> to vector<8x16xf32>
      %431 = vector.broadcast %428 : f32 to vector<8x16xf32>
      %432 = arith.mulf %431, %430 : vector<8x16xf32>
      %433 = arith.addf %426, %432 : vector<8x16xf32>
      %434 = arith.index_cast %378 : i32 to index
      %c8_295 = arith.constant 8 : index
      %435 = memref.load %arg3[%434, %c8_295] : memref<25x25xf32, #tpu.memory_space<smem>>
      %c8_296 = arith.constant 8 : index
      %c0_297 = arith.constant 0 : index
      %c0_298 = arith.constant 0 : index
      %436 = vector.load %arg8[%c8_296, %c0_297, %c0_298] : memref<25x8x16xf32, #tpu.memory_space<vmem>>, vector<1x8x16xf32>
      %437 = vector.shape_cast %436 : vector<1x8x16xf32> to vector<8x16xf32>
      %438 = vector.broadcast %435 : f32 to vector<8x16xf32>
      %439 = arith.mulf %438, %437 : vector<8x16xf32>
      %440 = arith.addf %433, %439 : vector<8x16xf32>
      %441 = arith.index_cast %378 : i32 to index
      %c9_299 = arith.constant 9 : index
      %442 = memref.load %arg3[%441, %c9_299] : memref<25x25xf32, #tpu.memory_space<smem>>
      %c9_300 = arith.constant 9 : index
      %c0_301 = arith.constant 0 : index
      %c0_302 = arith.constant 0 : index
      %443 = vector.load %arg8[%c9_300, %c0_301, %c0_302] : memref<25x8x16xf32, #tpu.memory_space<vmem>>, vector<1x8x16xf32>
      %444 = vector.shape_cast %443 : vector<1x8x16xf32> to vector<8x16xf32>
      %445 = vector.broadcast %442 : f32 to vector<8x16xf32>
      %446 = arith.mulf %445, %444 : vector<8x16xf32>
      %447 = arith.addf %440, %446 : vector<8x16xf32>
      %448 = arith.index_cast %378 : i32 to index
      %c10_303 = arith.constant 10 : index
      %449 = memref.load %arg3[%448, %c10_303] : memref<25x25xf32, #tpu.memory_space<smem>>
      %c10_304 = arith.constant 10 : index
      %c0_305 = arith.constant 0 : index
      %c0_306 = arith.constant 0 : index
      %450 = vector.load %arg8[%c10_304, %c0_305, %c0_306] : memref<25x8x16xf32, #tpu.memory_space<vmem>>, vector<1x8x16xf32>
      %451 = vector.shape_cast %450 : vector<1x8x16xf32> to vector<8x16xf32>
      %452 = vector.broadcast %449 : f32 to vector<8x16xf32>
      %453 = arith.mulf %452, %451 : vector<8x16xf32>
      %454 = arith.addf %447, %453 : vector<8x16xf32>
      %455 = arith.index_cast %378 : i32 to index
      %c11_307 = arith.constant 11 : index
      %456 = memref.load %arg3[%455, %c11_307] : memref<25x25xf32, #tpu.memory_space<smem>>
      %c11_308 = arith.constant 11 : index
      %c0_309 = arith.constant 0 : index
      %c0_310 = arith.constant 0 : index
      %457 = vector.load %arg8[%c11_308, %c0_309, %c0_310] : memref<25x8x16xf32, #tpu.memory_space<vmem>>, vector<1x8x16xf32>
      %458 = vector.shape_cast %457 : vector<1x8x16xf32> to vector<8x16xf32>
      %459 = vector.broadcast %456 : f32 to vector<8x16xf32>
      %460 = arith.mulf %459, %458 : vector<8x16xf32>
      %461 = arith.addf %454, %460 : vector<8x16xf32>
      %462 = arith.index_cast %378 : i32 to index
      %c12_311 = arith.constant 12 : index
      %463 = memref.load %arg3[%462, %c12_311] : memref<25x25xf32, #tpu.memory_space<smem>>
      %c12_312 = arith.constant 12 : index
      %c0_313 = arith.constant 0 : index
      %c0_314 = arith.constant 0 : index
      %464 = vector.load %arg8[%c12_312, %c0_313, %c0_314] : memref<25x8x16xf32, #tpu.memory_space<vmem>>, vector<1x8x16xf32>
      %465 = vector.shape_cast %464 : vector<1x8x16xf32> to vector<8x16xf32>
      %466 = vector.broadcast %463 : f32 to vector<8x16xf32>
      %467 = arith.mulf %466, %465 : vector<8x16xf32>
      %468 = arith.addf %461, %467 : vector<8x16xf32>
      %469 = arith.index_cast %378 : i32 to index
      %c13_315 = arith.constant 13 : index
      %470 = memref.load %arg3[%469, %c13_315] : memref<25x25xf32, #tpu.memory_space<smem>>
      %c13_316 = arith.constant 13 : index
      %c0_317 = arith.constant 0 : index
      %c0_318 = arith.constant 0 : index
      %471 = vector.load %arg8[%c13_316, %c0_317, %c0_318] : memref<25x8x16xf32, #tpu.memory_space<vmem>>, vector<1x8x16xf32>
      %472 = vector.shape_cast %471 : vector<1x8x16xf32> to vector<8x16xf32>
      %473 = vector.broadcast %470 : f32 to vector<8x16xf32>
      %474 = arith.mulf %473, %472 : vector<8x16xf32>
      %475 = arith.addf %468, %474 : vector<8x16xf32>
      %476 = arith.index_cast %378 : i32 to index
      %c14_319 = arith.constant 14 : index
      %477 = memref.load %arg3[%476, %c14_319] : memref<25x25xf32, #tpu.memory_space<smem>>
      %c14_320 = arith.constant 14 : index
      %c0_321 = arith.constant 0 : index
      %c0_322 = arith.constant 0 : index
      %478 = vector.load %arg8[%c14_320, %c0_321, %c0_322] : memref<25x8x16xf32, #tpu.memory_space<vmem>>, vector<1x8x16xf32>
      %479 = vector.shape_cast %478 : vector<1x8x16xf32> to vector<8x16xf32>
      %480 = vector.broadcast %477 : f32 to vector<8x16xf32>
      %481 = arith.mulf %480, %479 : vector<8x16xf32>
      %482 = arith.addf %475, %481 : vector<8x16xf32>
      %483 = arith.index_cast %378 : i32 to index
      %c15_323 = arith.constant 15 : index
      %484 = memref.load %arg3[%483, %c15_323] : memref<25x25xf32, #tpu.memory_space<smem>>
      %c15_324 = arith.constant 15 : index
      %c0_325 = arith.constant 0 : index
      %c0_326 = arith.constant 0 : index
      %485 = vector.load %arg8[%c15_324, %c0_325, %c0_326] : memref<25x8x16xf32, #tpu.memory_space<vmem>>, vector<1x8x16xf32>
      %486 = vector.shape_cast %485 : vector<1x8x16xf32> to vector<8x16xf32>
      %487 = vector.broadcast %484 : f32 to vector<8x16xf32>
      %488 = arith.mulf %487, %486 : vector<8x16xf32>
      %489 = arith.addf %482, %488 : vector<8x16xf32>
      %490 = arith.index_cast %378 : i32 to index
      %c16_327 = arith.constant 16 : index
      %491 = memref.load %arg3[%490, %c16_327] : memref<25x25xf32, #tpu.memory_space<smem>>
      %c16_328 = arith.constant 16 : index
      %c0_329 = arith.constant 0 : index
      %c0_330 = arith.constant 0 : index
      %492 = vector.load %arg8[%c16_328, %c0_329, %c0_330] : memref<25x8x16xf32, #tpu.memory_space<vmem>>, vector<1x8x16xf32>
      %493 = vector.shape_cast %492 : vector<1x8x16xf32> to vector<8x16xf32>
      %494 = vector.broadcast %491 : f32 to vector<8x16xf32>
      %495 = arith.mulf %494, %493 : vector<8x16xf32>
      %496 = arith.addf %489, %495 : vector<8x16xf32>
      %497 = arith.index_cast %378 : i32 to index
      %c17_331 = arith.constant 17 : index
      %498 = memref.load %arg3[%497, %c17_331] : memref<25x25xf32, #tpu.memory_space<smem>>
      %c17_332 = arith.constant 17 : index
      %c0_333 = arith.constant 0 : index
      %c0_334 = arith.constant 0 : index
      %499 = vector.load %arg8[%c17_332, %c0_333, %c0_334] : memref<25x8x16xf32, #tpu.memory_space<vmem>>, vector<1x8x16xf32>
      %500 = vector.shape_cast %499 : vector<1x8x16xf32> to vector<8x16xf32>
      %501 = vector.broadcast %498 : f32 to vector<8x16xf32>
      %502 = arith.mulf %501, %500 : vector<8x16xf32>
      %503 = arith.addf %496, %502 : vector<8x16xf32>
      %504 = arith.index_cast %378 : i32 to index
      %c18_335 = arith.constant 18 : index
      %505 = memref.load %arg3[%504, %c18_335] : memref<25x25xf32, #tpu.memory_space<smem>>
      %c18_336 = arith.constant 18 : index
      %c0_337 = arith.constant 0 : index
      %c0_338 = arith.constant 0 : index
      %506 = vector.load %arg8[%c18_336, %c0_337, %c0_338] : memref<25x8x16xf32, #tpu.memory_space<vmem>>, vector<1x8x16xf32>
      %507 = vector.shape_cast %506 : vector<1x8x16xf32> to vector<8x16xf32>
      %508 = vector.broadcast %505 : f32 to vector<8x16xf32>
      %509 = arith.mulf %508, %507 : vector<8x16xf32>
      %510 = arith.addf %503, %509 : vector<8x16xf32>
      %511 = arith.index_cast %378 : i32 to index
      %c19_339 = arith.constant 19 : index
      %512 = memref.load %arg3[%511, %c19_339] : memref<25x25xf32, #tpu.memory_space<smem>>
      %c19_340 = arith.constant 19 : index
      %c0_341 = arith.constant 0 : index
      %c0_342 = arith.constant 0 : index
      %513 = vector.load %arg8[%c19_340, %c0_341, %c0_342] : memref<25x8x16xf32, #tpu.memory_space<vmem>>, vector<1x8x16xf32>
      %514 = vector.shape_cast %513 : vector<1x8x16xf32> to vector<8x16xf32>
      %515 = vector.broadcast %512 : f32 to vector<8x16xf32>
      %516 = arith.mulf %515, %514 : vector<8x16xf32>
      %517 = arith.addf %510, %516 : vector<8x16xf32>
      %518 = arith.index_cast %378 : i32 to index
      %c20_343 = arith.constant 20 : index
      %519 = memref.load %arg3[%518, %c20_343] : memref<25x25xf32, #tpu.memory_space<smem>>
      %c20_344 = arith.constant 20 : index
      %c0_345 = arith.constant 0 : index
      %c0_346 = arith.constant 0 : index
      %520 = vector.load %arg8[%c20_344, %c0_345, %c0_346] : memref<25x8x16xf32, #tpu.memory_space<vmem>>, vector<1x8x16xf32>
      %521 = vector.shape_cast %520 : vector<1x8x16xf32> to vector<8x16xf32>
      %522 = vector.broadcast %519 : f32 to vector<8x16xf32>
      %523 = arith.mulf %522, %521 : vector<8x16xf32>
      %524 = arith.addf %517, %523 : vector<8x16xf32>
      %525 = arith.index_cast %378 : i32 to index
      %c21_347 = arith.constant 21 : index
      %526 = memref.load %arg3[%525, %c21_347] : memref<25x25xf32, #tpu.memory_space<smem>>
      %c21_348 = arith.constant 21 : index
      %c0_349 = arith.constant 0 : index
      %c0_350 = arith.constant 0 : index
      %527 = vector.load %arg8[%c21_348, %c0_349, %c0_350] : memref<25x8x16xf32, #tpu.memory_space<vmem>>, vector<1x8x16xf32>
      %528 = vector.shape_cast %527 : vector<1x8x16xf32> to vector<8x16xf32>
      %529 = vector.broadcast %526 : f32 to vector<8x16xf32>
      %530 = arith.mulf %529, %528 : vector<8x16xf32>
      %531 = arith.addf %524, %530 : vector<8x16xf32>
      %532 = arith.index_cast %378 : i32 to index
      %c22_351 = arith.constant 22 : index
      %533 = memref.load %arg3[%532, %c22_351] : memref<25x25xf32, #tpu.memory_space<smem>>
      %c22_352 = arith.constant 22 : index
      %c0_353 = arith.constant 0 : index
      %c0_354 = arith.constant 0 : index
      %534 = vector.load %arg8[%c22_352, %c0_353, %c0_354] : memref<25x8x16xf32, #tpu.memory_space<vmem>>, vector<1x8x16xf32>
      %535 = vector.shape_cast %534 : vector<1x8x16xf32> to vector<8x16xf32>
      %536 = vector.broadcast %533 : f32 to vector<8x16xf32>
      %537 = arith.mulf %536, %535 : vector<8x16xf32>
      %538 = arith.addf %531, %537 : vector<8x16xf32>
      %539 = arith.index_cast %378 : i32 to index
      %c23_355 = arith.constant 23 : index
      %540 = memref.load %arg3[%539, %c23_355] : memref<25x25xf32, #tpu.memory_space<smem>>
      %c23_356 = arith.constant 23 : index
      %c0_357 = arith.constant 0 : index
      %c0_358 = arith.constant 0 : index
      %541 = vector.load %arg8[%c23_356, %c0_357, %c0_358] : memref<25x8x16xf32, #tpu.memory_space<vmem>>, vector<1x8x16xf32>
      %542 = vector.shape_cast %541 : vector<1x8x16xf32> to vector<8x16xf32>
      %543 = vector.broadcast %540 : f32 to vector<8x16xf32>
      %544 = arith.mulf %543, %542 : vector<8x16xf32>
      %545 = arith.addf %538, %544 : vector<8x16xf32>
      %546 = arith.index_cast %378 : i32 to index
      %c24_359 = arith.constant 24 : index
      %547 = memref.load %arg3[%546, %c24_359] : memref<25x25xf32, #tpu.memory_space<smem>>
      %c24_360 = arith.constant 24 : index
      %c0_361 = arith.constant 0 : index
      %c0_362 = arith.constant 0 : index
      %548 = vector.load %arg8[%c24_360, %c0_361, %c0_362] : memref<25x8x16xf32, #tpu.memory_space<vmem>>, vector<1x8x16xf32>
      %549 = vector.shape_cast %548 : vector<1x8x16xf32> to vector<8x16xf32>
      %550 = vector.broadcast %547 : f32 to vector<8x16xf32>
      %551 = arith.mulf %550, %549 : vector<8x16xf32>
      %552 = arith.addf %545, %551 : vector<8x16xf32>
      %553 = arith.index_cast %378 : i32 to index
      %554 = memref.load %arg4[%553] : memref<25xf32, #tpu.memory_space<smem>>
      %555 = vector.broadcast %554 : f32 to vector<8x16xf32>
      %556 = arith.addf %552, %555 : vector<8x16xf32>
      %cst_363 = arith.constant 0.000000e+00 : f32
      %557 = vector.broadcast %cst_363 : f32 to vector<8x16xf32>
      %558 = arith.maximumf %556, %557 : vector<8x16xf32>
      %559 = arith.index_cast %378 : i32 to index
      %560 = memref.load %arg5[%559] : memref<25xf32, #tpu.memory_space<smem>>
      %561 = vector.broadcast %560 : f32 to vector<8x16xf32>
      %562 = arith.mulf %561, %558 : vector<8x16xf32>
      %563 = arith.addf %376, %562 : vector<8x16xf32>
      %c5_i32_364 = arith.constant 5 : i32
      %564 = arith.muli %arg9, %c5_i32_364 : i32
      %c2_i32_365 = arith.constant 2 : i32
      %565 = arith.addi %564, %c2_i32_365 : i32
      %566 = arith.index_cast %565 : i32 to index
      %c0_366 = arith.constant 0 : index
      %567 = memref.load %arg3[%566, %c0_366] : memref<25x25xf32, #tpu.memory_space<smem>>
      %c0_367 = arith.constant 0 : index
      %c0_368 = arith.constant 0 : index
      %c0_369 = arith.constant 0 : index
      %568 = vector.load %arg8[%c0_367, %c0_368, %c0_369] : memref<25x8x16xf32, #tpu.memory_space<vmem>>, vector<1x8x16xf32>
      %569 = vector.shape_cast %568 : vector<1x8x16xf32> to vector<8x16xf32>
      %570 = vector.broadcast %567 : f32 to vector<8x16xf32>
      %571 = arith.mulf %570, %569 : vector<8x16xf32>
      %572 = arith.index_cast %565 : i32 to index
      %c1_370 = arith.constant 1 : index
      %573 = memref.load %arg3[%572, %c1_370] : memref<25x25xf32, #tpu.memory_space<smem>>
      %c1_371 = arith.constant 1 : index
      %c0_372 = arith.constant 0 : index
      %c0_373 = arith.constant 0 : index
      %574 = vector.load %arg8[%c1_371, %c0_372, %c0_373] : memref<25x8x16xf32, #tpu.memory_space<vmem>>, vector<1x8x16xf32>
      %575 = vector.shape_cast %574 : vector<1x8x16xf32> to vector<8x16xf32>
      %576 = vector.broadcast %573 : f32 to vector<8x16xf32>
      %577 = arith.mulf %576, %575 : vector<8x16xf32>
      %578 = arith.addf %571, %577 : vector<8x16xf32>
      %579 = arith.index_cast %565 : i32 to index
      %c2_374 = arith.constant 2 : index
      %580 = memref.load %arg3[%579, %c2_374] : memref<25x25xf32, #tpu.memory_space<smem>>
      %c2_375 = arith.constant 2 : index
      %c0_376 = arith.constant 0 : index
      %c0_377 = arith.constant 0 : index
      %581 = vector.load %arg8[%c2_375, %c0_376, %c0_377] : memref<25x8x16xf32, #tpu.memory_space<vmem>>, vector<1x8x16xf32>
      %582 = vector.shape_cast %581 : vector<1x8x16xf32> to vector<8x16xf32>
      %583 = vector.broadcast %580 : f32 to vector<8x16xf32>
      %584 = arith.mulf %583, %582 : vector<8x16xf32>
      %585 = arith.addf %578, %584 : vector<8x16xf32>
      %586 = arith.index_cast %565 : i32 to index
      %c3_378 = arith.constant 3 : index
      %587 = memref.load %arg3[%586, %c3_378] : memref<25x25xf32, #tpu.memory_space<smem>>
      %c3_379 = arith.constant 3 : index
      %c0_380 = arith.constant 0 : index
      %c0_381 = arith.constant 0 : index
      %588 = vector.load %arg8[%c3_379, %c0_380, %c0_381] : memref<25x8x16xf32, #tpu.memory_space<vmem>>, vector<1x8x16xf32>
      %589 = vector.shape_cast %588 : vector<1x8x16xf32> to vector<8x16xf32>
      %590 = vector.broadcast %587 : f32 to vector<8x16xf32>
      %591 = arith.mulf %590, %589 : vector<8x16xf32>
      %592 = arith.addf %585, %591 : vector<8x16xf32>
      %593 = arith.index_cast %565 : i32 to index
      %c4_382 = arith.constant 4 : index
      %594 = memref.load %arg3[%593, %c4_382] : memref<25x25xf32, #tpu.memory_space<smem>>
      %c4_383 = arith.constant 4 : index
      %c0_384 = arith.constant 0 : index
      %c0_385 = arith.constant 0 : index
      %595 = vector.load %arg8[%c4_383, %c0_384, %c0_385] : memref<25x8x16xf32, #tpu.memory_space<vmem>>, vector<1x8x16xf32>
      %596 = vector.shape_cast %595 : vector<1x8x16xf32> to vector<8x16xf32>
      %597 = vector.broadcast %594 : f32 to vector<8x16xf32>
      %598 = arith.mulf %597, %596 : vector<8x16xf32>
      %599 = arith.addf %592, %598 : vector<8x16xf32>
      %600 = arith.index_cast %565 : i32 to index
      %c5_386 = arith.constant 5 : index
      %601 = memref.load %arg3[%600, %c5_386] : memref<25x25xf32, #tpu.memory_space<smem>>
      %c5_387 = arith.constant 5 : index
      %c0_388 = arith.constant 0 : index
      %c0_389 = arith.constant 0 : index
      %602 = vector.load %arg8[%c5_387, %c0_388, %c0_389] : memref<25x8x16xf32, #tpu.memory_space<vmem>>, vector<1x8x16xf32>
      %603 = vector.shape_cast %602 : vector<1x8x16xf32> to vector<8x16xf32>
      %604 = vector.broadcast %601 : f32 to vector<8x16xf32>
      %605 = arith.mulf %604, %603 : vector<8x16xf32>
      %606 = arith.addf %599, %605 : vector<8x16xf32>
      %607 = arith.index_cast %565 : i32 to index
      %c6_390 = arith.constant 6 : index
      %608 = memref.load %arg3[%607, %c6_390] : memref<25x25xf32, #tpu.memory_space<smem>>
      %c6_391 = arith.constant 6 : index
      %c0_392 = arith.constant 0 : index
      %c0_393 = arith.constant 0 : index
      %609 = vector.load %arg8[%c6_391, %c0_392, %c0_393] : memref<25x8x16xf32, #tpu.memory_space<vmem>>, vector<1x8x16xf32>
      %610 = vector.shape_cast %609 : vector<1x8x16xf32> to vector<8x16xf32>
      %611 = vector.broadcast %608 : f32 to vector<8x16xf32>
      %612 = arith.mulf %611, %610 : vector<8x16xf32>
      %613 = arith.addf %606, %612 : vector<8x16xf32>
      %614 = arith.index_cast %565 : i32 to index
      %c7_394 = arith.constant 7 : index
      %615 = memref.load %arg3[%614, %c7_394] : memref<25x25xf32, #tpu.memory_space<smem>>
      %c7_395 = arith.constant 7 : index
      %c0_396 = arith.constant 0 : index
      %c0_397 = arith.constant 0 : index
      %616 = vector.load %arg8[%c7_395, %c0_396, %c0_397] : memref<25x8x16xf32, #tpu.memory_space<vmem>>, vector<1x8x16xf32>
      %617 = vector.shape_cast %616 : vector<1x8x16xf32> to vector<8x16xf32>
      %618 = vector.broadcast %615 : f32 to vector<8x16xf32>
      %619 = arith.mulf %618, %617 : vector<8x16xf32>
      %620 = arith.addf %613, %619 : vector<8x16xf32>
      %621 = arith.index_cast %565 : i32 to index
      %c8_398 = arith.constant 8 : index
      %622 = memref.load %arg3[%621, %c8_398] : memref<25x25xf32, #tpu.memory_space<smem>>
      %c8_399 = arith.constant 8 : index
      %c0_400 = arith.constant 0 : index
      %c0_401 = arith.constant 0 : index
      %623 = vector.load %arg8[%c8_399, %c0_400, %c0_401] : memref<25x8x16xf32, #tpu.memory_space<vmem>>, vector<1x8x16xf32>
      %624 = vector.shape_cast %623 : vector<1x8x16xf32> to vector<8x16xf32>
      %625 = vector.broadcast %622 : f32 to vector<8x16xf32>
      %626 = arith.mulf %625, %624 : vector<8x16xf32>
      %627 = arith.addf %620, %626 : vector<8x16xf32>
      %628 = arith.index_cast %565 : i32 to index
      %c9_402 = arith.constant 9 : index
      %629 = memref.load %arg3[%628, %c9_402] : memref<25x25xf32, #tpu.memory_space<smem>>
      %c9_403 = arith.constant 9 : index
      %c0_404 = arith.constant 0 : index
      %c0_405 = arith.constant 0 : index
      %630 = vector.load %arg8[%c9_403, %c0_404, %c0_405] : memref<25x8x16xf32, #tpu.memory_space<vmem>>, vector<1x8x16xf32>
      %631 = vector.shape_cast %630 : vector<1x8x16xf32> to vector<8x16xf32>
      %632 = vector.broadcast %629 : f32 to vector<8x16xf32>
      %633 = arith.mulf %632, %631 : vector<8x16xf32>
      %634 = arith.addf %627, %633 : vector<8x16xf32>
      %635 = arith.index_cast %565 : i32 to index
      %c10_406 = arith.constant 10 : index
      %636 = memref.load %arg3[%635, %c10_406] : memref<25x25xf32, #tpu.memory_space<smem>>
      %c10_407 = arith.constant 10 : index
      %c0_408 = arith.constant 0 : index
      %c0_409 = arith.constant 0 : index
      %637 = vector.load %arg8[%c10_407, %c0_408, %c0_409] : memref<25x8x16xf32, #tpu.memory_space<vmem>>, vector<1x8x16xf32>
      %638 = vector.shape_cast %637 : vector<1x8x16xf32> to vector<8x16xf32>
      %639 = vector.broadcast %636 : f32 to vector<8x16xf32>
      %640 = arith.mulf %639, %638 : vector<8x16xf32>
      %641 = arith.addf %634, %640 : vector<8x16xf32>
      %642 = arith.index_cast %565 : i32 to index
      %c11_410 = arith.constant 11 : index
      %643 = memref.load %arg3[%642, %c11_410] : memref<25x25xf32, #tpu.memory_space<smem>>
      %c11_411 = arith.constant 11 : index
      %c0_412 = arith.constant 0 : index
      %c0_413 = arith.constant 0 : index
      %644 = vector.load %arg8[%c11_411, %c0_412, %c0_413] : memref<25x8x16xf32, #tpu.memory_space<vmem>>, vector<1x8x16xf32>
      %645 = vector.shape_cast %644 : vector<1x8x16xf32> to vector<8x16xf32>
      %646 = vector.broadcast %643 : f32 to vector<8x16xf32>
      %647 = arith.mulf %646, %645 : vector<8x16xf32>
      %648 = arith.addf %641, %647 : vector<8x16xf32>
      %649 = arith.index_cast %565 : i32 to index
      %c12_414 = arith.constant 12 : index
      %650 = memref.load %arg3[%649, %c12_414] : memref<25x25xf32, #tpu.memory_space<smem>>
      %c12_415 = arith.constant 12 : index
      %c0_416 = arith.constant 0 : index
      %c0_417 = arith.constant 0 : index
      %651 = vector.load %arg8[%c12_415, %c0_416, %c0_417] : memref<25x8x16xf32, #tpu.memory_space<vmem>>, vector<1x8x16xf32>
      %652 = vector.shape_cast %651 : vector<1x8x16xf32> to vector<8x16xf32>
      %653 = vector.broadcast %650 : f32 to vector<8x16xf32>
      %654 = arith.mulf %653, %652 : vector<8x16xf32>
      %655 = arith.addf %648, %654 : vector<8x16xf32>
      %656 = arith.index_cast %565 : i32 to index
      %c13_418 = arith.constant 13 : index
      %657 = memref.load %arg3[%656, %c13_418] : memref<25x25xf32, #tpu.memory_space<smem>>
      %c13_419 = arith.constant 13 : index
      %c0_420 = arith.constant 0 : index
      %c0_421 = arith.constant 0 : index
      %658 = vector.load %arg8[%c13_419, %c0_420, %c0_421] : memref<25x8x16xf32, #tpu.memory_space<vmem>>, vector<1x8x16xf32>
      %659 = vector.shape_cast %658 : vector<1x8x16xf32> to vector<8x16xf32>
      %660 = vector.broadcast %657 : f32 to vector<8x16xf32>
      %661 = arith.mulf %660, %659 : vector<8x16xf32>
      %662 = arith.addf %655, %661 : vector<8x16xf32>
      %663 = arith.index_cast %565 : i32 to index
      %c14_422 = arith.constant 14 : index
      %664 = memref.load %arg3[%663, %c14_422] : memref<25x25xf32, #tpu.memory_space<smem>>
      %c14_423 = arith.constant 14 : index
      %c0_424 = arith.constant 0 : index
      %c0_425 = arith.constant 0 : index
      %665 = vector.load %arg8[%c14_423, %c0_424, %c0_425] : memref<25x8x16xf32, #tpu.memory_space<vmem>>, vector<1x8x16xf32>
      %666 = vector.shape_cast %665 : vector<1x8x16xf32> to vector<8x16xf32>
      %667 = vector.broadcast %664 : f32 to vector<8x16xf32>
      %668 = arith.mulf %667, %666 : vector<8x16xf32>
      %669 = arith.addf %662, %668 : vector<8x16xf32>
      %670 = arith.index_cast %565 : i32 to index
      %c15_426 = arith.constant 15 : index
      %671 = memref.load %arg3[%670, %c15_426] : memref<25x25xf32, #tpu.memory_space<smem>>
      %c15_427 = arith.constant 15 : index
      %c0_428 = arith.constant 0 : index
      %c0_429 = arith.constant 0 : index
      %672 = vector.load %arg8[%c15_427, %c0_428, %c0_429] : memref<25x8x16xf32, #tpu.memory_space<vmem>>, vector<1x8x16xf32>
      %673 = vector.shape_cast %672 : vector<1x8x16xf32> to vector<8x16xf32>
      %674 = vector.broadcast %671 : f32 to vector<8x16xf32>
      %675 = arith.mulf %674, %673 : vector<8x16xf32>
      %676 = arith.addf %669, %675 : vector<8x16xf32>
      %677 = arith.index_cast %565 : i32 to index
      %c16_430 = arith.constant 16 : index
      %678 = memref.load %arg3[%677, %c16_430] : memref<25x25xf32, #tpu.memory_space<smem>>
      %c16_431 = arith.constant 16 : index
      %c0_432 = arith.constant 0 : index
      %c0_433 = arith.constant 0 : index
      %679 = vector.load %arg8[%c16_431, %c0_432, %c0_433] : memref<25x8x16xf32, #tpu.memory_space<vmem>>, vector<1x8x16xf32>
      %680 = vector.shape_cast %679 : vector<1x8x16xf32> to vector<8x16xf32>
      %681 = vector.broadcast %678 : f32 to vector<8x16xf32>
      %682 = arith.mulf %681, %680 : vector<8x16xf32>
      %683 = arith.addf %676, %682 : vector<8x16xf32>
      %684 = arith.index_cast %565 : i32 to index
      %c17_434 = arith.constant 17 : index
      %685 = memref.load %arg3[%684, %c17_434] : memref<25x25xf32, #tpu.memory_space<smem>>
      %c17_435 = arith.constant 17 : index
      %c0_436 = arith.constant 0 : index
      %c0_437 = arith.constant 0 : index
      %686 = vector.load %arg8[%c17_435, %c0_436, %c0_437] : memref<25x8x16xf32, #tpu.memory_space<vmem>>, vector<1x8x16xf32>
      %687 = vector.shape_cast %686 : vector<1x8x16xf32> to vector<8x16xf32>
      %688 = vector.broadcast %685 : f32 to vector<8x16xf32>
      %689 = arith.mulf %688, %687 : vector<8x16xf32>
      %690 = arith.addf %683, %689 : vector<8x16xf32>
      %691 = arith.index_cast %565 : i32 to index
      %c18_438 = arith.constant 18 : index
      %692 = memref.load %arg3[%691, %c18_438] : memref<25x25xf32, #tpu.memory_space<smem>>
      %c18_439 = arith.constant 18 : index
      %c0_440 = arith.constant 0 : index
      %c0_441 = arith.constant 0 : index
      %693 = vector.load %arg8[%c18_439, %c0_440, %c0_441] : memref<25x8x16xf32, #tpu.memory_space<vmem>>, vector<1x8x16xf32>
      %694 = vector.shape_cast %693 : vector<1x8x16xf32> to vector<8x16xf32>
      %695 = vector.broadcast %692 : f32 to vector<8x16xf32>
      %696 = arith.mulf %695, %694 : vector<8x16xf32>
      %697 = arith.addf %690, %696 : vector<8x16xf32>
      %698 = arith.index_cast %565 : i32 to index
      %c19_442 = arith.constant 19 : index
      %699 = memref.load %arg3[%698, %c19_442] : memref<25x25xf32, #tpu.memory_space<smem>>
      %c19_443 = arith.constant 19 : index
      %c0_444 = arith.constant 0 : index
      %c0_445 = arith.constant 0 : index
      %700 = vector.load %arg8[%c19_443, %c0_444, %c0_445] : memref<25x8x16xf32, #tpu.memory_space<vmem>>, vector<1x8x16xf32>
      %701 = vector.shape_cast %700 : vector<1x8x16xf32> to vector<8x16xf32>
      %702 = vector.broadcast %699 : f32 to vector<8x16xf32>
      %703 = arith.mulf %702, %701 : vector<8x16xf32>
      %704 = arith.addf %697, %703 : vector<8x16xf32>
      %705 = arith.index_cast %565 : i32 to index
      %c20_446 = arith.constant 20 : index
      %706 = memref.load %arg3[%705, %c20_446] : memref<25x25xf32, #tpu.memory_space<smem>>
      %c20_447 = arith.constant 20 : index
      %c0_448 = arith.constant 0 : index
      %c0_449 = arith.constant 0 : index
      %707 = vector.load %arg8[%c20_447, %c0_448, %c0_449] : memref<25x8x16xf32, #tpu.memory_space<vmem>>, vector<1x8x16xf32>
      %708 = vector.shape_cast %707 : vector<1x8x16xf32> to vector<8x16xf32>
      %709 = vector.broadcast %706 : f32 to vector<8x16xf32>
      %710 = arith.mulf %709, %708 : vector<8x16xf32>
      %711 = arith.addf %704, %710 : vector<8x16xf32>
      %712 = arith.index_cast %565 : i32 to index
      %c21_450 = arith.constant 21 : index
      %713 = memref.load %arg3[%712, %c21_450] : memref<25x25xf32, #tpu.memory_space<smem>>
      %c21_451 = arith.constant 21 : index
      %c0_452 = arith.constant 0 : index
      %c0_453 = arith.constant 0 : index
      %714 = vector.load %arg8[%c21_451, %c0_452, %c0_453] : memref<25x8x16xf32, #tpu.memory_space<vmem>>, vector<1x8x16xf32>
      %715 = vector.shape_cast %714 : vector<1x8x16xf32> to vector<8x16xf32>
      %716 = vector.broadcast %713 : f32 to vector<8x16xf32>
      %717 = arith.mulf %716, %715 : vector<8x16xf32>
      %718 = arith.addf %711, %717 : vector<8x16xf32>
      %719 = arith.index_cast %565 : i32 to index
      %c22_454 = arith.constant 22 : index
      %720 = memref.load %arg3[%719, %c22_454] : memref<25x25xf32, #tpu.memory_space<smem>>
      %c22_455 = arith.constant 22 : index
      %c0_456 = arith.constant 0 : index
      %c0_457 = arith.constant 0 : index
      %721 = vector.load %arg8[%c22_455, %c0_456, %c0_457] : memref<25x8x16xf32, #tpu.memory_space<vmem>>, vector<1x8x16xf32>
      %722 = vector.shape_cast %721 : vector<1x8x16xf32> to vector<8x16xf32>
      %723 = vector.broadcast %720 : f32 to vector<8x16xf32>
      %724 = arith.mulf %723, %722 : vector<8x16xf32>
      %725 = arith.addf %718, %724 : vector<8x16xf32>
      %726 = arith.index_cast %565 : i32 to index
      %c23_458 = arith.constant 23 : index
      %727 = memref.load %arg3[%726, %c23_458] : memref<25x25xf32, #tpu.memory_space<smem>>
      %c23_459 = arith.constant 23 : index
      %c0_460 = arith.constant 0 : index
      %c0_461 = arith.constant 0 : index
      %728 = vector.load %arg8[%c23_459, %c0_460, %c0_461] : memref<25x8x16xf32, #tpu.memory_space<vmem>>, vector<1x8x16xf32>
      %729 = vector.shape_cast %728 : vector<1x8x16xf32> to vector<8x16xf32>
      %730 = vector.broadcast %727 : f32 to vector<8x16xf32>
      %731 = arith.mulf %730, %729 : vector<8x16xf32>
      %732 = arith.addf %725, %731 : vector<8x16xf32>
      %733 = arith.index_cast %565 : i32 to index
      %c24_462 = arith.constant 24 : index
      %734 = memref.load %arg3[%733, %c24_462] : memref<25x25xf32, #tpu.memory_space<smem>>
      %c24_463 = arith.constant 24 : index
      %c0_464 = arith.constant 0 : index
      %c0_465 = arith.constant 0 : index
      %735 = vector.load %arg8[%c24_463, %c0_464, %c0_465] : memref<25x8x16xf32, #tpu.memory_space<vmem>>, vector<1x8x16xf32>
      %736 = vector.shape_cast %735 : vector<1x8x16xf32> to vector<8x16xf32>
      %737 = vector.broadcast %734 : f32 to vector<8x16xf32>
      %738 = arith.mulf %737, %736 : vector<8x16xf32>
      %739 = arith.addf %732, %738 : vector<8x16xf32>
      %740 = arith.index_cast %565 : i32 to index
      %741 = memref.load %arg4[%740] : memref<25xf32, #tpu.memory_space<smem>>
      %742 = vector.broadcast %741 : f32 to vector<8x16xf32>
      %743 = arith.addf %739, %742 : vector<8x16xf32>
      %cst_466 = arith.constant 0.000000e+00 : f32
      %744 = vector.broadcast %cst_466 : f32 to vector<8x16xf32>
      %745 = arith.maximumf %743, %744 : vector<8x16xf32>
      %746 = arith.index_cast %565 : i32 to index
      %747 = memref.load %arg5[%746] : memref<25xf32, #tpu.memory_space<smem>>
      %748 = vector.broadcast %747 : f32 to vector<8x16xf32>
      %749 = arith.mulf %748, %745 : vector<8x16xf32>
      %750 = arith.addf %563, %749 : vector<8x16xf32>
      %c5_i32_467 = arith.constant 5 : i32
      %751 = arith.muli %arg9, %c5_i32_467 : i32
      %c3_i32 = arith.constant 3 : i32
      %752 = arith.addi %751, %c3_i32 : i32
      %753 = arith.index_cast %752 : i32 to index
      %c0_468 = arith.constant 0 : index
      %754 = memref.load %arg3[%753, %c0_468] : memref<25x25xf32, #tpu.memory_space<smem>>
      %c0_469 = arith.constant 0 : index
      %c0_470 = arith.constant 0 : index
      %c0_471 = arith.constant 0 : index
      %755 = vector.load %arg8[%c0_469, %c0_470, %c0_471] : memref<25x8x16xf32, #tpu.memory_space<vmem>>, vector<1x8x16xf32>
      %756 = vector.shape_cast %755 : vector<1x8x16xf32> to vector<8x16xf32>
      %757 = vector.broadcast %754 : f32 to vector<8x16xf32>
      %758 = arith.mulf %757, %756 : vector<8x16xf32>
      %759 = arith.index_cast %752 : i32 to index
      %c1_472 = arith.constant 1 : index
      %760 = memref.load %arg3[%759, %c1_472] : memref<25x25xf32, #tpu.memory_space<smem>>
      %c1_473 = arith.constant 1 : index
      %c0_474 = arith.constant 0 : index
      %c0_475 = arith.constant 0 : index
      %761 = vector.load %arg8[%c1_473, %c0_474, %c0_475] : memref<25x8x16xf32, #tpu.memory_space<vmem>>, vector<1x8x16xf32>
      %762 = vector.shape_cast %761 : vector<1x8x16xf32> to vector<8x16xf32>
      %763 = vector.broadcast %760 : f32 to vector<8x16xf32>
      %764 = arith.mulf %763, %762 : vector<8x16xf32>
      %765 = arith.addf %758, %764 : vector<8x16xf32>
      %766 = arith.index_cast %752 : i32 to index
      %c2_476 = arith.constant 2 : index
      %767 = memref.load %arg3[%766, %c2_476] : memref<25x25xf32, #tpu.memory_space<smem>>
      %c2_477 = arith.constant 2 : index
      %c0_478 = arith.constant 0 : index
      %c0_479 = arith.constant 0 : index
      %768 = vector.load %arg8[%c2_477, %c0_478, %c0_479] : memref<25x8x16xf32, #tpu.memory_space<vmem>>, vector<1x8x16xf32>
      %769 = vector.shape_cast %768 : vector<1x8x16xf32> to vector<8x16xf32>
      %770 = vector.broadcast %767 : f32 to vector<8x16xf32>
      %771 = arith.mulf %770, %769 : vector<8x16xf32>
      %772 = arith.addf %765, %771 : vector<8x16xf32>
      %773 = arith.index_cast %752 : i32 to index
      %c3_480 = arith.constant 3 : index
      %774 = memref.load %arg3[%773, %c3_480] : memref<25x25xf32, #tpu.memory_space<smem>>
      %c3_481 = arith.constant 3 : index
      %c0_482 = arith.constant 0 : index
      %c0_483 = arith.constant 0 : index
      %775 = vector.load %arg8[%c3_481, %c0_482, %c0_483] : memref<25x8x16xf32, #tpu.memory_space<vmem>>, vector<1x8x16xf32>
      %776 = vector.shape_cast %775 : vector<1x8x16xf32> to vector<8x16xf32>
      %777 = vector.broadcast %774 : f32 to vector<8x16xf32>
      %778 = arith.mulf %777, %776 : vector<8x16xf32>
      %779 = arith.addf %772, %778 : vector<8x16xf32>
      %780 = arith.index_cast %752 : i32 to index
      %c4_484 = arith.constant 4 : index
      %781 = memref.load %arg3[%780, %c4_484] : memref<25x25xf32, #tpu.memory_space<smem>>
      %c4_485 = arith.constant 4 : index
      %c0_486 = arith.constant 0 : index
      %c0_487 = arith.constant 0 : index
      %782 = vector.load %arg8[%c4_485, %c0_486, %c0_487] : memref<25x8x16xf32, #tpu.memory_space<vmem>>, vector<1x8x16xf32>
      %783 = vector.shape_cast %782 : vector<1x8x16xf32> to vector<8x16xf32>
      %784 = vector.broadcast %781 : f32 to vector<8x16xf32>
      %785 = arith.mulf %784, %783 : vector<8x16xf32>
      %786 = arith.addf %779, %785 : vector<8x16xf32>
      %787 = arith.index_cast %752 : i32 to index
      %c5_488 = arith.constant 5 : index
      %788 = memref.load %arg3[%787, %c5_488] : memref<25x25xf32, #tpu.memory_space<smem>>
      %c5_489 = arith.constant 5 : index
      %c0_490 = arith.constant 0 : index
      %c0_491 = arith.constant 0 : index
      %789 = vector.load %arg8[%c5_489, %c0_490, %c0_491] : memref<25x8x16xf32, #tpu.memory_space<vmem>>, vector<1x8x16xf32>
      %790 = vector.shape_cast %789 : vector<1x8x16xf32> to vector<8x16xf32>
      %791 = vector.broadcast %788 : f32 to vector<8x16xf32>
      %792 = arith.mulf %791, %790 : vector<8x16xf32>
      %793 = arith.addf %786, %792 : vector<8x16xf32>
      %794 = arith.index_cast %752 : i32 to index
      %c6_492 = arith.constant 6 : index
      %795 = memref.load %arg3[%794, %c6_492] : memref<25x25xf32, #tpu.memory_space<smem>>
      %c6_493 = arith.constant 6 : index
      %c0_494 = arith.constant 0 : index
      %c0_495 = arith.constant 0 : index
      %796 = vector.load %arg8[%c6_493, %c0_494, %c0_495] : memref<25x8x16xf32, #tpu.memory_space<vmem>>, vector<1x8x16xf32>
      %797 = vector.shape_cast %796 : vector<1x8x16xf32> to vector<8x16xf32>
      %798 = vector.broadcast %795 : f32 to vector<8x16xf32>
      %799 = arith.mulf %798, %797 : vector<8x16xf32>
      %800 = arith.addf %793, %799 : vector<8x16xf32>
      %801 = arith.index_cast %752 : i32 to index
      %c7_496 = arith.constant 7 : index
      %802 = memref.load %arg3[%801, %c7_496] : memref<25x25xf32, #tpu.memory_space<smem>>
      %c7_497 = arith.constant 7 : index
      %c0_498 = arith.constant 0 : index
      %c0_499 = arith.constant 0 : index
      %803 = vector.load %arg8[%c7_497, %c0_498, %c0_499] : memref<25x8x16xf32, #tpu.memory_space<vmem>>, vector<1x8x16xf32>
      %804 = vector.shape_cast %803 : vector<1x8x16xf32> to vector<8x16xf32>
      %805 = vector.broadcast %802 : f32 to vector<8x16xf32>
      %806 = arith.mulf %805, %804 : vector<8x16xf32>
      %807 = arith.addf %800, %806 : vector<8x16xf32>
      %808 = arith.index_cast %752 : i32 to index
      %c8_500 = arith.constant 8 : index
      %809 = memref.load %arg3[%808, %c8_500] : memref<25x25xf32, #tpu.memory_space<smem>>
      %c8_501 = arith.constant 8 : index
      %c0_502 = arith.constant 0 : index
      %c0_503 = arith.constant 0 : index
      %810 = vector.load %arg8[%c8_501, %c0_502, %c0_503] : memref<25x8x16xf32, #tpu.memory_space<vmem>>, vector<1x8x16xf32>
      %811 = vector.shape_cast %810 : vector<1x8x16xf32> to vector<8x16xf32>
      %812 = vector.broadcast %809 : f32 to vector<8x16xf32>
      %813 = arith.mulf %812, %811 : vector<8x16xf32>
      %814 = arith.addf %807, %813 : vector<8x16xf32>
      %815 = arith.index_cast %752 : i32 to index
      %c9_504 = arith.constant 9 : index
      %816 = memref.load %arg3[%815, %c9_504] : memref<25x25xf32, #tpu.memory_space<smem>>
      %c9_505 = arith.constant 9 : index
      %c0_506 = arith.constant 0 : index
      %c0_507 = arith.constant 0 : index
      %817 = vector.load %arg8[%c9_505, %c0_506, %c0_507] : memref<25x8x16xf32, #tpu.memory_space<vmem>>, vector<1x8x16xf32>
      %818 = vector.shape_cast %817 : vector<1x8x16xf32> to vector<8x16xf32>
      %819 = vector.broadcast %816 : f32 to vector<8x16xf32>
      %820 = arith.mulf %819, %818 : vector<8x16xf32>
      %821 = arith.addf %814, %820 : vector<8x16xf32>
      %822 = arith.index_cast %752 : i32 to index
      %c10_508 = arith.constant 10 : index
      %823 = memref.load %arg3[%822, %c10_508] : memref<25x25xf32, #tpu.memory_space<smem>>
      %c10_509 = arith.constant 10 : index
      %c0_510 = arith.constant 0 : index
      %c0_511 = arith.constant 0 : index
      %824 = vector.load %arg8[%c10_509, %c0_510, %c0_511] : memref<25x8x16xf32, #tpu.memory_space<vmem>>, vector<1x8x16xf32>
      %825 = vector.shape_cast %824 : vector<1x8x16xf32> to vector<8x16xf32>
      %826 = vector.broadcast %823 : f32 to vector<8x16xf32>
      %827 = arith.mulf %826, %825 : vector<8x16xf32>
      %828 = arith.addf %821, %827 : vector<8x16xf32>
      %829 = arith.index_cast %752 : i32 to index
      %c11_512 = arith.constant 11 : index
      %830 = memref.load %arg3[%829, %c11_512] : memref<25x25xf32, #tpu.memory_space<smem>>
      %c11_513 = arith.constant 11 : index
      %c0_514 = arith.constant 0 : index
      %c0_515 = arith.constant 0 : index
      %831 = vector.load %arg8[%c11_513, %c0_514, %c0_515] : memref<25x8x16xf32, #tpu.memory_space<vmem>>, vector<1x8x16xf32>
      %832 = vector.shape_cast %831 : vector<1x8x16xf32> to vector<8x16xf32>
      %833 = vector.broadcast %830 : f32 to vector<8x16xf32>
      %834 = arith.mulf %833, %832 : vector<8x16xf32>
      %835 = arith.addf %828, %834 : vector<8x16xf32>
      %836 = arith.index_cast %752 : i32 to index
      %c12_516 = arith.constant 12 : index
      %837 = memref.load %arg3[%836, %c12_516] : memref<25x25xf32, #tpu.memory_space<smem>>
      %c12_517 = arith.constant 12 : index
      %c0_518 = arith.constant 0 : index
      %c0_519 = arith.constant 0 : index
      %838 = vector.load %arg8[%c12_517, %c0_518, %c0_519] : memref<25x8x16xf32, #tpu.memory_space<vmem>>, vector<1x8x16xf32>
      %839 = vector.shape_cast %838 : vector<1x8x16xf32> to vector<8x16xf32>
      %840 = vector.broadcast %837 : f32 to vector<8x16xf32>
      %841 = arith.mulf %840, %839 : vector<8x16xf32>
      %842 = arith.addf %835, %841 : vector<8x16xf32>
      %843 = arith.index_cast %752 : i32 to index
      %c13_520 = arith.constant 13 : index
      %844 = memref.load %arg3[%843, %c13_520] : memref<25x25xf32, #tpu.memory_space<smem>>
      %c13_521 = arith.constant 13 : index
      %c0_522 = arith.constant 0 : index
      %c0_523 = arith.constant 0 : index
      %845 = vector.load %arg8[%c13_521, %c0_522, %c0_523] : memref<25x8x16xf32, #tpu.memory_space<vmem>>, vector<1x8x16xf32>
      %846 = vector.shape_cast %845 : vector<1x8x16xf32> to vector<8x16xf32>
      %847 = vector.broadcast %844 : f32 to vector<8x16xf32>
      %848 = arith.mulf %847, %846 : vector<8x16xf32>
      %849 = arith.addf %842, %848 : vector<8x16xf32>
      %850 = arith.index_cast %752 : i32 to index
      %c14_524 = arith.constant 14 : index
      %851 = memref.load %arg3[%850, %c14_524] : memref<25x25xf32, #tpu.memory_space<smem>>
      %c14_525 = arith.constant 14 : index
      %c0_526 = arith.constant 0 : index
      %c0_527 = arith.constant 0 : index
      %852 = vector.load %arg8[%c14_525, %c0_526, %c0_527] : memref<25x8x16xf32, #tpu.memory_space<vmem>>, vector<1x8x16xf32>
      %853 = vector.shape_cast %852 : vector<1x8x16xf32> to vector<8x16xf32>
      %854 = vector.broadcast %851 : f32 to vector<8x16xf32>
      %855 = arith.mulf %854, %853 : vector<8x16xf32>
      %856 = arith.addf %849, %855 : vector<8x16xf32>
      %857 = arith.index_cast %752 : i32 to index
      %c15_528 = arith.constant 15 : index
      %858 = memref.load %arg3[%857, %c15_528] : memref<25x25xf32, #tpu.memory_space<smem>>
      %c15_529 = arith.constant 15 : index
      %c0_530 = arith.constant 0 : index
      %c0_531 = arith.constant 0 : index
      %859 = vector.load %arg8[%c15_529, %c0_530, %c0_531] : memref<25x8x16xf32, #tpu.memory_space<vmem>>, vector<1x8x16xf32>
      %860 = vector.shape_cast %859 : vector<1x8x16xf32> to vector<8x16xf32>
      %861 = vector.broadcast %858 : f32 to vector<8x16xf32>
      %862 = arith.mulf %861, %860 : vector<8x16xf32>
      %863 = arith.addf %856, %862 : vector<8x16xf32>
      %864 = arith.index_cast %752 : i32 to index
      %c16_532 = arith.constant 16 : index
      %865 = memref.load %arg3[%864, %c16_532] : memref<25x25xf32, #tpu.memory_space<smem>>
      %c16_533 = arith.constant 16 : index
      %c0_534 = arith.constant 0 : index
      %c0_535 = arith.constant 0 : index
      %866 = vector.load %arg8[%c16_533, %c0_534, %c0_535] : memref<25x8x16xf32, #tpu.memory_space<vmem>>, vector<1x8x16xf32>
      %867 = vector.shape_cast %866 : vector<1x8x16xf32> to vector<8x16xf32>
      %868 = vector.broadcast %865 : f32 to vector<8x16xf32>
      %869 = arith.mulf %868, %867 : vector<8x16xf32>
      %870 = arith.addf %863, %869 : vector<8x16xf32>
      %871 = arith.index_cast %752 : i32 to index
      %c17_536 = arith.constant 17 : index
      %872 = memref.load %arg3[%871, %c17_536] : memref<25x25xf32, #tpu.memory_space<smem>>
      %c17_537 = arith.constant 17 : index
      %c0_538 = arith.constant 0 : index
      %c0_539 = arith.constant 0 : index
      %873 = vector.load %arg8[%c17_537, %c0_538, %c0_539] : memref<25x8x16xf32, #tpu.memory_space<vmem>>, vector<1x8x16xf32>
      %874 = vector.shape_cast %873 : vector<1x8x16xf32> to vector<8x16xf32>
      %875 = vector.broadcast %872 : f32 to vector<8x16xf32>
      %876 = arith.mulf %875, %874 : vector<8x16xf32>
      %877 = arith.addf %870, %876 : vector<8x16xf32>
      %878 = arith.index_cast %752 : i32 to index
      %c18_540 = arith.constant 18 : index
      %879 = memref.load %arg3[%878, %c18_540] : memref<25x25xf32, #tpu.memory_space<smem>>
      %c18_541 = arith.constant 18 : index
      %c0_542 = arith.constant 0 : index
      %c0_543 = arith.constant 0 : index
      %880 = vector.load %arg8[%c18_541, %c0_542, %c0_543] : memref<25x8x16xf32, #tpu.memory_space<vmem>>, vector<1x8x16xf32>
      %881 = vector.shape_cast %880 : vector<1x8x16xf32> to vector<8x16xf32>
      %882 = vector.broadcast %879 : f32 to vector<8x16xf32>
      %883 = arith.mulf %882, %881 : vector<8x16xf32>
      %884 = arith.addf %877, %883 : vector<8x16xf32>
      %885 = arith.index_cast %752 : i32 to index
      %c19_544 = arith.constant 19 : index
      %886 = memref.load %arg3[%885, %c19_544] : memref<25x25xf32, #tpu.memory_space<smem>>
      %c19_545 = arith.constant 19 : index
      %c0_546 = arith.constant 0 : index
      %c0_547 = arith.constant 0 : index
      %887 = vector.load %arg8[%c19_545, %c0_546, %c0_547] : memref<25x8x16xf32, #tpu.memory_space<vmem>>, vector<1x8x16xf32>
      %888 = vector.shape_cast %887 : vector<1x8x16xf32> to vector<8x16xf32>
      %889 = vector.broadcast %886 : f32 to vector<8x16xf32>
      %890 = arith.mulf %889, %888 : vector<8x16xf32>
      %891 = arith.addf %884, %890 : vector<8x16xf32>
      %892 = arith.index_cast %752 : i32 to index
      %c20_548 = arith.constant 20 : index
      %893 = memref.load %arg3[%892, %c20_548] : memref<25x25xf32, #tpu.memory_space<smem>>
      %c20_549 = arith.constant 20 : index
      %c0_550 = arith.constant 0 : index
      %c0_551 = arith.constant 0 : index
      %894 = vector.load %arg8[%c20_549, %c0_550, %c0_551] : memref<25x8x16xf32, #tpu.memory_space<vmem>>, vector<1x8x16xf32>
      %895 = vector.shape_cast %894 : vector<1x8x16xf32> to vector<8x16xf32>
      %896 = vector.broadcast %893 : f32 to vector<8x16xf32>
      %897 = arith.mulf %896, %895 : vector<8x16xf32>
      %898 = arith.addf %891, %897 : vector<8x16xf32>
      %899 = arith.index_cast %752 : i32 to index
      %c21_552 = arith.constant 21 : index
      %900 = memref.load %arg3[%899, %c21_552] : memref<25x25xf32, #tpu.memory_space<smem>>
      %c21_553 = arith.constant 21 : index
      %c0_554 = arith.constant 0 : index
      %c0_555 = arith.constant 0 : index
      %901 = vector.load %arg8[%c21_553, %c0_554, %c0_555] : memref<25x8x16xf32, #tpu.memory_space<vmem>>, vector<1x8x16xf32>
      %902 = vector.shape_cast %901 : vector<1x8x16xf32> to vector<8x16xf32>
      %903 = vector.broadcast %900 : f32 to vector<8x16xf32>
      %904 = arith.mulf %903, %902 : vector<8x16xf32>
      %905 = arith.addf %898, %904 : vector<8x16xf32>
      %906 = arith.index_cast %752 : i32 to index
      %c22_556 = arith.constant 22 : index
      %907 = memref.load %arg3[%906, %c22_556] : memref<25x25xf32, #tpu.memory_space<smem>>
      %c22_557 = arith.constant 22 : index
      %c0_558 = arith.constant 0 : index
      %c0_559 = arith.constant 0 : index
      %908 = vector.load %arg8[%c22_557, %c0_558, %c0_559] : memref<25x8x16xf32, #tpu.memory_space<vmem>>, vector<1x8x16xf32>
      %909 = vector.shape_cast %908 : vector<1x8x16xf32> to vector<8x16xf32>
      %910 = vector.broadcast %907 : f32 to vector<8x16xf32>
      %911 = arith.mulf %910, %909 : vector<8x16xf32>
      %912 = arith.addf %905, %911 : vector<8x16xf32>
      %913 = arith.index_cast %752 : i32 to index
      %c23_560 = arith.constant 23 : index
      %914 = memref.load %arg3[%913, %c23_560] : memref<25x25xf32, #tpu.memory_space<smem>>
      %c23_561 = arith.constant 23 : index
      %c0_562 = arith.constant 0 : index
      %c0_563 = arith.constant 0 : index
      %915 = vector.load %arg8[%c23_561, %c0_562, %c0_563] : memref<25x8x16xf32, #tpu.memory_space<vmem>>, vector<1x8x16xf32>
      %916 = vector.shape_cast %915 : vector<1x8x16xf32> to vector<8x16xf32>
      %917 = vector.broadcast %914 : f32 to vector<8x16xf32>
      %918 = arith.mulf %917, %916 : vector<8x16xf32>
      %919 = arith.addf %912, %918 : vector<8x16xf32>
      %920 = arith.index_cast %752 : i32 to index
      %c24_564 = arith.constant 24 : index
      %921 = memref.load %arg3[%920, %c24_564] : memref<25x25xf32, #tpu.memory_space<smem>>
      %c24_565 = arith.constant 24 : index
      %c0_566 = arith.constant 0 : index
      %c0_567 = arith.constant 0 : index
      %922 = vector.load %arg8[%c24_565, %c0_566, %c0_567] : memref<25x8x16xf32, #tpu.memory_space<vmem>>, vector<1x8x16xf32>
      %923 = vector.shape_cast %922 : vector<1x8x16xf32> to vector<8x16xf32>
      %924 = vector.broadcast %921 : f32 to vector<8x16xf32>
      %925 = arith.mulf %924, %923 : vector<8x16xf32>
      %926 = arith.addf %919, %925 : vector<8x16xf32>
      %927 = arith.index_cast %752 : i32 to index
      %928 = memref.load %arg4[%927] : memref<25xf32, #tpu.memory_space<smem>>
      %929 = vector.broadcast %928 : f32 to vector<8x16xf32>
      %930 = arith.addf %926, %929 : vector<8x16xf32>
      %cst_568 = arith.constant 0.000000e+00 : f32
      %931 = vector.broadcast %cst_568 : f32 to vector<8x16xf32>
      %932 = arith.maximumf %930, %931 : vector<8x16xf32>
      %933 = arith.index_cast %752 : i32 to index
      %934 = memref.load %arg5[%933] : memref<25xf32, #tpu.memory_space<smem>>
      %935 = vector.broadcast %934 : f32 to vector<8x16xf32>
      %936 = arith.mulf %935, %932 : vector<8x16xf32>
      %937 = arith.addf %750, %936 : vector<8x16xf32>
      %c5_i32_569 = arith.constant 5 : i32
      %938 = arith.muli %arg9, %c5_i32_569 : i32
      %c4_i32 = arith.constant 4 : i32
      %939 = arith.addi %938, %c4_i32 : i32
      %940 = arith.index_cast %939 : i32 to index
      %c0_570 = arith.constant 0 : index
      %941 = memref.load %arg3[%940, %c0_570] : memref<25x25xf32, #tpu.memory_space<smem>>
      %c0_571 = arith.constant 0 : index
      %c0_572 = arith.constant 0 : index
      %c0_573 = arith.constant 0 : index
      %942 = vector.load %arg8[%c0_571, %c0_572, %c0_573] : memref<25x8x16xf32, #tpu.memory_space<vmem>>, vector<1x8x16xf32>
      %943 = vector.shape_cast %942 : vector<1x8x16xf32> to vector<8x16xf32>
      %944 = vector.broadcast %941 : f32 to vector<8x16xf32>
      %945 = arith.mulf %944, %943 : vector<8x16xf32>
      %946 = arith.index_cast %939 : i32 to index
      %c1_574 = arith.constant 1 : index
      %947 = memref.load %arg3[%946, %c1_574] : memref<25x25xf32, #tpu.memory_space<smem>>
      %c1_575 = arith.constant 1 : index
      %c0_576 = arith.constant 0 : index
      %c0_577 = arith.constant 0 : index
      %948 = vector.load %arg8[%c1_575, %c0_576, %c0_577] : memref<25x8x16xf32, #tpu.memory_space<vmem>>, vector<1x8x16xf32>
      %949 = vector.shape_cast %948 : vector<1x8x16xf32> to vector<8x16xf32>
      %950 = vector.broadcast %947 : f32 to vector<8x16xf32>
      %951 = arith.mulf %950, %949 : vector<8x16xf32>
      %952 = arith.addf %945, %951 : vector<8x16xf32>
      %953 = arith.index_cast %939 : i32 to index
      %c2_578 = arith.constant 2 : index
      %954 = memref.load %arg3[%953, %c2_578] : memref<25x25xf32, #tpu.memory_space<smem>>
      %c2_579 = arith.constant 2 : index
      %c0_580 = arith.constant 0 : index
      %c0_581 = arith.constant 0 : index
      %955 = vector.load %arg8[%c2_579, %c0_580, %c0_581] : memref<25x8x16xf32, #tpu.memory_space<vmem>>, vector<1x8x16xf32>
      %956 = vector.shape_cast %955 : vector<1x8x16xf32> to vector<8x16xf32>
      %957 = vector.broadcast %954 : f32 to vector<8x16xf32>
      %958 = arith.mulf %957, %956 : vector<8x16xf32>
      %959 = arith.addf %952, %958 : vector<8x16xf32>
      %960 = arith.index_cast %939 : i32 to index
      %c3_582 = arith.constant 3 : index
      %961 = memref.load %arg3[%960, %c3_582] : memref<25x25xf32, #tpu.memory_space<smem>>
      %c3_583 = arith.constant 3 : index
      %c0_584 = arith.constant 0 : index
      %c0_585 = arith.constant 0 : index
      %962 = vector.load %arg8[%c3_583, %c0_584, %c0_585] : memref<25x8x16xf32, #tpu.memory_space<vmem>>, vector<1x8x16xf32>
      %963 = vector.shape_cast %962 : vector<1x8x16xf32> to vector<8x16xf32>
      %964 = vector.broadcast %961 : f32 to vector<8x16xf32>
      %965 = arith.mulf %964, %963 : vector<8x16xf32>
      %966 = arith.addf %959, %965 : vector<8x16xf32>
      %967 = arith.index_cast %939 : i32 to index
      %c4_586 = arith.constant 4 : index
      %968 = memref.load %arg3[%967, %c4_586] : memref<25x25xf32, #tpu.memory_space<smem>>
      %c4_587 = arith.constant 4 : index
      %c0_588 = arith.constant 0 : index
      %c0_589 = arith.constant 0 : index
      %969 = vector.load %arg8[%c4_587, %c0_588, %c0_589] : memref<25x8x16xf32, #tpu.memory_space<vmem>>, vector<1x8x16xf32>
      %970 = vector.shape_cast %969 : vector<1x8x16xf32> to vector<8x16xf32>
      %971 = vector.broadcast %968 : f32 to vector<8x16xf32>
      %972 = arith.mulf %971, %970 : vector<8x16xf32>
      %973 = arith.addf %966, %972 : vector<8x16xf32>
      %974 = arith.index_cast %939 : i32 to index
      %c5_590 = arith.constant 5 : index
      %975 = memref.load %arg3[%974, %c5_590] : memref<25x25xf32, #tpu.memory_space<smem>>
      %c5_591 = arith.constant 5 : index
      %c0_592 = arith.constant 0 : index
      %c0_593 = arith.constant 0 : index
      %976 = vector.load %arg8[%c5_591, %c0_592, %c0_593] : memref<25x8x16xf32, #tpu.memory_space<vmem>>, vector<1x8x16xf32>
      %977 = vector.shape_cast %976 : vector<1x8x16xf32> to vector<8x16xf32>
      %978 = vector.broadcast %975 : f32 to vector<8x16xf32>
      %979 = arith.mulf %978, %977 : vector<8x16xf32>
      %980 = arith.addf %973, %979 : vector<8x16xf32>
      %981 = arith.index_cast %939 : i32 to index
      %c6_594 = arith.constant 6 : index
      %982 = memref.load %arg3[%981, %c6_594] : memref<25x25xf32, #tpu.memory_space<smem>>
      %c6_595 = arith.constant 6 : index
      %c0_596 = arith.constant 0 : index
      %c0_597 = arith.constant 0 : index
      %983 = vector.load %arg8[%c6_595, %c0_596, %c0_597] : memref<25x8x16xf32, #tpu.memory_space<vmem>>, vector<1x8x16xf32>
      %984 = vector.shape_cast %983 : vector<1x8x16xf32> to vector<8x16xf32>
      %985 = vector.broadcast %982 : f32 to vector<8x16xf32>
      %986 = arith.mulf %985, %984 : vector<8x16xf32>
      %987 = arith.addf %980, %986 : vector<8x16xf32>
      %988 = arith.index_cast %939 : i32 to index
      %c7_598 = arith.constant 7 : index
      %989 = memref.load %arg3[%988, %c7_598] : memref<25x25xf32, #tpu.memory_space<smem>>
      %c7_599 = arith.constant 7 : index
      %c0_600 = arith.constant 0 : index
      %c0_601 = arith.constant 0 : index
      %990 = vector.load %arg8[%c7_599, %c0_600, %c0_601] : memref<25x8x16xf32, #tpu.memory_space<vmem>>, vector<1x8x16xf32>
      %991 = vector.shape_cast %990 : vector<1x8x16xf32> to vector<8x16xf32>
      %992 = vector.broadcast %989 : f32 to vector<8x16xf32>
      %993 = arith.mulf %992, %991 : vector<8x16xf32>
      %994 = arith.addf %987, %993 : vector<8x16xf32>
      %995 = arith.index_cast %939 : i32 to index
      %c8_602 = arith.constant 8 : index
      %996 = memref.load %arg3[%995, %c8_602] : memref<25x25xf32, #tpu.memory_space<smem>>
      %c8_603 = arith.constant 8 : index
      %c0_604 = arith.constant 0 : index
      %c0_605 = arith.constant 0 : index
      %997 = vector.load %arg8[%c8_603, %c0_604, %c0_605] : memref<25x8x16xf32, #tpu.memory_space<vmem>>, vector<1x8x16xf32>
      %998 = vector.shape_cast %997 : vector<1x8x16xf32> to vector<8x16xf32>
      %999 = vector.broadcast %996 : f32 to vector<8x16xf32>
      %1000 = arith.mulf %999, %998 : vector<8x16xf32>
      %1001 = arith.addf %994, %1000 : vector<8x16xf32>
      %1002 = arith.index_cast %939 : i32 to index
      %c9_606 = arith.constant 9 : index
      %1003 = memref.load %arg3[%1002, %c9_606] : memref<25x25xf32, #tpu.memory_space<smem>>
      %c9_607 = arith.constant 9 : index
      %c0_608 = arith.constant 0 : index
      %c0_609 = arith.constant 0 : index
      %1004 = vector.load %arg8[%c9_607, %c0_608, %c0_609] : memref<25x8x16xf32, #tpu.memory_space<vmem>>, vector<1x8x16xf32>
      %1005 = vector.shape_cast %1004 : vector<1x8x16xf32> to vector<8x16xf32>
      %1006 = vector.broadcast %1003 : f32 to vector<8x16xf32>
      %1007 = arith.mulf %1006, %1005 : vector<8x16xf32>
      %1008 = arith.addf %1001, %1007 : vector<8x16xf32>
      %1009 = arith.index_cast %939 : i32 to index
      %c10_610 = arith.constant 10 : index
      %1010 = memref.load %arg3[%1009, %c10_610] : memref<25x25xf32, #tpu.memory_space<smem>>
      %c10_611 = arith.constant 10 : index
      %c0_612 = arith.constant 0 : index
      %c0_613 = arith.constant 0 : index
      %1011 = vector.load %arg8[%c10_611, %c0_612, %c0_613] : memref<25x8x16xf32, #tpu.memory_space<vmem>>, vector<1x8x16xf32>
      %1012 = vector.shape_cast %1011 : vector<1x8x16xf32> to vector<8x16xf32>
      %1013 = vector.broadcast %1010 : f32 to vector<8x16xf32>
      %1014 = arith.mulf %1013, %1012 : vector<8x16xf32>
      %1015 = arith.addf %1008, %1014 : vector<8x16xf32>
      %1016 = arith.index_cast %939 : i32 to index
      %c11_614 = arith.constant 11 : index
      %1017 = memref.load %arg3[%1016, %c11_614] : memref<25x25xf32, #tpu.memory_space<smem>>
      %c11_615 = arith.constant 11 : index
      %c0_616 = arith.constant 0 : index
      %c0_617 = arith.constant 0 : index
      %1018 = vector.load %arg8[%c11_615, %c0_616, %c0_617] : memref<25x8x16xf32, #tpu.memory_space<vmem>>, vector<1x8x16xf32>
      %1019 = vector.shape_cast %1018 : vector<1x8x16xf32> to vector<8x16xf32>
      %1020 = vector.broadcast %1017 : f32 to vector<8x16xf32>
      %1021 = arith.mulf %1020, %1019 : vector<8x16xf32>
      %1022 = arith.addf %1015, %1021 : vector<8x16xf32>
      %1023 = arith.index_cast %939 : i32 to index
      %c12_618 = arith.constant 12 : index
      %1024 = memref.load %arg3[%1023, %c12_618] : memref<25x25xf32, #tpu.memory_space<smem>>
      %c12_619 = arith.constant 12 : index
      %c0_620 = arith.constant 0 : index
      %c0_621 = arith.constant 0 : index
      %1025 = vector.load %arg8[%c12_619, %c0_620, %c0_621] : memref<25x8x16xf32, #tpu.memory_space<vmem>>, vector<1x8x16xf32>
      %1026 = vector.shape_cast %1025 : vector<1x8x16xf32> to vector<8x16xf32>
      %1027 = vector.broadcast %1024 : f32 to vector<8x16xf32>
      %1028 = arith.mulf %1027, %1026 : vector<8x16xf32>
      %1029 = arith.addf %1022, %1028 : vector<8x16xf32>
      %1030 = arith.index_cast %939 : i32 to index
      %c13_622 = arith.constant 13 : index
      %1031 = memref.load %arg3[%1030, %c13_622] : memref<25x25xf32, #tpu.memory_space<smem>>
      %c13_623 = arith.constant 13 : index
      %c0_624 = arith.constant 0 : index
      %c0_625 = arith.constant 0 : index
      %1032 = vector.load %arg8[%c13_623, %c0_624, %c0_625] : memref<25x8x16xf32, #tpu.memory_space<vmem>>, vector<1x8x16xf32>
      %1033 = vector.shape_cast %1032 : vector<1x8x16xf32> to vector<8x16xf32>
      %1034 = vector.broadcast %1031 : f32 to vector<8x16xf32>
      %1035 = arith.mulf %1034, %1033 : vector<8x16xf32>
      %1036 = arith.addf %1029, %1035 : vector<8x16xf32>
      %1037 = arith.index_cast %939 : i32 to index
      %c14_626 = arith.constant 14 : index
      %1038 = memref.load %arg3[%1037, %c14_626] : memref<25x25xf32, #tpu.memory_space<smem>>
      %c14_627 = arith.constant 14 : index
      %c0_628 = arith.constant 0 : index
      %c0_629 = arith.constant 0 : index
      %1039 = vector.load %arg8[%c14_627, %c0_628, %c0_629] : memref<25x8x16xf32, #tpu.memory_space<vmem>>, vector<1x8x16xf32>
      %1040 = vector.shape_cast %1039 : vector<1x8x16xf32> to vector<8x16xf32>
      %1041 = vector.broadcast %1038 : f32 to vector<8x16xf32>
      %1042 = arith.mulf %1041, %1040 : vector<8x16xf32>
      %1043 = arith.addf %1036, %1042 : vector<8x16xf32>
      %1044 = arith.index_cast %939 : i32 to index
      %c15_630 = arith.constant 15 : index
      %1045 = memref.load %arg3[%1044, %c15_630] : memref<25x25xf32, #tpu.memory_space<smem>>
      %c15_631 = arith.constant 15 : index
      %c0_632 = arith.constant 0 : index
      %c0_633 = arith.constant 0 : index
      %1046 = vector.load %arg8[%c15_631, %c0_632, %c0_633] : memref<25x8x16xf32, #tpu.memory_space<vmem>>, vector<1x8x16xf32>
      %1047 = vector.shape_cast %1046 : vector<1x8x16xf32> to vector<8x16xf32>
      %1048 = vector.broadcast %1045 : f32 to vector<8x16xf32>
      %1049 = arith.mulf %1048, %1047 : vector<8x16xf32>
      %1050 = arith.addf %1043, %1049 : vector<8x16xf32>
      %1051 = arith.index_cast %939 : i32 to index
      %c16_634 = arith.constant 16 : index
      %1052 = memref.load %arg3[%1051, %c16_634] : memref<25x25xf32, #tpu.memory_space<smem>>
      %c16_635 = arith.constant 16 : index
      %c0_636 = arith.constant 0 : index
      %c0_637 = arith.constant 0 : index
      %1053 = vector.load %arg8[%c16_635, %c0_636, %c0_637] : memref<25x8x16xf32, #tpu.memory_space<vmem>>, vector<1x8x16xf32>
      %1054 = vector.shape_cast %1053 : vector<1x8x16xf32> to vector<8x16xf32>
      %1055 = vector.broadcast %1052 : f32 to vector<8x16xf32>
      %1056 = arith.mulf %1055, %1054 : vector<8x16xf32>
      %1057 = arith.addf %1050, %1056 : vector<8x16xf32>
      %1058 = arith.index_cast %939 : i32 to index
      %c17_638 = arith.constant 17 : index
      %1059 = memref.load %arg3[%1058, %c17_638] : memref<25x25xf32, #tpu.memory_space<smem>>
      %c17_639 = arith.constant 17 : index
      %c0_640 = arith.constant 0 : index
      %c0_641 = arith.constant 0 : index
      %1060 = vector.load %arg8[%c17_639, %c0_640, %c0_641] : memref<25x8x16xf32, #tpu.memory_space<vmem>>, vector<1x8x16xf32>
      %1061 = vector.shape_cast %1060 : vector<1x8x16xf32> to vector<8x16xf32>
      %1062 = vector.broadcast %1059 : f32 to vector<8x16xf32>
      %1063 = arith.mulf %1062, %1061 : vector<8x16xf32>
      %1064 = arith.addf %1057, %1063 : vector<8x16xf32>
      %1065 = arith.index_cast %939 : i32 to index
      %c18_642 = arith.constant 18 : index
      %1066 = memref.load %arg3[%1065, %c18_642] : memref<25x25xf32, #tpu.memory_space<smem>>
      %c18_643 = arith.constant 18 : index
      %c0_644 = arith.constant 0 : index
      %c0_645 = arith.constant 0 : index
      %1067 = vector.load %arg8[%c18_643, %c0_644, %c0_645] : memref<25x8x16xf32, #tpu.memory_space<vmem>>, vector<1x8x16xf32>
      %1068 = vector.shape_cast %1067 : vector<1x8x16xf32> to vector<8x16xf32>
      %1069 = vector.broadcast %1066 : f32 to vector<8x16xf32>
      %1070 = arith.mulf %1069, %1068 : vector<8x16xf32>
      %1071 = arith.addf %1064, %1070 : vector<8x16xf32>
      %1072 = arith.index_cast %939 : i32 to index
      %c19_646 = arith.constant 19 : index
      %1073 = memref.load %arg3[%1072, %c19_646] : memref<25x25xf32, #tpu.memory_space<smem>>
      %c19_647 = arith.constant 19 : index
      %c0_648 = arith.constant 0 : index
      %c0_649 = arith.constant 0 : index
      %1074 = vector.load %arg8[%c19_647, %c0_648, %c0_649] : memref<25x8x16xf32, #tpu.memory_space<vmem>>, vector<1x8x16xf32>
      %1075 = vector.shape_cast %1074 : vector<1x8x16xf32> to vector<8x16xf32>
      %1076 = vector.broadcast %1073 : f32 to vector<8x16xf32>
      %1077 = arith.mulf %1076, %1075 : vector<8x16xf32>
      %1078 = arith.addf %1071, %1077 : vector<8x16xf32>
      %1079 = arith.index_cast %939 : i32 to index
      %c20_650 = arith.constant 20 : index
      %1080 = memref.load %arg3[%1079, %c20_650] : memref<25x25xf32, #tpu.memory_space<smem>>
      %c20_651 = arith.constant 20 : index
      %c0_652 = arith.constant 0 : index
      %c0_653 = arith.constant 0 : index
      %1081 = vector.load %arg8[%c20_651, %c0_652, %c0_653] : memref<25x8x16xf32, #tpu.memory_space<vmem>>, vector<1x8x16xf32>
      %1082 = vector.shape_cast %1081 : vector<1x8x16xf32> to vector<8x16xf32>
      %1083 = vector.broadcast %1080 : f32 to vector<8x16xf32>
      %1084 = arith.mulf %1083, %1082 : vector<8x16xf32>
      %1085 = arith.addf %1078, %1084 : vector<8x16xf32>
      %1086 = arith.index_cast %939 : i32 to index
      %c21_654 = arith.constant 21 : index
      %1087 = memref.load %arg3[%1086, %c21_654] : memref<25x25xf32, #tpu.memory_space<smem>>
      %c21_655 = arith.constant 21 : index
      %c0_656 = arith.constant 0 : index
      %c0_657 = arith.constant 0 : index
      %1088 = vector.load %arg8[%c21_655, %c0_656, %c0_657] : memref<25x8x16xf32, #tpu.memory_space<vmem>>, vector<1x8x16xf32>
      %1089 = vector.shape_cast %1088 : vector<1x8x16xf32> to vector<8x16xf32>
      %1090 = vector.broadcast %1087 : f32 to vector<8x16xf32>
      %1091 = arith.mulf %1090, %1089 : vector<8x16xf32>
      %1092 = arith.addf %1085, %1091 : vector<8x16xf32>
      %1093 = arith.index_cast %939 : i32 to index
      %c22_658 = arith.constant 22 : index
      %1094 = memref.load %arg3[%1093, %c22_658] : memref<25x25xf32, #tpu.memory_space<smem>>
      %c22_659 = arith.constant 22 : index
      %c0_660 = arith.constant 0 : index
      %c0_661 = arith.constant 0 : index
      %1095 = vector.load %arg8[%c22_659, %c0_660, %c0_661] : memref<25x8x16xf32, #tpu.memory_space<vmem>>, vector<1x8x16xf32>
      %1096 = vector.shape_cast %1095 : vector<1x8x16xf32> to vector<8x16xf32>
      %1097 = vector.broadcast %1094 : f32 to vector<8x16xf32>
      %1098 = arith.mulf %1097, %1096 : vector<8x16xf32>
      %1099 = arith.addf %1092, %1098 : vector<8x16xf32>
      %1100 = arith.index_cast %939 : i32 to index
      %c23_662 = arith.constant 23 : index
      %1101 = memref.load %arg3[%1100, %c23_662] : memref<25x25xf32, #tpu.memory_space<smem>>
      %c23_663 = arith.constant 23 : index
      %c0_664 = arith.constant 0 : index
      %c0_665 = arith.constant 0 : index
      %1102 = vector.load %arg8[%c23_663, %c0_664, %c0_665] : memref<25x8x16xf32, #tpu.memory_space<vmem>>, vector<1x8x16xf32>
      %1103 = vector.shape_cast %1102 : vector<1x8x16xf32> to vector<8x16xf32>
      %1104 = vector.broadcast %1101 : f32 to vector<8x16xf32>
      %1105 = arith.mulf %1104, %1103 : vector<8x16xf32>
      %1106 = arith.addf %1099, %1105 : vector<8x16xf32>
      %1107 = arith.index_cast %939 : i32 to index
      %c24_666 = arith.constant 24 : index
      %1108 = memref.load %arg3[%1107, %c24_666] : memref<25x25xf32, #tpu.memory_space<smem>>
      %c24_667 = arith.constant 24 : index
      %c0_668 = arith.constant 0 : index
      %c0_669 = arith.constant 0 : index
      %1109 = vector.load %arg8[%c24_667, %c0_668, %c0_669] : memref<25x8x16xf32, #tpu.memory_space<vmem>>, vector<1x8x16xf32>
      %1110 = vector.shape_cast %1109 : vector<1x8x16xf32> to vector<8x16xf32>
      %1111 = vector.broadcast %1108 : f32 to vector<8x16xf32>
      %1112 = arith.mulf %1111, %1110 : vector<8x16xf32>
      %1113 = arith.addf %1106, %1112 : vector<8x16xf32>
      %1114 = arith.index_cast %939 : i32 to index
      %1115 = memref.load %arg4[%1114] : memref<25xf32, #tpu.memory_space<smem>>
      %1116 = vector.broadcast %1115 : f32 to vector<8x16xf32>
      %1117 = arith.addf %1113, %1116 : vector<8x16xf32>
      %cst_670 = arith.constant 0.000000e+00 : f32
      %1118 = vector.broadcast %cst_670 : f32 to vector<8x16xf32>
      %1119 = arith.maximumf %1117, %1118 : vector<8x16xf32>
      %1120 = arith.index_cast %939 : i32 to index
      %1121 = memref.load %arg5[%1120] : memref<25xf32, #tpu.memory_space<smem>>
      %1122 = vector.broadcast %1121 : f32 to vector<8x16xf32>
      %1123 = arith.mulf %1122, %1119 : vector<8x16xf32>
      %1124 = arith.addf %937, %1123 : vector<8x16xf32>
      scf.yield %1124 : vector<8x16xf32>
    }
    %c5_i32_154 = arith.constant 5 : i32
    %c8_i32_155 = arith.constant 8 : i32
    %185 = arith.muli %2, %c8_i32_155 : i32
    %c0_156 = arith.constant 0 : index
    %186 = arith.index_cast %185 : i32 to index
    %c0_157 = arith.constant 0 : index
    %187 = vector.load %arg7[%c0_156, %186, %c0_157] : memref<1x8x16xf32, #tpu.memory_space<vmem>>, vector<1x8x16xf32>
    %188 = vector.shape_cast %187 : vector<1x8x16xf32> to vector<8x16xf32>
    %189 = vector.shape_cast %184 : vector<8x16xf32> to vector<1x8x16xf32>
    tpu.vector_store %arg7[%c0_156, %186, %c0_157], %189 {strides = array<i32>} : memref<1x8x16xf32, #tpu.memory_space<vmem>>, vector<1x8x16xf32>,
    %c1_i32_158 = arith.constant 1 : i32
    return
  }
  func.func @transform_0(%arg0: i32, %arg1: i32) -> (i32, i32, i32, i32) {
    %c0_i32 = arith.constant 0 : i32
    %c0_i32_0 = arith.constant 0 : i32
    %c0_i32_1 = arith.constant 0 : i32
    %c0_i32_2 = arith.constant 0 : i32
    return %arg0, %c0_i32, %c0_i32_0, %c0_i32_1 : i32, i32, i32, i32
  }
  func.func @transform_1(%arg0: i32, %arg1: i32) -> (i32, i32) {
    %c0_i32 = arith.constant 0 : i32
    %c0_i32_0 = arith.constant 0 : i32
    %c0_i32_1 = arith.constant 0 : i32
    return %c0_i32, %c0_i32_0 : i32, i32
  }
  func.func @transform_2(%arg0: i32, %arg1: i32) -> i32 {
    %c0_i32 = arith.constant 0 : i32
    %c0_i32_0 = arith.constant 0 : i32
    return %c0_i32 : i32
  }
  func.func @transform_3(%arg0: i32, %arg1: i32) -> i32 {
    %c0_i32 = arith.constant 0 : i32
    %c0_i32_0 = arith.constant 0 : i32
    return %c0_i32 : i32
  }
  func.func @transform_4(%arg0: i32, %arg1: i32) -> i32 {
    %c0_i32 = arith.constant 0 : i32
    %c0_i32_0 = arith.constant 0 : i32
    return %c0_i32 : i32
  }
  func.func @transform_5(%arg0: i32, %arg1: i32) -> (i32, i32, i32) {
    %c0_i32 = arith.constant 0 : i32
    %c0_i32_0 = arith.constant 0 : i32
    return %arg0, %arg1, %c0_i32 : i32, i32, i32
  }
}

</mosaic_0001>

<llo_original>
// kernel: tpu_custom_call.1
$region0: #{tpu_custom_call.1}
  #allocation0 [shape = 'u32[]', space=smem, size = 0x4, offset = 0x4, fixed_abs, tag = 'smem constant byte address 0x4 - core index']
  #allocation1 [shape = 'u32[144,128]{1,0:T(1,128)}', space=vmem, size = 0x12000, scoped, tag = 'internal scratch']
  #allocation2 [shape = 'f32[25,8,16]{2,1,0:T(8,128)}', space=vmem, size = 0x19000, scoped, tag = 'scratch operand']
  #allocation3 [shape = 'f32[1]{0:T(128)S(6)}', space=smem, size = 0x200, scoped, tag = 'scoped memory for tpu_custom_call.1']
  %s0 = inlined_call_operand.vmem [shape: f32[2,4,18,18], index: 0, kind: input, shape index: {}]
  %s1 = inlined_call_operand.vmem [shape: f32[25,25], index: 1, kind: input, shape index: {}]
  %s2 = inlined_call_operand.vmem [shape: f32[25], index: 2, kind: input, shape index: {}]
  %s3 = inlined_call_operand.vmem [shape: f32[25], index: 3, kind: input, shape index: {}]
  %s4 = inlined_call_operand.<no memory space> [shape: f32[1], index: 4, kind: input, shape index: {}]
  %s5 = inlined_call_operand.hbm [shape: f32[2,16,16], index: 5, kind: output, shape index: {}]
  %s6 = sld [smem:[#allocation0]]
  $region72: #{tpu_custom_call.1} parent=0
    _
  %s8 = ssub.s32 1, %s6
  %s9 = scalar_select 0, %s8, %s6
  %10 = sst [smem:[#allocation3]] %s4
  $region1: #{tpu_custom_call.1} parent=0
    #allocation4 [shape = 'u8[16384]{0}', space=smem, size = 0x4000, scoped, tag = 'input window, operand 1, single buffered']
    #allocation5 [shape = 's32[2]{0}', space=sflag, size = 0x8, scoped, tag = 'scoped memory for tpu_custom_call.1']
    #allocation6 [shape = 's32[2]{0}', space=sflag, size = 0x8, scoped, tag = 'scoped memory for tpu_custom_call.1']
    #allocation7 [shape = 'u8[512]{0}', space=smem, size = 0x200, scoped, tag = 'input window, operand 2, single buffered']
    #allocation8 [shape = 's32[1]{0}', space=sflag, size = 0x4, scoped, tag = 'scoped memory for tpu_custom_call.1']
    #allocation9 [shape = 'u8[512]{0}', space=smem, size = 0x200, scoped, tag = 'input window, operand 3, single buffered']
    #allocation10 [shape = 'u8[8192]{0}', space=vmem, size = 0x2000, scoped, tag = 'output window, operand 0']
    %11 = vsyncpa [#allocation6], 0
    %12 = vsyncpa [#allocation8], 0
    %13 = vsyncpa [#allocation5], 0
    %s14 = scalar_lea.sflag [#allocation5], 1
    %15 = vsyncpa %s14, 0
    loop: start=0, step=1, limit=6
    $region2: #{tpu_custom_call.1} parent=1 // loop_pre_header
      _
    $region3: #{tpu_custom_call.1} parent=1 // loop_header
      %s17 = sphi 0, %s21
      %p18 = scmp.ge.s32.totalorder %s17, 6
      %s24 = sphi 0, %s36
      %s25 = sphi 0, %s32
      %s26 = sphi 0, %s24
      %s27 = sphi 0, %s25
      %s28 = sphi 0, %s26
      %s29 = sphi 0, %s27
      %s39 = sphi 0, %s41
      %s42 = sphi 0, %s39
      %s43 = sphi 0, %s42
      %s59 = sphi 0, %s43
      %s63 = sphi 0, %s63
      %s65 = sphi 0, %s63
      %s66 = sphi 0, %s65
      %s80 = sphi 0, %s66
      %s84 = sphi 0, %s84
      %s86 = sphi 0, %s84
      %s87 = sphi 0, %s86
      %s101 = sphi 0, %s87
      %s105 = sphi 0, %s105
      %s107 = sphi 0, %s105
      %s108 = sphi 0, %s107
      %s122 = sphi 0, %s108
      %s126 = sphi 0, %s126
      %s128 = sphi 0, %s126
      %s129 = sphi 0, %s128
      %s143 = sphi 0, %s129
      %s151 = sphi 0, %s153
      %s154 = sphi 0, %s151
      %s155 = sphi 0, %s154
      %s171 = sphi 0, %s155
    $region4: #{tpu_custom_call.1} parent=1 // loop_header_branch
      %20 = sbr.rel (%p18) target = $region8
    $region5: #{tpu_custom_call.1} parent=1 // loop_body
      %s22 = ssub.s32 %s17, 1
      %s23 = ssub.s32 %s17, 2
      %s30 = sadd.s32 1, %s25
      %p31 = scmp.ge.s32.totalorder %s30, 2
      %s32 = scalar_select %p31, 0, %s30
      %s33 = sadd.s32 1, %s24
      %s34 = scalar_select %p31, %s33, %s24
      %p35 = scmp.ge.s32.totalorder %s34, 2
      %s36 = scalar_select %p35, 0, %s34
      %s37 = ssub.s32 %s24, %s36
      %p38 = scmp.eq.s32.totalorder %s37, 0
      %s40 = sadd.s32 %s39, 1
      %s41 = scalar_select %p38, %s39, %s40
      %p44 = pneg %p38
      %p45 = scmp.eq.s32.totalorder %s17, 3
      %p46 = por %p44, %p45
      %p47 = scmp.ne.s32.totalorder %s39, %s42
      %p48 = scmp.eq.s32.totalorder %s17, 0
      %p49 = por %p47, %p48
      %p50 = scmp.ne.s32.totalorder %s39, %s42
      %p51 = scmp.eq.s32.totalorder %s22, 3
      %p52 = por %p50, %p51
      %p53 = scmp.ne.s32.totalorder %s42, %s43
      %p54 = scmp.eq.s32.totalorder %s22, 0
      %p55 = por %p53, %p54
      %p56 = scmp.ne.s32.totalorder %s42, %s43
      %p57 = scmp.eq.s32.totalorder %s23, 3
      %p58 = por %p56, %p57
      %p60 = scmp.ne.s32.totalorder %s43, %s59
      %p61 = scmp.eq.s32.totalorder %s23, 0
      %p62 = por %p60, %p61
      %s64 = sadd.s32 %s63, 1
      %p67 = scmp.eq.s32.totalorder %s17, 3
      %p68 = scmp.ne.s32.totalorder %s63, %s65
      %p69 = scmp.eq.s32.totalorder %s17, 0
      %p70 = por %p68, %p69
      %p71 = scmp.ne.s32.totalorder %s63, %s65
      %p72 = scmp.eq.s32.totalorder %s22, 3
      %p73 = por %p71, %p72
      %p74 = scmp.ne.s32.totalorder %s65, %s66
      %p75 = scmp.eq.s32.totalorder %s22, 0
      %p76 = por %p74, %p75
      %p77 = scmp.ne.s32.totalorder %s65, %s66
      %p78 = scmp.eq.s32.totalorder %s23, 3
      %p79 = por %p77, %p78
      %p81 = scmp.ne.s32.totalorder %s66, %s80
      %p82 = scmp.eq.s32.totalorder %s23, 0
      %p83 = por %p81, %p82
      %s85 = sadd.s32 %s84, 1
      %p88 = scmp.eq.s32.totalorder %s17, 3
      %p89 = scmp.ne.s32.totalorder %s84, %s86
      %p90 = scmp.eq.s32.totalorder %s17, 0
      %p91 = por %p89, %p90
      %p92 = scmp.ne.s32.totalorder %s84, %s86
      %p93 = scmp.eq.s32.totalorder %s22, 3
      %p94 = por %p92, %p93
      %p95 = scmp.ne.s32.totalorder %s86, %s87
      %p96 = scmp.eq.s32.totalorder %s22, 0
      %p97 = por %p95, %p96
      %p98 = scmp.ne.s32.totalorder %s86, %s87
      %p99 = scmp.eq.s32.totalorder %s23, 3
      %p100 = por %p98, %p99
      %p102 = scmp.ne.s32.totalorder %s87, %s101
      %p103 = scmp.eq.s32.totalorder %s23, 0
      %p104 = por %p102, %p103
      %s106 = sadd.s32 %s105, 1
      %p109 = scmp.eq.s32.totalorder %s17, 3
      %p110 = scmp.ne.s32.totalorder %s105, %s107
      %p111 = scmp.eq.s32.totalorder %s17, 0
      %p112 = por %p110, %p111
      %p113 = scmp.ne.s32.totalorder %s105, %s107
      %p114 = scmp.eq.s32.totalorder %s22, 3
      %p115 = por %p113, %p114
      %p116 = scmp.ne.s32.totalorder %s107, %s108
      %p117 = scmp.eq.s32.totalorder %s22, 0
      %p118 = por %p116, %p117
      %p119 = scmp.ne.s32.totalorder %s107, %s108
      %p120 = scmp.eq.s32.totalorder %s23, 3
      %p121 = por %p119, %p120
      %p123 = scmp.ne.s32.totalorder %s108, %s122
      %p124 = scmp.eq.s32.totalorder %s23, 0
      %p125 = por %p123, %p124
      %s127 = sadd.s32 %s126, 1
      %p130 = scmp.eq.s32.totalorder %s17, 3
      %p131 = scmp.ne.s32.totalorder %s126, %s128
      %p132 = scmp.eq.s32.totalorder %s17, 0
      %p133 = por %p131, %p132
      %p134 = scmp.ne.s32.totalorder %s126, %s128
      %p135 = scmp.eq.s32.totalorder %s22, 3
      %p136 = por %p134, %p135
      %p137 = scmp.ne.s32.totalorder %s128, %s129
      %p138 = scmp.eq.s32.totalorder %s22, 0
      %p139 = por %p137, %p138
      %p140 = scmp.ne.s32.totalorder %s128, %s129
      %p141 = scmp.eq.s32.totalorder %s23, 3
      %p142 = por %p140, %p141
      %p144 = scmp.ne.s32.totalorder %s129, %s143
      %p145 = scmp.eq.s32.totalorder %s23, 0
      %p146 = por %p144, %p145
      %s147 = ssub.s32 %s24, %s36
      %s148 = ssub.s32 %s25, %s32
      %s149 = sor.u32 %s147, %s148
      %p150 = scmp.eq.s32.totalorder %s149, 0
      %s152 = sadd.s32 %s151, 1
      %s153 = scalar_select %p150, %s151, %s152
      %p156 = pneg %p150
      %p157 = scmp.eq.s32.totalorder %s17, 3
      %p158 = por %p156, %p157
      %p159 = scmp.ne.s32.totalorder %s151, %s154
      %p160 = scmp.eq.s32.totalorder %s17, 0
      %p161 = por %p159, %p160
      %p162 = scmp.ne.s32.totalorder %s151, %s154
      %p163 = scmp.eq.s32.totalorder %s22, 3
      %p164 = por %p162, %p163
      %p165 = scmp.ne.s32.totalorder %s154, %s155
      %p166 = scmp.eq.s32.totalorder %s22, 0
      %p167 = por %p165, %p166
      %p168 = scmp.ne.s32.totalorder %s154, %s155
      %p169 = scmp.eq.s32.totalorder %s23, 3
      %p170 = por %p168, %p169
      %p172 = scmp.ne.s32.totalorder %s155, %s171
      %p173 = scmp.eq.s32.totalorder %s23, 0
      %p174 = por %p172, %p173
      %p175 = scmp.le.s32.totalorder 1, %s17
      %p176 = scmp.lt.s32.totalorder %s17, 5
      %p177 = pnand %p175, %p176
      %p178 = pneg %p177
      // Predicated region
      $region9: #{tpu_custom_call.1} parent=5 // pred_check
        _
      $region10: #{tpu_custom_call.1} parent=5 // pred_check_branch
        %180 = sbr.rel (%p177) target = $region12
      $region11: #{tpu_custom_call.1} parent=5 // pred_region
        %s181 = ssub.s32 %s17, 1
        // Predicated region
        $region13: #{tpu_custom_call.1} parent=11 // pred_check
          %p182 = pneg %p76
        $region14: #{tpu_custom_call.1} parent=11 // pred_check_branch
          %184 = sbr.rel (%p182) target = $region16
        $region15: #{tpu_custom_call.1} parent=11 // pred_region
          %s186 = ssub.s32 512, 512
          %187 = vsyncadd [#allocation6], %s186
          %s188 = sshll.u32 %s1, 4
          %s189 = int_to_ptr.vmem [resolvable:$true] %s188
          %194 = dma.vmem_to_smem %s189, 512, [#allocation4], [#allocation6], 128, 128, 8
        $region16: #{tpu_custom_call.1} parent=11 // pred_fallthru
          _
        // Predicated region
        $region17: #{tpu_custom_call.1} parent=11 // pred_check
          %p195 = pneg %p97
        $region18: #{tpu_custom_call.1} parent=11 // pred_check_branch
          %197 = sbr.rel (%p195) target = $region20
        $region19: #{tpu_custom_call.1} parent=11 // pred_region
          %s199 = ssub.s32 16, 16
          %200 = vsyncadd [#allocation8], %s199
          %s202 = sshll.u32 %s2, 4
          %s203 = int_to_ptr.vmem [resolvable:$true] %s202
          %205 = dma.vmem_to_smem %s203, 16, [#allocation7], [#allocation8]
        $region20: #{tpu_custom_call.1} parent=11 // pred_fallthru
          _
        // Predicated region
        $region21: #{tpu_custom_call.1} parent=11 // pred_check
          %p206 = pneg %p118
        $region22: #{tpu_custom_call.1} parent=11 // pred_check_branch
          %208 = sbr.rel (%p206) target = $region24
        $region23: #{tpu_custom_call.1} parent=11 // pred_region
          %s210 = ssub.s32 16, 16
          %211 = vsyncadd [#allocation8], %s210
          %s213 = sshll.u32 %s3, 4
          %s214 = int_to_ptr.vmem [resolvable:$true] %s213
          %216 = dma.vmem_to_smem %s214, 16, [#allocation9], [#allocation8]
        $region24: #{tpu_custom_call.1} parent=11 // pred_fallthru
          _
        // Predicated region
        $region25: #{tpu_custom_call.1} parent=11 // pred_check
          %p217 = pneg %p139
        $region26: #{tpu_custom_call.1} parent=11 // pred_check_branch
          %219 = sbr.rel (%p217) target = $region28
        $region27: #{tpu_custom_call.1} parent=11 // pred_region
          _
        $region28: #{tpu_custom_call.1} parent=11 // pred_fallthru
          _
      $region12: #{tpu_custom_call.1} parent=5 // pred_fallthru
        _
      %p220 = scmp.lt.s32.totalorder %s17, 4
      // Predicated region
      $region29: #{tpu_custom_call.1} parent=5 // pred_check
        %p221 = pneg %p220
      $region30: #{tpu_custom_call.1} parent=5 // pred_check_branch
        %223 = sbr.rel (%p221) target = $region32
      $region31: #{tpu_custom_call.1} parent=5 // pred_region
        // Predicated region
        $region33: #{tpu_custom_call.1} parent=31 // pred_check
          %p224 = pneg %p49
        $region34: #{tpu_custom_call.1} parent=31 // pred_check_branch
          %226 = sbr.rel (%p224) target = $region36
        $region35: #{tpu_custom_call.1} parent=31 // pred_region
          %p227 = scmp.lt.s32.totalorder %s24, 1
          %s228 = scalar_select %p227, %s24, 1
          %s229 = smul.addr %s228, 12
          %s230 = smul.addr %s229, 8
          %s231 = scalar_lea.vmem %s0, %s230
        $region36: #{tpu_custom_call.1} parent=31 // pred_fallthru
          _
      $region32: #{tpu_custom_call.1} parent=5 // pred_fallthru
        _
      %p232 = scmp.le.s32.totalorder 1, %s17
      %p233 = scmp.lt.s32.totalorder %s17, 5
      %p234 = pnand %p232, %p233
      %p235 = pneg %p234
      // Predicated region
      $region37: #{tpu_custom_call.1} parent=5 // pred_check
        _
      $region38: #{tpu_custom_call.1} parent=5 // pred_check_branch
        %237 = sbr.rel (%p234) target = $region40
      $region39: #{tpu_custom_call.1} parent=5 // pred_region
        %s238 = ssub.s32 %s17, 1
        // Predicated region
        $region41: #{tpu_custom_call.1} parent=39 // pred_check
          %p239 = pneg %p76
        $region42: #{tpu_custom_call.1} parent=39 // pred_check_branch
          %241 = sbr.rel (%p239) target = $region44
        $region43: #{tpu_custom_call.1} parent=39 // pred_region
          %242 = dma.done [#allocation6], 512
        $region44: #{tpu_custom_call.1} parent=39 // pred_fallthru
          _
        // Predicated region
        $region45: #{tpu_custom_call.1} parent=39 // pred_check
          %p243 = pneg %p97
        $region46: #{tpu_custom_call.1} parent=39 // pred_check_branch
          %245 = sbr.rel (%p243) target = $region48
        $region47: #{tpu_custom_call.1} parent=39 // pred_region
          %246 = dma.done [#allocation8], 16
        $region48: #{tpu_custom_call.1} parent=39 // pred_fallthru
          _
        // Predicated region
        $region49: #{tpu_custom_call.1} parent=39 // pred_check
          %p247 = pneg %p118
        $region50: #{tpu_custom_call.1} parent=39 // pred_check_branch
          %249 = sbr.rel (%p247) target = $region52
        $region51: #{tpu_custom_call.1} parent=39 // pred_region
          %250 = dma.done [#allocation8], 16
        $region52: #{tpu_custom_call.1} parent=39 // pred_fallthru
          _
        %251 = sfence
        %p252 = scmp.lt.s32.totalorder %s26, 1
        %s253 = scalar_select %p252, %s26, 1
        %s254 = smul.addr %s253, 12
        %s255 = smul.addr %s254, 8
        %s256 = scalar_lea.vmem %s0, %s255
        %p257 = pneg %p55
        %p258 = pneg %p52
        %p259 = pneg %p76
        %p260 = pneg %p73
        %p261 = pneg %p97
        %p262 = pneg %p94
        %p263 = pneg %p118
        %p264 = pneg %p115
        %p265 = pneg %p139
        %p266 = pneg %p136
        %p267 = pneg %p167
        %p268 = pneg %p164
        %s269 = sand.u32 %s154, 1
        %s270 = scalar_lea.sflag [#allocation5], %s269
        %s271 = sand.u32 %s154, 1
        %s272 = smul.addr %s271, 8
        %s273 = scalar_lea.vmem [#allocation10], %s272
        %p274 = scmp.lt.s32.totalorder %s26, 1
        %s275 = scalar_select %p274, %s26, 1
        %s276 = smul.addr %s275, 12
        %s277 = smul.addr %s276, 8
        %s278 = scalar_lea.vmem %s0, %s277
        %s279 = smul.u32 %s27, 8
        %s280 = scalar_lea.vmem %s278, %s279
        %v281 = vld [vmem:[%s280] sm:$0xff]
        %vm282 = vcmask 130048
        %283 = vst.msk [vmem:[#allocation2] sm:$0xff] %vm282, %v281
        %s284 = sadd.s32 %s279, 24
        %s285 = scalar_lea.vmem %s278, %s284
        %v286 = vld [vmem:[%s285] sm:$0xff]
        %s287 = scalar_lea.vmem [#allocation2], 8
        %288 = vst.msk [vmem:[%s287] sm:$0xff] %vm282, %v286
        %v289 = vld [vmem:[%s280] sm:$0xff]
        %291 = vrot.lane.b32.xlu0 %v289, 127
        %v292 = vpop.permute.xlu0 %291
        %s294 = scalar_lea.vmem [#allocation2], 16
        %295 = vst.msk [vmem:[%s294] sm:$0xff] %vm282, %v292
        %v296 = vld [vmem:[%s285] sm:$0xff]
        %298 = vrot.lane.b32.xlu0 %v296, 127
        %v299 = vpop.permute.xlu0 %298
        %s301 = scalar_lea.vmem [#allocation2], 24
        %302 = vst.msk [vmem:[%s301] sm:$0xff] %vm282, %v299
        %v303 = vld [vmem:[%s280] sm:$0xff]
        %305 = vrot.lane.b32.xlu0 %v303, 126
        %v306 = vpop.permute.xlu0 %305
        %s308 = scalar_lea.vmem [#allocation2], 32
        %309 = vst.msk [vmem:[%s308] sm:$0xff] %vm282, %v306
        %s310 = sadd.s32 %s279, 48
        %s311 = scalar_lea.vmem %s278, %s310
        %v312 = vld [vmem:[%s311] sm:$0xff]
        %s313 = scalar_lea.vmem [#allocation2], 40
        %314 = vst.msk [vmem:[%s313] sm:$0xff] %vm282, %v312
        %s315 = sadd.s32 %s279, 72
        %s316 = scalar_lea.vmem %s278, %s315
        %v317 = vld [vmem:[%s316] sm:$0xff]
        %s318 = scalar_lea.vmem [#allocation2], 48
        %319 = vst.msk [vmem:[%s318] sm:$0xff] %vm282, %v317
        %v320 = vld [vmem:[%s311] sm:$0xff]
        %322 = vrot.lane.b32.xlu0 %v320, 127
        %v323 = vpop.permute.xlu0 %322
        %s325 = scalar_lea.vmem [#allocation2], 56
        %326 = vst.msk [vmem:[%s325] sm:$0xff] %vm282, %v323
        %v327 = vld [vmem:[%s316] sm:$0xff]
        %329 = vrot.lane.b32.xlu0 %v327, 127
        %v330 = vpop.permute.xlu0 %329
        %s332 = scalar_lea.vmem [#allocation2], 64
        %333 = vst.msk [vmem:[%s332] sm:$0xff] %vm282, %v330
        %v334 = vld [vmem:[%s311] sm:$0xff]
        %336 = vrot.lane.b32.xlu0 %v334, 126
        %v337 = vpop.permute.xlu0 %336
        %s339 = scalar_lea.vmem [#allocation2], 72
        %340 = vst.msk [vmem:[%s339] sm:$0xff] %vm282, %v337
        %s341 = sadd.s32 %s279, 1
        %s342 = scalar_lea.vmem %s278, %s341
        %v343 = vld [vmem:[%s342] sm:$0xff]
        %s344 = scalar_lea.vmem [#allocation2], 80
        %345 = vst.msk [vmem:[%s344] sm:$0xff] %vm282, %v343
        %s346 = sadd.s32 %s341, 24
        %s347 = scalar_lea.vmem %s278, %s346
        %v348 = vld [vmem:[%s347] sm:$0xff]
        %s349 = scalar_lea.vmem [#allocation2], 88
        %350 = vst.msk [vmem:[%s349] sm:$0xff] %vm282, %v348
        %v351 = vld [vmem:[%s342] sm:$0xff]
        %353 = vrot.lane.b32.xlu0 %v351, 127
        %v354 = vpop.permute.xlu0 %353
        %s356 = scalar_lea.vmem [#allocation2], 96
        %357 = vst.msk [vmem:[%s356] sm:$0xff] %vm282, %v354
        %v358 = vld [vmem:[%s347] sm:$0xff]
        %360 = vrot.lane.b32.xlu0 %v358, 127
        %v361 = vpop.permute.xlu0 %360
        %s363 = scalar_lea.vmem [#allocation2], 104
        %364 = vst.msk [vmem:[%s363] sm:$0xff] %vm282, %v361
        %v365 = vld [vmem:[%s342] sm:$0xff]
        %367 = vrot.lane.b32.xlu0 %v365, 126
        %v368 = vpop.permute.xlu0 %367
        %s370 = scalar_lea.vmem [#allocation2], 112
        %371 = vst.msk [vmem:[%s370] sm:$0xff] %vm282, %v368
        %s372 = sadd.s32 %s341, 48
        %s373 = scalar_lea.vmem %s278, %s372
        %v374 = vld [vmem:[%s373] sm:$0xff]
        %s375 = scalar_lea.vmem [#allocation2], 120
        %376 = vst.msk [vmem:[%s375] sm:$0xff] %vm282, %v374
        %s377 = sadd.s32 %s341, 72
        %s378 = scalar_lea.vmem %s278, %s377
        %v379 = vld [vmem:[%s378] sm:$0xff]
        %s380 = scalar_lea.vmem [#allocation2], 128
        %381 = vst.msk [vmem:[%s380] sm:$0xff] %vm282, %v379
        %v382 = vld [vmem:[%s373] sm:$0xff]
        %384 = vrot.lane.b32.xlu0 %v382, 127
        %v385 = vpop.permute.xlu0 %384
        %s387 = scalar_lea.vmem [#allocation2], 136
        %388 = vst.msk [vmem:[%s387] sm:$0xff] %vm282, %v385
        %v389 = vld [vmem:[%s378] sm:$0xff]
        %391 = vrot.lane.b32.xlu0 %v389, 127
        %v392 = vpop.permute.xlu0 %391
        %s394 = scalar_lea.vmem [#allocation2], 144
        %395 = vst.msk [vmem:[%s394] sm:$0xff] %vm282, %v392
        %v396 = vld [vmem:[%s373] sm:$0xff]
        %398 = vrot.lane.b32.xlu0 %v396, 126
        %v399 = vpop.permute.xlu0 %398
        %s401 = scalar_lea.vmem [#allocation2], 152
        %402 = vst.msk [vmem:[%s401] sm:$0xff] %vm282, %v399
        %s403 = sadd.s32 %s279, 2
        %s404 = scalar_lea.vmem %s278, %s403
        %v405 = vld [vmem:[%s404] sm:$0xff]
        %s406 = scalar_lea.vmem [#allocation2], 160
        %407 = vst.msk [vmem:[%s406] sm:$0xff] %vm282, %v405
        %s408 = sadd.s32 %s403, 24
        %s409 = scalar_lea.vmem %s278, %s408
        %v410 = vld [vmem:[%s409] sm:$0xff]
        %s411 = scalar_lea.vmem [#allocation2], 168
        %412 = vst.msk [vmem:[%s411] sm:$0xff] %vm282, %v410
        %v413 = vld [vmem:[%s404] sm:$0xff]
        %415 = vrot.lane.b32.xlu0 %v413, 127
        %v416 = vpop.permute.xlu0 %415
        %s418 = scalar_lea.vmem [#allocation2], 176
        %419 = vst.msk [vmem:[%s418] sm:$0xff] %vm282, %v416
        %v420 = vld [vmem:[%s409] sm:$0xff]
        %422 = vrot.lane.b32.xlu0 %v420, 127
        %v423 = vpop.permute.xlu0 %422
        %s425 = scalar_lea.vmem [#allocation2], 184
        %426 = vst.msk [vmem:[%s425] sm:$0xff] %vm282, %v423
        %v427 = vld [vmem:[%s404] sm:$0xff]
        %429 = vrot.lane.b32.xlu0 %v427, 126
        %v430 = vpop.permute.xlu0 %429
        %s432 = scalar_lea.vmem [#allocation2], 192
        %433 = vst.msk [vmem:[%s432] sm:$0xff] %vm282, %v430
        %s434 = sld [smem:[#allocation3]]
        %v435 = vstv %s434
        loop: start=0, step=1, limit=5
        $region53: #{tpu_custom_call.1} parent=39 // loop_pre_header
          _
        $region54: #{tpu_custom_call.1} parent=39 // loop_header
          %s437 = sphi 0, %s441
          %p438 = scmp.ge.s32.totalorder %s437, 5
          %v442 = vphi %v435, %v1132
        $region55: #{tpu_custom_call.1} parent=39 // loop_header_branch
          %440 = sbr.rel (%p438) target = $region59
        $region56: #{tpu_custom_call.1} parent=39 // loop_body
          %s443 = smul.u32 %s437, 5
          %s444 = smul.u32 %s443, 128
          %s445 = sld [smem:[#allocation4 + %s444]]
          %v446 = vld [vmem:[#allocation2] sm:$0xff]
          %v447 = vstv %s445
          %v448 = vmul.f32 %v447, %v446
          %s449 = sadd.s32 %s444, 1
          %s450 = sld [smem:[#allocation4 + %s449]]
          %v451 = vld [vmem:[%s287] sm:$0xff]
          %v452 = vstv %s450
          %v453 = vmul.f32 %v452, %v451
          %v454 = vadd.f32 %v448, %v453
          %s455 = sadd.s32 %s444, 2
          %s456 = sld [smem:[#allocation4 + %s455]]
          %v457 = vld [vmem:[%s294] sm:$0xff]
          %v458 = vstv %s456
          %v459 = vmul.f32 %v458, %v457
          %v460 = vadd.f32 %v454, %v459
          %s461 = sadd.s32 %s444, 3
          %s462 = sld [smem:[#allocation4 + %s461]]
          %v463 = vld [vmem:[%s301] sm:$0xff]
          %v464 = vstv %s462
          %v465 = vmul.f32 %v464, %v463
          %v466 = vadd.f32 %v460, %v465
          %s467 = sadd.s32 %s444, 4
          %s468 = sld [smem:[#allocation4 + %s467]]
          %v469 = vld [vmem:[%s308] sm:$0xff]
          %v470 = vstv %s468
          %v471 = vmul.f32 %v470, %v469
          %v472 = vadd.f32 %v466, %v471
          %s473 = sadd.s32 %s444, 5
          %s474 = sld [smem:[#allocation4 + %s473]]
          %v475 = vld [vmem:[%s313] sm:$0xff]
          %v476 = vstv %s474
          %v477 = vmul.f32 %v476, %v475
          %v478 = vadd.f32 %v472, %v477
          %s479 = sadd.s32 %s444, 6
          %s480 = sld [smem:[#allocation4 + %s479]]
          %v481 = vld [vmem:[%s318] sm:$0xff]
          %v482 = vstv %s480
          %v483 = vmul.f32 %v482, %v481
          %v484 = vadd.f32 %v478, %v483
          %s485 = sadd.s32 %s444, 7
          %s486 = sld [smem:[#allocation4 + %s485]]
          %v487 = vld [vmem:[%s325] sm:$0xff]
          %v488 = vstv %s486
          %v489 = vmul.f32 %v488, %v487
          %v490 = vadd.f32 %v484, %v489
          %s491 = sadd.s32 %s444, 8
          %s492 = sld [smem:[#allocation4 + %s491]]
          %v493 = vld [vmem:[%s332] sm:$0xff]
          %v494 = vstv %s492
          %v495 = vmul.f32 %v494, %v493
          %v496 = vadd.f32 %v490, %v495
          %s497 = sadd.s32 %s444, 9
          %s498 = sld [smem:[#allocation4 + %s497]]
          %v499 = vld [vmem:[%s339] sm:$0xff]
          %v500 = vstv %s498
          %v501 = vmul.f32 %v500, %v499
          %v502 = vadd.f32 %v496, %v501
          %s503 = sadd.s32 %s444, 10
          %s504 = sld [smem:[#allocation4 + %s503]]
          %v505 = vld [vmem:[%s344] sm:$0xff]
          %v506 = vstv %s504
          %v507 = vmul.f32 %v506, %v505
          %v508 = vadd.f32 %v502, %v507
          %s509 = sadd.s32 %s444, 11
          %s510 = sld [smem:[#allocation4 + %s509]]
          %v511 = vld [vmem:[%s349] sm:$0xff]
          %v512 = vstv %s510
          %v513 = vmul.f32 %v512, %v511
          %v514 = vadd.f32 %v508, %v513
          %s515 = sadd.s32 %s444, 12
          %s516 = sld [smem:[#allocation4 + %s515]]
          %v517 = vld [vmem:[%s356] sm:$0xff]
          %v518 = vstv %s516
          %v519 = vmul.f32 %v518, %v517
          %v520 = vadd.f32 %v514, %v519
          %s521 = sadd.s32 %s444, 13
          %s522 = sld [smem:[#allocation4 + %s521]]
          %v523 = vld [vmem:[%s363] sm:$0xff]
          %v524 = vstv %s522
          %v525 = vmul.f32 %v524, %v523
          %v526 = vadd.f32 %v520, %v525
          %s527 = sadd.s32 %s444, 14
          %s528 = sld [smem:[#allocation4 + %s527]]
          %v529 = vld [vmem:[%s370] sm:$0xff]
          %v530 = vstv %s528
          %v531 = vmul.f32 %v530, %v529
          %v532 = vadd.f32 %v526, %v531
          %s533 = sadd.s32 %s444, 15
          %s534 = sld [smem:[#allocation4 + %s533]]
          %v535 = vld [vmem:[%s375] sm:$0xff]
          %v536 = vstv %s534
          %v537 = vmul.f32 %v536, %v535
          %v538 = vadd.f32 %v532, %v537
          %s539 = sadd.s32 %s444, 16
          %s540 = sld [smem:[#allocation4 + %s539]]
          %v541 = vld [vmem:[%s380] sm:$0xff]
          %v542 = vstv %s540
          %v543 = vmul.f32 %v542, %v541
          %v544 = vadd.f32 %v538, %v543
          %s545 = sadd.s32 %s444, 17
          %s546 = sld [smem:[#allocation4 + %s545]]
          %v547 = vld [vmem:[%s387] sm:$0xff]
          %v548 = vstv %s546
          %v549 = vmul.f32 %v548, %v547
          %v550 = vadd.f32 %v544, %v549
          %s551 = sadd.s32 %s444, 18
          %s552 = sld [smem:[#allocation4 + %s551]]
          %v553 = vld [vmem:[%s394] sm:$0xff]
          %v554 = vstv %s552
          %v555 = vmul.f32 %v554, %v553
          %v556 = vadd.f32 %v550, %v555
          %s557 = sadd.s32 %s444, 19
          %s558 = sld [smem:[#allocation4 + %s557]]
          %v559 = vld [vmem:[%s401] sm:$0xff]
          %v560 = vstv %s558
          %v561 = vmul.f32 %v560, %v559
          %v562 = vadd.f32 %v556, %v561
          %s563 = sadd.s32 %s444, 20
          %s564 = sld [smem:[#allocation4 + %s563]]
          %v565 = vld [vmem:[%s406] sm:$0xff]
          %v566 = vstv %s564
          %v567 = vmul.f32 %v566, %v565
          %v568 = vadd.f32 %v562, %v567
          %s569 = sadd.s32 %s444, 21
          %s570 = sld [smem:[#allocation4 + %s569]]
          %v571 = vld [vmem:[%s411] sm:$0xff]
          %v572 = vstv %s570
          %v573 = vmul.f32 %v572, %v571
          %v574 = vadd.f32 %v568, %v573
          %s575 = sadd.s32 %s444, 22
          %s576 = sld [smem:[#allocation4 + %s575]]
          %v577 = vld [vmem:[%s418] sm:$0xff]
          %v578 = vstv %s576
          %v579 = vmul.f32 %v578, %v577
          %v580 = vadd.f32 %v574, %v579
          %s581 = sadd.s32 %s444, 23
          %s582 = sld [smem:[#allocation4 + %s581]]
          %v583 = vld [vmem:[%s425] sm:$0xff]
          %v584 = vstv %s582
          %v585 = vmul.f32 %v584, %v583
          %v586 = vadd.f32 %v580, %v585
          %s587 = sadd.s32 %s444, 24
          %s588 = sld [smem:[#allocation4 + %s587]]
          %v589 = vld [vmem:[%s432] sm:$0xff]
          %v590 = vstv %s588
          %v591 = vmul.f32 %v590, %v589
          %v592 = vadd.f32 %v586, %v591
          %s593 = sld [smem:[#allocation7 + %s443]]
          %v594 = vstv %s593
          %v595 = vadd.f32 %v592, %v594
          %v596 = vmax.f32 %v595, 0.0
          %s597 = sld [smem:[#allocation9 + %s443]]
          %v598 = vstv %s597
          %v599 = vmul.f32 %v598, %v596
          %v600 = vadd.f32 %v442, %v599
          %s601 = sadd.s32 %s443, 1
          %s602 = smul.u32 %s601, 128
          %s603 = sld [smem:[#allocation4 + %s602]]
          %v604 = vstv %s603
          %v605 = vmul.f32 %v604, %v446
          %s606 = sadd.s32 %s602, 1
          %s607 = sld [smem:[#allocation4 + %s606]]
          %v608 = vstv %s607
          %v609 = vmul.f32 %v608, %v451
          %v610 = vadd.f32 %v605, %v609
          %s611 = sadd.s32 %s602, 2
          %s612 = sld [smem:[#allocation4 + %s611]]
          %v613 = vstv %s612
          %v614 = vmul.f32 %v613, %v457
          %v615 = vadd.f32 %v610, %v614
          %s616 = sadd.s32 %s602, 3
          %s617 = sld [smem:[#allocation4 + %s616]]
          %v618 = vstv %s617
          %v619 = vmul.f32 %v618, %v463
          %v620 = vadd.f32 %v615, %v619
          %s621 = sadd.s32 %s602, 4
          %s622 = sld [smem:[#allocation4 + %s621]]
          %v623 = vstv %s622
          %v624 = vmul.f32 %v623, %v469
          %v625 = vadd.f32 %v620, %v624
          %s626 = sadd.s32 %s602, 5
          %s627 = sld [smem:[#allocation4 + %s626]]
          %v628 = vstv %s627
          %v629 = vmul.f32 %v628, %v475
          %v630 = vadd.f32 %v625, %v629
          %s631 = sadd.s32 %s602, 6
          %s632 = sld [smem:[#allocation4 + %s631]]
          %v633 = vstv %s632
          %v634 = vmul.f32 %v633, %v481
          %v635 = vadd.f32 %v630, %v634
          %s636 = sadd.s32 %s602, 7
          %s637 = sld [smem:[#allocation4 + %s636]]
          %v638 = vstv %s637
          %v639 = vmul.f32 %v638, %v487
          %v640 = vadd.f32 %v635, %v639
          %s641 = sadd.s32 %s602, 8
          %s642 = sld [smem:[#allocation4 + %s641]]
          %v643 = vstv %s642
          %v644 = vmul.f32 %v643, %v493
          %v645 = vadd.f32 %v640, %v644
          %s646 = sadd.s32 %s602, 9
          %s647 = sld [smem:[#allocation4 + %s646]]
          %v648 = vstv %s647
          %v649 = vmul.f32 %v648, %v499
          %v650 = vadd.f32 %v645, %v649
          %s651 = sadd.s32 %s602, 10
          %s652 = sld [smem:[#allocation4 + %s651]]
          %v653 = vstv %s652
          %v654 = vmul.f32 %v653, %v505
          %v655 = vadd.f32 %v650, %v654
          %s656 = sadd.s32 %s602, 11
          %s657 = sld [smem:[#allocation4 + %s656]]
          %v658 = vstv %s657
          %v659 = vmul.f32 %v658, %v511
          %v660 = vadd.f32 %v655, %v659
          %s661 = sadd.s32 %s602, 12
          %s662 = sld [smem:[#allocation4 + %s661]]
          %v663 = vstv %s662
          %v664 = vmul.f32 %v663, %v517
          %v665 = vadd.f32 %v660, %v664
          %s666 = sadd.s32 %s602, 13
          %s667 = sld [smem:[#allocation4 + %s666]]
          %v668 = vstv %s667
          %v669 = vmul.f32 %v668, %v523
          %v670 = vadd.f32 %v665, %v669
          %s671 = sadd.s32 %s602, 14
          %s672 = sld [smem:[#allocation4 + %s671]]
          %v673 = vstv %s672
          %v674 = vmul.f32 %v673, %v529
          %v675 = vadd.f32 %v670, %v674
          %s676 = sadd.s32 %s602, 15
          %s677 = sld [smem:[#allocation4 + %s676]]
          %v678 = vstv %s677
          %v679 = vmul.f32 %v678, %v535
          %v680 = vadd.f32 %v675, %v679
          %s681 = sadd.s32 %s602, 16
          %s682 = sld [smem:[#allocation4 + %s681]]
          %v683 = vstv %s682
          %v684 = vmul.f32 %v683, %v541
          %v685 = vadd.f32 %v680, %v684
          %s686 = sadd.s32 %s602, 17
          %s687 = sld [smem:[#allocation4 + %s686]]
          %v688 = vstv %s687
          %v689 = vmul.f32 %v688, %v547
          %v690 = vadd.f32 %v685, %v689
          %s691 = sadd.s32 %s602, 18
          %s692 = sld [smem:[#allocation4 + %s691]]
          %v693 = vstv %s692
          %v694 = vmul.f32 %v693, %v553
          %v695 = vadd.f32 %v690, %v694
          %s696 = sadd.s32 %s602, 19
          %s697 = sld [smem:[#allocation4 + %s696]]
          %v698 = vstv %s697
          %v699 = vmul.f32 %v698, %v559
          %v700 = vadd.f32 %v695, %v699
          %s701 = sadd.s32 %s602, 20
          %s702 = sld [smem:[#allocation4 + %s701]]
          %v703 = vstv %s702
          %v704 = vmul.f32 %v703, %v565
          %v705 = vadd.f32 %v700, %v704
          %s706 = sadd.s32 %s602, 21
          %s707 = sld [smem:[#allocation4 + %s706]]
          %v708 = vstv %s707
          %v709 = vmul.f32 %v708, %v571
          %v710 = vadd.f32 %v705, %v709
          %s711 = sadd.s32 %s602, 22
          %s712 = sld [smem:[#allocation4 + %s711]]
          %v713 = vstv %s712
          %v714 = vmul.f32 %v713, %v577
          %v715 = vadd.f32 %v710, %v714
          %s716 = sadd.s32 %s602, 23
          %s717 = sld [smem:[#allocation4 + %s716]]
          %v718 = vstv %s717
          %v719 = vmul.f32 %v718, %v583
          %v720 = vadd.f32 %v715, %v719
          %s721 = sadd.s32 %s602, 24
          %s722 = sld [smem:[#allocation4 + %s721]]
          %v723 = vstv %s722
          %v724 = vmul.f32 %v723, %v589
          %v725 = vadd.f32 %v720, %v724
          %s726 = sld [smem:[#allocation7 + %s601]]
          %v727 = vstv %s726
          %v728 = vadd.f32 %v725, %v727
          %v729 = vmax.f32 %v728, 0.0
          %s730 = sld [smem:[#allocation9 + %s601]]
          %v731 = vstv %s730
          %v732 = vmul.f32 %v731, %v729
          %v733 = vadd.f32 %v600, %v732
          %s734 = sadd.s32 %s443, 2
          %s735 = smul.u32 %s734, 128
          %s736 = sld [smem:[#allocation4 + %s735]]
          %v737 = vstv %s736
          %v738 = vmul.f32 %v737, %v446
          %s739 = sadd.s32 %s735, 1
          %s740 = sld [smem:[#allocation4 + %s739]]
          %v741 = vstv %s740
          %v742 = vmul.f32 %v741, %v451
          %v743 = vadd.f32 %v738, %v742
          %s744 = sadd.s32 %s735, 2
          %s745 = sld [smem:[#allocation4 + %s744]]
          %v746 = vstv %s745
          %v747 = vmul.f32 %v746, %v457
          %v748 = vadd.f32 %v743, %v747
          %s749 = sadd.s32 %s735, 3
          %s750 = sld [smem:[#allocation4 + %s749]]
          %v751 = vstv %s750
          %v752 = vmul.f32 %v751, %v463
          %v753 = vadd.f32 %v748, %v752
          %s754 = sadd.s32 %s735, 4
          %s755 = sld [smem:[#allocation4 + %s754]]
          %v756 = vstv %s755
          %v757 = vmul.f32 %v756, %v469
          %v758 = vadd.f32 %v753, %v757
          %s759 = sadd.s32 %s735, 5
          %s760 = sld [smem:[#allocation4 + %s759]]
          %v761 = vstv %s760
          %v762 = vmul.f32 %v761, %v475
          %v763 = vadd.f32 %v758, %v762
          %s764 = sadd.s32 %s735, 6
          %s765 = sld [smem:[#allocation4 + %s764]]
          %v766 = vstv %s765
          %v767 = vmul.f32 %v766, %v481
          %v768 = vadd.f32 %v763, %v767
          %s769 = sadd.s32 %s735, 7
          %s770 = sld [smem:[#allocation4 + %s769]]
          %v771 = vstv %s770
          %v772 = vmul.f32 %v771, %v487
          %v773 = vadd.f32 %v768, %v772
          %s774 = sadd.s32 %s735, 8
          %s775 = sld [smem:[#allocation4 + %s774]]
          %v776 = vstv %s775
          %v777 = vmul.f32 %v776, %v493
          %v778 = vadd.f32 %v773, %v777
          %s779 = sadd.s32 %s735, 9
          %s780 = sld [smem:[#allocation4 + %s779]]
          %v781 = vstv %s780
          %v782 = vmul.f32 %v781, %v499
          %v783 = vadd.f32 %v778, %v782
          %s784 = sadd.s32 %s735, 10
          %s785 = sld [smem:[#allocation4 + %s784]]
          %v786 = vstv %s785
          %v787 = vmul.f32 %v786, %v505
          %v788 = vadd.f32 %v783, %v787
          %s789 = sadd.s32 %s735, 11
          %s790 = sld [smem:[#allocation4 + %s789]]
          %v791 = vstv %s790
          %v792 = vmul.f32 %v791, %v511
          %v793 = vadd.f32 %v788, %v792
          %s794 = sadd.s32 %s735, 12
          %s795 = sld [smem:[#allocation4 + %s794]]
          %v796 = vstv %s795
          %v797 = vmul.f32 %v796, %v517
          %v798 = vadd.f32 %v793, %v797
          %s799 = sadd.s32 %s735, 13
          %s800 = sld [smem:[#allocation4 + %s799]]
          %v801 = vstv %s800
          %v802 = vmul.f32 %v801, %v523
          %v803 = vadd.f32 %v798, %v802
          %s804 = sadd.s32 %s735, 14
          %s805 = sld [smem:[#allocation4 + %s804]]
          %v806 = vstv %s805
          %v807 = vmul.f32 %v806, %v529
          %v808 = vadd.f32 %v803, %v807
          %s809 = sadd.s32 %s735, 15
          %s810 = sld [smem:[#allocation4 + %s809]]
          %v811 = vstv %s810
          %v812 = vmul.f32 %v811, %v535
          %v813 = vadd.f32 %v808, %v812
          %s814 = sadd.s32 %s735, 16
          %s815 = sld [smem:[#allocation4 + %s814]]
          %v816 = vstv %s815
          %v817 = vmul.f32 %v816, %v541
          %v818 = vadd.f32 %v813, %v817
          %s819 = sadd.s32 %s735, 17
          %s820 = sld [smem:[#allocation4 + %s819]]
          %v821 = vstv %s820
          %v822 = vmul.f32 %v821, %v547
          %v823 = vadd.f32 %v818, %v822
          %s824 = sadd.s32 %s735, 18
          %s825 = sld [smem:[#allocation4 + %s824]]
          %v826 = vstv %s825
          %v827 = vmul.f32 %v826, %v553
          %v828 = vadd.f32 %v823, %v827
          %s829 = sadd.s32 %s735, 19
          %s830 = sld [smem:[#allocation4 + %s829]]
          %v831 = vstv %s830
          %v832 = vmul.f32 %v831, %v559
          %v833 = vadd.f32 %v828, %v832
          %s834 = sadd.s32 %s735, 20
          %s835 = sld [smem:[#allocation4 + %s834]]
          %v836 = vstv %s835
          %v837 = vmul.f32 %v836, %v565
          %v838 = vadd.f32 %v833, %v837
          %s839 = sadd.s32 %s735, 21
          %s840 = sld [smem:[#allocation4 + %s839]]
          %v841 = vstv %s840
          %v842 = vmul.f32 %v841, %v571
          %v843 = vadd.f32 %v838, %v842
          %s844 = sadd.s32 %s735, 22
          %s845 = sld [smem:[#allocation4 + %s844]]
          %v846 = vstv %s845
          %v847 = vmul.f32 %v846, %v577
          %v848 = vadd.f32 %v843, %v847
          %s849 = sadd.s32 %s735, 23
          %s850 = sld [smem:[#allocation4 + %s849]]
          %v851 = vstv %s850
          %v852 = vmul.f32 %v851, %v583
          %v853 = vadd.f32 %v848, %v852
          %s854 = sadd.s32 %s735, 24
          %s855 = sld [smem:[#allocation4 + %s854]]
          %v856 = vstv %s855
          %v857 = vmul.f32 %v856, %v589
          %v858 = vadd.f32 %v853, %v857
          %s859 = sld [smem:[#allocation7 + %s734]]
          %v860 = vstv %s859
          %v861 = vadd.f32 %v858, %v860
          %v862 = vmax.f32 %v861, 0.0
          %s863 = sld [smem:[#allocation9 + %s734]]
          %v864 = vstv %s863
          %v865 = vmul.f32 %v864, %v862
          %v866 = vadd.f32 %v733, %v865
          %s867 = sadd.s32 %s443, 3
          %s868 = smul.u32 %s867, 128
          %s869 = sld [smem:[#allocation4 + %s868]]
          %v870 = vstv %s869
          %v871 = vmul.f32 %v870, %v446
          %s872 = sadd.s32 %s868, 1
          %s873 = sld [smem:[#allocation4 + %s872]]
          %v874 = vstv %s873
          %v875 = vmul.f32 %v874, %v451
          %v876 = vadd.f32 %v871, %v875
          %s877 = sadd.s32 %s868, 2
          %s878 = sld [smem:[#allocation4 + %s877]]
          %v879 = vstv %s878
          %v880 = vmul.f32 %v879, %v457
          %v881 = vadd.f32 %v876, %v880
          %s882 = sadd.s32 %s868, 3
          %s883 = sld [smem:[#allocation4 + %s882]]
          %v884 = vstv %s883
          %v885 = vmul.f32 %v884, %v463
          %v886 = vadd.f32 %v881, %v885
          %s887 = sadd.s32 %s868, 4
          %s888 = sld [smem:[#allocation4 + %s887]]
          %v889 = vstv %s888
          %v890 = vmul.f32 %v889, %v469
          %v891 = vadd.f32 %v886, %v890
          %s892 = sadd.s32 %s868, 5
          %s893 = sld [smem:[#allocation4 + %s892]]
          %v894 = vstv %s893
          %v895 = vmul.f32 %v894, %v475
          %v896 = vadd.f32 %v891, %v895
          %s897 = sadd.s32 %s868, 6
          %s898 = sld [smem:[#allocation4 + %s897]]
          %v899 = vstv %s898
          %v900 = vmul.f32 %v899, %v481
          %v901 = vadd.f32 %v896, %v900
          %s902 = sadd.s32 %s868, 7
          %s903 = sld [smem:[#allocation4 + %s902]]
          %v904 = vstv %s903
          %v905 = vmul.f32 %v904, %v487
          %v906 = vadd.f32 %v901, %v905
          %s907 = sadd.s32 %s868, 8
          %s908 = sld [smem:[#allocation4 + %s907]]
          %v909 = vstv %s908
          %v910 = vmul.f32 %v909, %v493
          %v911 = vadd.f32 %v906, %v910
          %s912 = sadd.s32 %s868, 9
          %s913 = sld [smem:[#allocation4 + %s912]]
          %v914 = vstv %s913
          %v915 = vmul.f32 %v914, %v499
          %v916 = vadd.f32 %v911, %v915
          %s917 = sadd.s32 %s868, 10
          %s918 = sld [smem:[#allocation4 + %s917]]
          %v919 = vstv %s918
          %v920 = vmul.f32 %v919, %v505
          %v921 = vadd.f32 %v916, %v920
          %s922 = sadd.s32 %s868, 11
          %s923 = sld [smem:[#allocation4 + %s922]]
          %v924 = vstv %s923
          %v925 = vmul.f32 %v924, %v511
          %v926 = vadd.f32 %v921, %v925
          %s927 = sadd.s32 %s868, 12
          %s928 = sld [smem:[#allocation4 + %s927]]
          %v929 = vstv %s928
          %v930 = vmul.f32 %v929, %v517
          %v931 = vadd.f32 %v926, %v930
          %s932 = sadd.s32 %s868, 13
          %s933 = sld [smem:[#allocation4 + %s932]]
          %v934 = vstv %s933
          %v935 = vmul.f32 %v934, %v523
          %v936 = vadd.f32 %v931, %v935
          %s937 = sadd.s32 %s868, 14
          %s938 = sld [smem:[#allocation4 + %s937]]
          %v939 = vstv %s938
          %v940 = vmul.f32 %v939, %v529
          %v941 = vadd.f32 %v936, %v940
          %s942 = sadd.s32 %s868, 15
          %s943 = sld [smem:[#allocation4 + %s942]]
          %v944 = vstv %s943
          %v945 = vmul.f32 %v944, %v535
          %v946 = vadd.f32 %v941, %v945
          %s947 = sadd.s32 %s868, 16
          %s948 = sld [smem:[#allocation4 + %s947]]
          %v949 = vstv %s948
          %v950 = vmul.f32 %v949, %v541
          %v951 = vadd.f32 %v946, %v950
          %s952 = sadd.s32 %s868, 17
          %s953 = sld [smem:[#allocation4 + %s952]]
          %v954 = vstv %s953
          %v955 = vmul.f32 %v954, %v547
          %v956 = vadd.f32 %v951, %v955
          %s957 = sadd.s32 %s868, 18
          %s958 = sld [smem:[#allocation4 + %s957]]
          %v959 = vstv %s958
          %v960 = vmul.f32 %v959, %v553
          %v961 = vadd.f32 %v956, %v960
          %s962 = sadd.s32 %s868, 19
          %s963 = sld [smem:[#allocation4 + %s962]]
          %v964 = vstv %s963
          %v965 = vmul.f32 %v964, %v559
          %v966 = vadd.f32 %v961, %v965
          %s967 = sadd.s32 %s868, 20
          %s968 = sld [smem:[#allocation4 + %s967]]
          %v969 = vstv %s968
          %v970 = vmul.f32 %v969, %v565
          %v971 = vadd.f32 %v966, %v970
          %s972 = sadd.s32 %s868, 21
          %s973 = sld [smem:[#allocation4 + %s972]]
          %v974 = vstv %s973
          %v975 = vmul.f32 %v974, %v571
          %v976 = vadd.f32 %v971, %v975
          %s977 = sadd.s32 %s868, 22
          %s978 = sld [smem:[#allocation4 + %s977]]
          %v979 = vstv %s978
          %v980 = vmul.f32 %v979, %v577
          %v981 = vadd.f32 %v976, %v980
          %s982 = sadd.s32 %s868, 23
          %s983 = sld [smem:[#allocation4 + %s982]]
          %v984 = vstv %s983
          %v985 = vmul.f32 %v984, %v583
          %v986 = vadd.f32 %v981, %v985
          %s987 = sadd.s32 %s868, 24
          %s988 = sld [smem:[#allocation4 + %s987]]
          %v989 = vstv %s988
          %v990 = vmul.f32 %v989, %v589
          %v991 = vadd.f32 %v986, %v990
          %s992 = sld [smem:[#allocation7 + %s867]]
          %v993 = vstv %s992
          %v994 = vadd.f32 %v991, %v993
          %v995 = vmax.f32 %v994, 0.0
          %s996 = sld [smem:[#allocation9 + %s867]]
          %v997 = vstv %s996
          %v998 = vmul.f32 %v997, %v995
          %v999 = vadd.f32 %v866, %v998
          %s1000 = sadd.s32 %s443, 4
          %s1001 = smul.u32 %s1000, 128
          %s1002 = sld [smem:[#allocation4 + %s1001]]
          %v1003 = vstv %s1002
          %v1004 = vmul.f32 %v1003, %v446
          %s1005 = sadd.s32 %s1001, 1
          %s1006 = sld [smem:[#allocation4 + %s1005]]
          %v1007 = vstv %s1006
          %v1008 = vmul.f32 %v1007, %v451
          %v1009 = vadd.f32 %v1004, %v1008
          %s1010 = sadd.s32 %s1001, 2
          %s1011 = sld [smem:[#allocation4 + %s1010]]
          %v1012 = vstv %s1011
          %v1013 = vmul.f32 %v1012, %v457
          %v1014 = vadd.f32 %v1009, %v1013
          %s1015 = sadd.s32 %s1001, 3
          %s1016 = sld [smem:[#allocation4 + %s1015]]
          %v1017 = vstv %s1016
          %v1018 = vmul.f32 %v1017, %v463
          %v1019 = vadd.f32 %v1014, %v1018
          %s1020 = sadd.s32 %s1001, 4
          %s1021 = sld [smem:[#allocation4 + %s1020]]
          %v1022 = vstv %s1021
          %v1023 = vmul.f32 %v1022, %v469
          %v1024 = vadd.f32 %v1019, %v1023
          %s1025 = sadd.s32 %s1001, 5
          %s1026 = sld [smem:[#allocation4 + %s1025]]
          %v1027 = vstv %s1026
          %v1028 = vmul.f32 %v1027, %v475
          %v1029 = vadd.f32 %v1024, %v1028
          %s1030 = sadd.s32 %s1001, 6
          %s1031 = sld [smem:[#allocation4 + %s1030]]
          %v1032 = vstv %s1031
          %v1033 = vmul.f32 %v1032, %v481
          %v1034 = vadd.f32 %v1029, %v1033
          %s1035 = sadd.s32 %s1001, 7
          %s1036 = sld [smem:[#allocation4 + %s1035]]
          %v1037 = vstv %s1036
          %v1038 = vmul.f32 %v1037, %v487
          %v1039 = vadd.f32 %v1034, %v1038
          %s1040 = sadd.s32 %s1001, 8
          %s1041 = sld [smem:[#allocation4 + %s1040]]
          %v1042 = vstv %s1041
          %v1043 = vmul.f32 %v1042, %v493
          %v1044 = vadd.f32 %v1039, %v1043
          %s1045 = sadd.s32 %s1001, 9
          %s1046 = sld [smem:[#allocation4 + %s1045]]
          %v1047 = vstv %s1046
          %v1048 = vmul.f32 %v1047, %v499
          %v1049 = vadd.f32 %v1044, %v1048
          %s1050 = sadd.s32 %s1001, 10
          %s1051 = sld [smem:[#allocation4 + %s1050]]
          %v1052 = vstv %s1051
          %v1053 = vmul.f32 %v1052, %v505
          %v1054 = vadd.f32 %v1049, %v1053
          %s1055 = sadd.s32 %s1001, 11
          %s1056 = sld [smem:[#allocation4 + %s1055]]
          %v1057 = vstv %s1056
          %v1058 = vmul.f32 %v1057, %v511
          %v1059 = vadd.f32 %v1054, %v1058
          %s1060 = sadd.s32 %s1001, 12
          %s1061 = sld [smem:[#allocation4 + %s1060]]
          %v1062 = vstv %s1061
          %v1063 = vmul.f32 %v1062, %v517
          %v1064 = vadd.f32 %v1059, %v1063
          %s1065 = sadd.s32 %s1001, 13
          %s1066 = sld [smem:[#allocation4 + %s1065]]
          %v1067 = vstv %s1066
          %v1068 = vmul.f32 %v1067, %v523
          %v1069 = vadd.f32 %v1064, %v1068
          %s1070 = sadd.s32 %s1001, 14
          %s1071 = sld [smem:[#allocation4 + %s1070]]
          %v1072 = vstv %s1071
          %v1073 = vmul.f32 %v1072, %v529
          %v1074 = vadd.f32 %v1069, %v1073
          %s1075 = sadd.s32 %s1001, 15
          %s1076 = sld [smem:[#allocation4 + %s1075]]
          %v1077 = vstv %s1076
          %v1078 = vmul.f32 %v1077, %v535
          %v1079 = vadd.f32 %v1074, %v1078
          %s1080 = sadd.s32 %s1001, 16
          %s1081 = sld [smem:[#allocation4 + %s1080]]
          %v1082 = vstv %s1081
          %v1083 = vmul.f32 %v1082, %v541
          %v1084 = vadd.f32 %v1079, %v1083
          %s1085 = sadd.s32 %s1001, 17
          %s1086 = sld [smem:[#allocation4 + %s1085]]
          %v1087 = vstv %s1086
          %v1088 = vmul.f32 %v1087, %v547
          %v1089 = vadd.f32 %v1084, %v1088
          %s1090 = sadd.s32 %s1001, 18
          %s1091 = sld [smem:[#allocation4 + %s1090]]
          %v1092 = vstv %s1091
          %v1093 = vmul.f32 %v1092, %v553
          %v1094 = vadd.f32 %v1089, %v1093
          %s1095 = sadd.s32 %s1001, 19
          %s1096 = sld [smem:[#allocation4 + %s1095]]
          %v1097 = vstv %s1096
          %v1098 = vmul.f32 %v1097, %v559
          %v1099 = vadd.f32 %v1094, %v1098
          %s1100 = sadd.s32 %s1001, 20
          %s1101 = sld [smem:[#allocation4 + %s1100]]
          %v1102 = vstv %s1101
          %v1103 = vmul.f32 %v1102, %v565
          %v1104 = vadd.f32 %v1099, %v1103
          %s1105 = sadd.s32 %s1001, 21
          %s1106 = sld [smem:[#allocation4 + %s1105]]
          %v1107 = vstv %s1106
          %v1108 = vmul.f32 %v1107, %v571
          %v1109 = vadd.f32 %v1104, %v1108
          %s1110 = sadd.s32 %s1001, 22
          %s1111 = sld [smem:[#allocation4 + %s1110]]
          %v1112 = vstv %s1111
          %v1113 = vmul.f32 %v1112, %v577
          %v1114 = vadd.f32 %v1109, %v1113
          %s1115 = sadd.s32 %s1001, 23
          %s1116 = sld [smem:[#allocation4 + %s1115]]
          %v1117 = vstv %s1116
          %v1118 = vmul.f32 %v1117, %v583
          %v1119 = vadd.f32 %v1114, %v1118
          %s1120 = sadd.s32 %s1001, 24
          %s1121 = sld [smem:[#allocation4 + %s1120]]
          %v1122 = vstv %s1121
          %v1123 = vmul.f32 %v1122, %v589
          %v1124 = vadd.f32 %v1119, %v1123
          %s1125 = sld [smem:[#allocation7 + %s1000]]
          %v1126 = vstv %s1125
          %v1127 = vadd.f32 %v1124, %v1126
          %v1128 = vmax.f32 %v1127, 0.0
          %s1129 = sld [smem:[#allocation9 + %s1000]]
          %v1130 = vstv %s1129
          %v1131 = vmul.f32 %v1130, %v1128
          %v1132 = vadd.f32 %v999, %v1131
        $region57: #{tpu_custom_call.1} parent=39 // loop_footer
          %s441 = sadd.s32 1, %s437
        $region58: #{tpu_custom_call.1} parent=39 // loop_footer_branch
          %436 = sbr.rel target = $region54
        $region59: #{tpu_custom_call.1} parent=39 // loop_exit
          _
        %1133 = vst.msk [vmem:[%s273] sm:$0xff] %vm282, %v442
        %s1134 = sand.u32 %s154, 1
        %s1135 = scalar_lea.sflag [#allocation5], %s1134
        %s1136 = sand.u32 %s154, 1
        %s1137 = smul.addr %s1136, 8
        %s1138 = scalar_lea.vmem [#allocation10], %s1137
        // Predicated region
        $region60: #{tpu_custom_call.1} parent=39 // pred_check
          %p1139 = pneg %p164
        $region61: #{tpu_custom_call.1} parent=39 // pred_check_branch
          %1141 = sbr.rel (%p1139) target = $region63
        $region62: #{tpu_custom_call.1} parent=39 // pred_region
          %s1143 = ssub.s32 128, 128
          %1144 = vsyncadd %s1135, %s1143
          %s1145 = smul.addr %s26, 2
          %s1146 = sadd.s32 %s27, %s1145
          %s1147 = smul.addr %s1146, 128
          %s1148 = scalar_lea.hbm %s5, %s1147
          %s1150 = sshll.u32 %s1138, 4
          %s1151 = int_to_ptr.vmem [resolvable:$true] %s1150
          %1153 = dma.vmem_to_hbm [thread:$0]  %s1151, 128, %s1148, %s1135
        $region63: #{tpu_custom_call.1} parent=39 // pred_fallthru
          _
      $region40: #{tpu_custom_call.1} parent=5 // pred_fallthru
        _
      %p1154 = scmp.le.s32.totalorder 2, %s17
      // Predicated region
      $region64: #{tpu_custom_call.1} parent=5 // pred_check
        %p1155 = pneg %p1154
      $region65: #{tpu_custom_call.1} parent=5 // pred_check_branch
        %1157 = sbr.rel (%p1155) target = $region67
      $region66: #{tpu_custom_call.1} parent=5 // pred_region
        %s1158 = ssub.s32 %s17, 2
        // Predicated region
        $region68: #{tpu_custom_call.1} parent=66 // pred_check
          %p1159 = pneg %p170
        $region69: #{tpu_custom_call.1} parent=66 // pred_check_branch
          %1161 = sbr.rel (%p1159) target = $region71
        $region70: #{tpu_custom_call.1} parent=66 // pred_region
          %s1162 = sand.u32 %s155, 1
          %s1163 = scalar_lea.sflag [#allocation5], %s1162
          %s1164 = sand.u32 %s155, 1
          %s1165 = smul.addr %s1164, 8
          %s1166 = scalar_lea.vmem [#allocation10], %s1165
          %1167 = dma.done %s1163, 128
        $region71: #{tpu_custom_call.1} parent=66 // pred_fallthru
          _
      $region67: #{tpu_custom_call.1} parent=5 // pred_fallthru
        _
    $region6: #{tpu_custom_call.1} parent=1 // loop_footer
      %s21 = sadd.s32 1, %s17
    $region7: #{tpu_custom_call.1} parent=1 // loop_footer_branch
      %16 = sbr.rel target = $region3
    $region8: #{tpu_custom_call.1} parent=1 // loop_exit
      _
    %1168 = vsyncpa [#allocation5], 1
    %s1169 = scalar_lea.sflag [#allocation5], 1
    %1170 = vsyncpa %s1169, 1
    %1171 = vsyncpa [#allocation6], 1
    %s1172 = scalar_lea.sflag [#allocation6], 1
    %1173 = vsyncpa %s1172, 1
    %1174 = vsyncpa [#allocation8], 1

</llo_original>
